<compile_context>
chip_gen: v5e
topology: v5e:2x2
jax: 0.10.0
libtpu: 0.0.40
codegen_flags: <defaults>
</compile_context>

<pallas_src>
import functools
from math import ceil

import jax
import jax.numpy as jnp
from jax import lax
from jax.experimental import pallas as pl
from jax.experimental.pallas import tpu as pltpu

_BN_INV_STD = (1.0 + 1e-5) ** -0.5   # eval-mode BN with running stats (0, 1)
_EDGE_H = 16                         # EdgeFeatureConv out_channels
_FPAD = 64                           # padded per-conv feature width
_WROWS = 3 * _FPAD                   # padded weight-slot rows (192)


# ----------------------------------------------------------------------------
# In-kernel helpers (traced inline; operate on already-loaded jnp values)
# ----------------------------------------------------------------------------
def _normalize_adj(a):
    """A_hat = A + I;  return D^-1/2 A_hat D^-1/2 (adjacency is symmetric)."""
    n = a.shape[0]
    eye = (lax.broadcasted_iota(jnp.int32, (n, n), 0)
           == lax.broadcasted_iota(jnp.int32, (n, n), 1)).astype(jnp.float32)
    a_hat = a + eye
    d_row = lax.rsqrt(jnp.maximum(jnp.sum(a_hat, axis=1, keepdims=True), 1e-12))
    d_col = lax.rsqrt(jnp.maximum(jnp.sum(a_hat, axis=0, keepdims=True), 1e-12))
    return a_hat * d_row * d_col


def _gcn(x, a_norm, w, b):
    """Dense GCN layer + ReLU.  (BN scale already folded into w, b.)"""
    h = jnp.dot(x, w, preferred_element_type=jnp.float32)           # X W
    h = jnp.dot(a_norm, h, preferred_element_type=jnp.float32) + b  # A_hat X W + b
    return jnp.maximum(h, 0.0)


def _wslot(wref, slot, fin):
    """Weight slot `slot` restricted to its (padded) input width `fin`."""
    w = wref[slot]                                   # [192, 64]
    return w if fin == _WROWS else w[:fin, :]        # aligned row sub-slice


def _stage(x, a, wref, bref, base, c_out):
    """One diffpool stage: pool-GNN -> s, embed-GNN -> xe, x'=s^T xe, A'=s^T A s."""
    fin = x.shape[1]
    a_norm = _normalize_adj(a)                # shared by all 6 GCN layers

    # --- pool branch: GNN(lin=True) -> cluster assignment ---
    p1 = _gcn(x,  a_norm, _wslot(wref, base + 0, fin),   bref[base + 0])
    p2 = _gcn(p1, a_norm, _wslot(wref, base + 1, _FPAD), bref[base + 1])
    p3 = _gcn(p2, a_norm, _wslot(wref, base + 2, _FPAD), bref[base + 2])
    s = jnp.concatenate([p1, p2, p3], axis=1)                          # [N, 192]
    s = jnp.dot(s, wref[base + 3], preferred_element_type=jnp.float32) + bref[base + 3]
    s = jnp.maximum(s, 0.0)[:, :c_out]        # drop zero padding before softmax
    s = jax.nn.softmax(s, axis=-1)                                     # [N, C]

    # --- embed branch: GNN(lin=False) ---
    e1 = _gcn(x,  a_norm, _wslot(wref, base + 4, fin),   bref[base + 4])
    e2 = _gcn(e1, a_norm, _wslot(wref, base + 5, _FPAD), bref[base + 5])
    e3 = _gcn(e2, a_norm, _wslot(wref, base + 6, _FPAD), bref[base + 6])
    xe = jnp.concatenate([e1, e2, e3], axis=1)                         # [N, 192]

    xo = lax.dot_general(s, xe, (((0,), (0,)), ((), ())),
                         preferred_element_type=jnp.float32)           # s^T xe
    sa = lax.dot_general(s, a, (((0,), (0,)), ((), ())),
                         preferred_element_type=jnp.float32)           # s^T A
    ao = jnp.dot(sa, s, preferred_element_type=jnp.float32)            # s^T A s
    return xo, ao


def _head(x, a, wref, bref, base, nc):
    """gnn3_embed + mean pool + lin1/ReLU + lin2 + log_softmax."""
    a_norm = _normalize_adj(a)
    e1 = _gcn(x,  a_norm, _wslot(wref, base + 0, x.shape[1]), bref[base + 0])
    e2 = _gcn(e1, a_norm, _wslot(wref, base + 1, _FPAD),      bref[base + 1])
    e3 = _gcn(e2, a_norm, _wslot(wref, base + 2, _FPAD),      bref[base + 2])
    m = jnp.concatenate([jnp.mean(e1, axis=0, keepdims=True),
                         jnp.mean(e2, axis=0, keepdims=True),
                         jnp.mean(e3, axis=0, keepdims=True)], axis=1)  # [1, 192]
    h = jnp.maximum(
        jnp.dot(m, wref[base + 3], preferred_element_type=jnp.float32)
        + bref[base + 3], 0.0)                                          # lin1 + ReLU
    logits = (jnp.dot(h, _wslot(wref, base + 4, _FPAD),
                      preferred_element_type=jnp.float32) + bref[base + 4])
    return jax.nn.log_softmax(logits[:, :nc], axis=-1)                  # [1, nc]


# ----------------------------------------------------------------------------
# Fully fused kernel (one grid step == one graph)
# ----------------------------------------------------------------------------
def _net_kernel(x_ref, adj_ref, ea_ref, w1c_ref, w1e_ref, b1_ref, w2_ref, b2_ref,
                wstk_ref, bstk_ref, out_ref, *, n1, n2, n2a, nc):
    x_in = x_ref[...]                                   # [N, Din]
    adj = adj_ref[...]                                  # [N, N]
    n = adj.shape[0]

    # ---- EdgeFeatureConv (MXU formulation, lane-dense) ----
    nrm = jnp.sqrt(jnp.sum(x_in * x_in, axis=1, keepdims=True))
    xn = x_in / jnp.maximum(nrm, 1e-8)
    cos = lax.dot_general(xn, xn, (((1,), (1,)), ((), ())),
                          preferred_element_type=jnp.float32)          # [N, N]
    pre = (jnp.dot(cos, w1c_ref[...], preferred_element_type=jnp.float32)
           + jnp.dot(ea_ref[...], w1e_ref[...], preferred_element_type=jnp.float32)
           + b1_ref[...])                                              # [N, H*N]
    r = jnp.maximum(pre, 0.0)                                          # relu(Lin1)
    h_edge = r.shape[1] // n
    adj_t = jnp.concatenate([adj] * h_edge, axis=1)                    # [N, H*N]
    deg = jnp.sum(adj, axis=1, keepdims=True)                          # [N, 1]
    # Lin2 projection + sum-over-neighbors aggregation fused into one matmul.
    x0 = (jnp.dot(r * adj_t, w2_ref[...], preferred_element_type=jnp.float32)
          + deg * b2_ref[...])                                         # [N, 64]

    # ---- three diffpool stages + final head, all in VMEM ----
    x1, a1 = _stage(x0, adj, wstk_ref, bstk_ref, base=0,  c_out=n1)
    x2, a2 = _stage(x1, a1,  wstk_ref, bstk_ref, base=7,  c_out=n2)
    x3, a3 = _stage(x2, a2,  wstk_ref, bstk_ref, base=14, c_out=n2a)
    out_ref[...] = _head(x3, a3, wstk_ref, bstk_ref, base=21, nc=nc)


# ----------------------------------------------------------------------------
# Wrapper: one pallas_call over the batch
# ----------------------------------------------------------------------------
def net_forward(packed, x, adj, edge_attr):
    B, N, Din = x.shape
    nc = packed["nc"]
    # edge_attr [B,N,N,5] -> per-row channel-block layout [B, N, 5*N], [i, k*N+j]
    ea_flat = jnp.transpose(edge_attr, (0, 1, 3, 2)).reshape(B, N, 5 * N)

    kern = functools.partial(_net_kernel, n1=packed["n1"], n2=packed["n2"],
                             n2a=packed["n2a"], nc=nc)

    def _rep(shape):  # batch-replicated (resident) weight block
        return pl.BlockSpec(shape, lambda b, _nd=len(shape): (0,) * _nd)

    w_args = (packed["w1c"], packed["w1e"], packed["b1big"], packed["w2big"],
              packed["b2"], packed["wstk"], packed["bstk"])
    out = pl.pallas_call(
        kern,
        out_shape=jax.ShapeDtypeStruct((B, 1, nc), jnp.float32),
        grid=(B,),
        in_specs=[
            pl.BlockSpec((None, N, Din), lambda b: (b, 0, 0)),
            pl.BlockSpec((None, N, N), lambda b: (b, 0, 0)),
            pl.BlockSpec((None, N, 5 * N), lambda b: (b, 0, 0)),
        ] + [_rep(w.shape) for w in w_args],
        out_specs=pl.BlockSpec((None, 1, nc), lambda b: (b, 0, 0)),
        compiler_params=pltpu.CompilerParams(dimension_semantics=("parallel",)),
    )(x, adj, ea_flat, *w_args)
    return out.reshape(B, nc)


# ----------------------------------------------------------------------------
# Parameter init (deterministic, synthetic) + host-side packing
# ----------------------------------------------------------------------------
def _linear_init(key, fan_in, fan_out):
    kw, kb = jax.random.split(key)
    w = jax.random.normal(kw, (fan_in, fan_out), jnp.float32) / jnp.sqrt(
        jnp.float32(fan_in))
    b = jax.random.normal(kb, (1, fan_out), jnp.float32) * 0.01
    return w, b


def _init_gnn(key, c_in, c_hid, c_out, lin):
    keys = jax.random.split(key, 4)

    def conv(k, fi, fo):
        w, b = _linear_init(k, fi, fo)
        return {"w": w, "b": b,
                "gamma": jnp.ones((1, fo), jnp.float32),
                "beta": jnp.zeros((1, fo), jnp.float32)}

    p = {"conv1": conv(keys[0], c_in, c_hid),
         "conv2": conv(keys[1], c_hid, c_hid),
         "conv3": conv(keys[2], c_hid, c_out)}
    if lin:
        w, b = _linear_init(keys[3], 2 * c_hid + c_out, c_out)
        p["lin"] = {"w": w, "b": b}
    return p


def init_net_params(key, max_nodes, num_classes):
    edge_out = _EDGE_H
    n1 = ceil(0.25 * max_nodes)
    n2 = ceil(0.25 * n1)
    n2a = ceil(16)
    ks = jax.random.split(key, 11)
    w1, b1 = _linear_init(ks[0], 6, edge_out)
    w2, b2 = _linear_init(ks[1], edge_out, edge_out)
    lw1, lb1 = _linear_init(ks[9], 3 * 64, 64)
    lw2, lb2 = _linear_init(ks[10], 64, num_classes)
    return {
        "edge_conv": {"w1": w1, "b1": b1, "w2": w2, "b2": b2},
        "gnn1_pool": _init_gnn(ks[2], edge_out, 64, n1, True),
        "gnn1_embed": _init_gnn(ks[3], edge_out, 64, 64, False),
        "gnn2_pool": _init_gnn(ks[4], 3 * 64, 64, n2, True),
        "gnn2_embed": _init_gnn(ks[5], 3 * 64, 64, 64, False),
        "gnn2a_pool": _init_gnn(ks[6], 3 * 64, 64, n2a, True),
        "gnn2a_embed": _init_gnn(ks[7], 3 * 64, 64, 64, False),
        "gnn3_embed": _init_gnn(ks[8], 3 * 64, 64, 64, False),
        "lin1": {"w": lw1, "b": lb1},
        "lin2": {"w": lw2, "b": lb2},
    }


def pack_net_params(p, n_nodes):
    """Host-side: fold BN, zero-pad every weight into a [192,64] slot, stack,
    and expand the EdgeFeatureConv MLP into block-diagonal MXU weights."""
    f32 = jnp.float32

    def fold_bn(conv):
        # BN(relu(z)) = relu(z) * (gamma*inv_std) + beta; with beta=0 and
        # gamma>0 the positive scale commutes with ReLU -> fold into W, b.
        scale = conv["gamma"] * _BN_INV_STD
        return conv["w"] * scale, conv["b"] * scale

    def pad_slot(w, b):
        assert w.shape[0] <= _WROWS and w.shape[1] <= _FPAD, w.shape
        wp = jnp.zeros((_WROWS, _FPAD), f32).at[:w.shape[0], :w.shape[1]].set(w)
        bp = jnp.zeros((1, _FPAD), f32).at[:, :b.shape[1]].set(b)
        return wp, bp

    slots_w, slots_b = [], []

    def add(w, b):
        wp, bp = pad_slot(w, b)
        slots_w.append(wp)
        slots_b.append(bp)

    # slot layout: per stage [pool c1,c2,c3, pool lin, emb c1,c2,c3] (x3),
    # then gnn3 c1..c3, lin1, lin2  -> 26 slots.
    for stage in ("gnn1", "gnn2", "gnn2a"):
        pool, emb = p[stage + "_pool"], p[stage + "_embed"]
        for c in ("conv1", "conv2", "conv3"):
            add(*fold_bn(pool[c]))
        add(pool["lin"]["w"], pool["lin"]["b"])
        for c in ("conv1", "conv2", "conv3"):
            add(*fold_bn(emb[c]))
    for c in ("conv1", "conv2", "conv3"):
        add(*fold_bn(p["gnn3_embed"][c]))
    add(p["lin1"]["w"], p["lin1"]["b"])
    add(p["lin2"]["w"], p["lin2"]["b"])

    wstk = jnp.stack(slots_w)                     # [26, 192, 64]
    bstk = jnp.stack(slots_b)[:, None, :][:, 0:1, :].reshape(len(slots_b), 1, _FPAD)

    # --- EdgeFeatureConv expansion (tied to this n_nodes) ---
    # W1big[(k, j), (h, j')] = w1[k, h] * [j == j'];  feat layout [cos | ea0..4].
    ec = p["edge_conv"]
    w1, b1, w2, b2 = ec["w1"], ec["b1"], ec["w2"], ec["b2"]
    H = w1.shape[1]
    eye_n = jnp.eye(n_nodes, dtype=f32)
    w1big = jnp.einsum("kh,jJ->kjhJ", w1, eye_n).reshape(6 * n_nodes, H * n_nodes)
    b1big = jnp.repeat(b1, n_nodes, axis=1)                           # [1, H*N]
    w2big = jnp.zeros((H * n_nodes, _FPAD), f32).at[:, :H].set(
        jnp.repeat(w2, n_nodes, axis=0))                              # [H*N, 64]
    b2pad = jnp.zeros((1, _FPAD), f32).at[:, :H].set(b2)

    n1 = p["gnn1_pool"]["conv3"]["w"].shape[1]
    n2 = p["gnn2_pool"]["conv3"]["w"].shape[1]
    n2a = p["gnn2a_pool"]["conv3"]["w"].shape[1]
    nc = p["lin2"]["w"].shape[1]
    assert max(n1, n2, n2a, nc, H) <= _FPAD

    return {"w1c": w1big[:n_nodes], "w1e": w1big[n_nodes:], "b1big": b1big,
            "w2big": w2big, "b2": b2pad, "wstk": wstk, "bstk": bstk,
            "n1": int(n1), "n2": int(n2), "n2a": int(n2a), "nc": int(nc)}


# ----------------------------------------------------------------------------
if __name__ == "__main__":
    B, MAX_NODES, D_IN, NUM_CLASSES = 2, 32, 3, 9

    key = jax.random.PRNGKey(0)
    kp, kx, ka, ke = jax.random.split(key, 4)

    params = init_net_params(kp, max_nodes=MAX_NODES, num_classes=NUM_CLASSES)
    packed = pack_net_params(params, n_nodes=MAX_NODES)

    x = jax.random.normal(kx, (B, MAX_NODES, D_IN), jnp.float32)
    up = jnp.triu(jax.random.bernoulli(ka, 0.3, (B, MAX_NODES, MAX_NODES)), k=1)
    adj = (up | jnp.swapaxes(up, 1, 2)).astype(jnp.float32)           # symmetric
    edge_attr = jax.random.normal(ke, (B, MAX_NODES, MAX_NODES, 5), jnp.float32)

    fwd = jax.jit(functools.partial(net_forward, packed))
    out = fwd(x, adj, edge_attr)
    jax.block_until_ready(out)

    assert out.shape == (B, NUM_CLASSES), out.shape
    assert bool(jnp.all(jnp.isfinite(out)))
    print("KERNEL_OK")
</pallas_src>

<mosaic_0001>
module attributes {stable_mosaic.version = 11 : i64} {
  func.func @_net_kernel(%arg0: i32, %arg1: memref<1x32x3xf32, #tpu.memory_space<vmem>>, %arg2: memref<1x32x32xf32, #tpu.memory_space<vmem>>, %arg3: memref<1x32x160xf32, #tpu.memory_space<vmem>>, %arg4: memref<32x512xf32, #tpu.memory_space<vmem>>, %arg5: memref<160x512xf32, #tpu.memory_space<vmem>>, %arg6: memref<1x512xf32, #tpu.memory_space<vmem>>, %arg7: memref<512x64xf32, #tpu.memory_space<vmem>>, %arg8: memref<1x64xf32, #tpu.memory_space<vmem>>, %arg9: memref<26x192x64xf32, #tpu.memory_space<vmem>>, %arg10: memref<26x1x64xf32, #tpu.memory_space<vmem>>, %arg11: memref<1x1x9xf32, #tpu.memory_space<vmem>>) attributes {dimension_semantics = [#tpu.dimension_semantics<parallel>], iteration_bounds = array<i64: 2>, scalar_prefetch = 0 : i64, scratch_operands = 0 : i64, tpu.core_type = #tpu.core_type<tc>, window_params = [{transform_indices = @transform_0, window_bounds = array<i64: 1, 32, 3>}, {transform_indices = @transform_1, window_bounds = array<i64: 1, 32, 32>}, {transform_indices = @transform_2, window_bounds = array<i64: 1, 32, 160>}, {pipeline_mode = #tpu.pipeline_mode<synchronous>, transform_indices = @transform_3, window_bounds = array<i64: 32, 512>}, {pipeline_mode = #tpu.pipeline_mode<synchronous>, transform_indices = @transform_4, window_bounds = array<i64: 160, 512>}, {pipeline_mode = #tpu.pipeline_mode<synchronous>, transform_indices = @transform_5, window_bounds = array<i64: 1, 512>}, {pipeline_mode = #tpu.pipeline_mode<synchronous>, transform_indices = @transform_6, window_bounds = array<i64: 512, 64>}, {pipeline_mode = #tpu.pipeline_mode<synchronous>, transform_indices = @transform_7, window_bounds = array<i64: 1, 64>}, {pipeline_mode = #tpu.pipeline_mode<synchronous>, transform_indices = @transform_8, window_bounds = array<i64: 26, 192, 64>}, {pipeline_mode = #tpu.pipeline_mode<synchronous>, transform_indices = @transform_9, window_bounds = array<i64: 26, 1, 64>}, {transform_indices = @transform_10, window_bounds = array<i64: 1, 1, 9>}]} {
    %c0 = arith.constant 0 : index
    %c0_0 = arith.constant 0 : index
    %c0_1 = arith.constant 0 : index
    %0 = vector.load %arg1[%c0, %c0_0, %c0_1] : memref<1x32x3xf32, #tpu.memory_space<vmem>>, vector<1x32x3xf32>
    %1 = vector.shape_cast %0 : vector<1x32x3xf32> to vector<32x3xf32>
    %c0_2 = arith.constant 0 : index
    %c0_3 = arith.constant 0 : index
    %c0_4 = arith.constant 0 : index
    %2 = vector.load %arg2[%c0_2, %c0_3, %c0_4] : memref<1x32x32xf32, #tpu.memory_space<vmem>>, vector<1x32x32xf32>
    %3 = vector.shape_cast %2 : vector<1x32x32xf32> to vector<32x32xf32>
    %4 = arith.mulf %1, %1 : vector<32x3xf32>
    %cst = arith.constant dense<0.000000e+00> : vector<32xf32>
    %5 = vector.multi_reduction <add>, %4, %cst [1] : vector<32x3xf32> to vector<32xf32>
    %6 = vector.shape_cast %5 : vector<32xf32> to vector<32x1xf32>
    %7 = math.sqrt %6 : vector<32x1xf32>
    %cst_5 = arith.constant 9.99999993E-9 : f32
    %8 = vector.broadcast %cst_5 : f32 to vector<32x1xf32>
    %9 = arith.maximumf %7, %8 : vector<32x1xf32>
    %10 = vector.broadcast %9 : vector<32x1xf32> to vector<32x3xf32>
    %11 = arith.divf %1, %10 : vector<32x3xf32>
    %cst_6 = arith.constant dense<0.000000e+00> : vector<32x32xf32>
    %12 = tpu.matmul %11, %11, %cst_6 {dimension_numbers = #tpu.dot_dimension_numbers<[1], [1], [0], [0], [0, 0, 1, 0], [], []>} : vector<32x3xf32>, vector<32x3xf32>, vector<32x32xf32> -> vector<32x32xf32>
    %c0_7 = arith.constant 0 : index
    %c0_8 = arith.constant 0 : index
    %13 = vector.load %arg4[%c0_7, %c0_8] : memref<32x512xf32, #tpu.memory_space<vmem>>, vector<32x512xf32>
    %cst_9 = arith.constant dense<0.000000e+00> : vector<32x512xf32>
    %14 = tpu.matmul %12, %13, %cst_9 {dimension_numbers = #tpu.dot_dimension_numbers<[1], [0], [0], [1], [0, 0, 1, 1], [], []>} : vector<32x32xf32>, vector<32x512xf32>, vector<32x512xf32> -> vector<32x512xf32>
    %c0_10 = arith.constant 0 : index
    %c0_11 = arith.constant 0 : index
    %c0_12 = arith.constant 0 : index
    %15 = vector.load %arg3[%c0_10, %c0_11, %c0_12] : memref<1x32x160xf32, #tpu.memory_space<vmem>>, vector<1x32x160xf32>
    %16 = vector.shape_cast %15 : vector<1x32x160xf32> to vector<32x160xf32>
    %c0_13 = arith.constant 0 : index
    %c0_14 = arith.constant 0 : index
    %17 = vector.load %arg5[%c0_13, %c0_14] : memref<160x512xf32, #tpu.memory_space<vmem>>, vector<160x512xf32>
    %cst_15 = arith.constant dense<0.000000e+00> : vector<32x512xf32>
    %18 = tpu.matmul %16, %17, %cst_15 {dimension_numbers = #tpu.dot_dimension_numbers<[1], [0], [0], [1], [0, 0, 1, 1], [], []>} : vector<32x160xf32>, vector<160x512xf32>, vector<32x512xf32> -> vector<32x512xf32>
    %19 = arith.addf %14, %18 : vector<32x512xf32>
    %c0_16 = arith.constant 0 : index
    %c0_17 = arith.constant 0 : index
    %20 = vector.load %arg6[%c0_16, %c0_17] : memref<1x512xf32, #tpu.memory_space<vmem>>, vector<1x512xf32>
    %21 = vector.broadcast %20 : vector<1x512xf32> to vector<32x512xf32>
    %22 = arith.addf %19, %21 : vector<32x512xf32>
    %cst_18 = arith.constant 0.000000e+00 : f32
    %23 = vector.broadcast %cst_18 : f32 to vector<32x512xf32>
    %24 = arith.maximumf %22, %23 : vector<32x512xf32>
    %25 = tpu.concatenate %3, %3, %3, %3, %3, %3, %3, %3, %3, %3, %3, %3, %3, %3, %3, %3 in 1 : vector<32x32xf32>, vector<32x32xf32>, vector<32x32xf32>, vector<32x32xf32>, vector<32x32xf32>, vector<32x32xf32>, vector<32x32xf32>, vector<32x32xf32>, vector<32x32xf32>, vector<32x32xf32>, vector<32x32xf32>, vector<32x32xf32>, vector<32x32xf32>, vector<32x32xf32>, vector<32x32xf32>, vector<32x32xf32> -> vector<32x512xf32>
    %cst_19 = arith.constant dense<0.000000e+00> : vector<32xf32>
    %26 = vector.multi_reduction <add>, %3, %cst_19 [1] : vector<32x32xf32> to vector<32xf32>
    %27 = vector.shape_cast %26 : vector<32xf32> to vector<32x1xf32>
    %28 = arith.mulf %24, %25 : vector<32x512xf32>
    %c0_20 = arith.constant 0 : index
    %c0_21 = arith.constant 0 : index
    %29 = vector.load %arg7[%c0_20, %c0_21] : memref<512x64xf32, #tpu.memory_space<vmem>>, vector<512x64xf32>
    %cst_22 = arith.constant dense<0.000000e+00> : vector<32x64xf32>
    %30 = tpu.matmul %28, %29, %cst_22 {dimension_numbers = #tpu.dot_dimension_numbers<[1], [0], [0], [1], [0, 0, 1, 1], [], []>} : vector<32x512xf32>, vector<512x64xf32>, vector<32x64xf32> -> vector<32x64xf32>
    %c0_23 = arith.constant 0 : index
    %c0_24 = arith.constant 0 : index
    %31 = vector.load %arg8[%c0_23, %c0_24] : memref<1x64xf32, #tpu.memory_space<vmem>>, vector<1x64xf32>
    %32 = vector.broadcast %27 : vector<32x1xf32> to vector<32x64xf32>
    %33 = vector.broadcast %31 : vector<1x64xf32> to vector<32x64xf32>
    %34 = arith.mulf %32, %33 : vector<32x64xf32>
    %35 = arith.addf %30, %34 : vector<32x64xf32>
    %36 = tpu.iota {dimensions = array<i32: 0>} : vector<32x32xi32>
    %37 = tpu.iota {dimensions = array<i32: 1>} : vector<32x32xi32>
    %38 = arith.cmpi eq, %36, %37 : vector<32x32xi32>
    %39 = arith.extui %38 : vector<32x32xi1> to vector<32x32xi32>
    %40 = arith.sitofp %39 : vector<32x32xi32> to vector<32x32xf32>
    %41 = arith.addf %3, %40 : vector<32x32xf32>
    %cst_25 = arith.constant dense<0.000000e+00> : vector<32xf32>
    %42 = vector.multi_reduction <add>, %41, %cst_25 [1] : vector<32x32xf32> to vector<32xf32>
    %43 = vector.shape_cast %42 : vector<32xf32> to vector<32x1xf32>
    %cst_26 = arith.constant 9.99999996E-13 : f32
    %44 = vector.broadcast %cst_26 : f32 to vector<32x1xf32>
    %45 = arith.maximumf %43, %44 : vector<32x1xf32>
    %46 = math.rsqrt %45 : vector<32x1xf32>
    %cst_27 = arith.constant dense<0.000000e+00> : vector<32xf32>
    %47 = vector.multi_reduction <add>, %41, %cst_27 [0] : vector<32x32xf32> to vector<32xf32>
    %48 = vector.shape_cast %47 : vector<32xf32> to vector<1x32xf32>
    %cst_28 = arith.constant 9.99999996E-13 : f32
    %49 = vector.broadcast %cst_28 : f32 to vector<1x32xf32>
    %50 = arith.maximumf %48, %49 : vector<1x32xf32>
    %51 = math.rsqrt %50 : vector<1x32xf32>
    %52 = vector.broadcast %46 : vector<32x1xf32> to vector<32x32xf32>
    %53 = arith.mulf %41, %52 : vector<32x32xf32>
    %54 = vector.broadcast %51 : vector<1x32xf32> to vector<32x32xf32>
    %55 = arith.mulf %53, %54 : vector<32x32xf32>
    %c0_29 = arith.constant 0 : index
    %c0_30 = arith.constant 0 : index
    %c0_31 = arith.constant 0 : index
    %56 = vector.load %arg9[%c0_29, %c0_30, %c0_31] : memref<26x192x64xf32, #tpu.memory_space<vmem>>, vector<1x192x64xf32>
    %57 = vector.shape_cast %56 : vector<1x192x64xf32> to vector<192x64xf32>
    %58 = vector.extract_strided_slice %57 {offsets = [0, 0], sizes = [64, 64], strides = [1, 1]} : vector<192x64xf32> to vector<64x64xf32>
    %c0_32 = arith.constant 0 : index
    %c0_33 = arith.constant 0 : index
    %c0_34 = arith.constant 0 : index
    %59 = vector.load %arg10[%c0_32, %c0_33, %c0_34] : memref<26x1x64xf32, #tpu.memory_space<vmem>>, vector<1x1x64xf32>
    %60 = vector.shape_cast %59 : vector<1x1x64xf32> to vector<1x64xf32>
    %cst_35 = arith.constant dense<0.000000e+00> : vector<32x64xf32>
    %61 = tpu.matmul %35, %58, %cst_35 {dimension_numbers = #tpu.dot_dimension_numbers<[1], [0], [0], [1], [0, 0, 1, 1], [], []>} : vector<32x64xf32>, vector<64x64xf32>, vector<32x64xf32> -> vector<32x64xf32>
    %cst_36 = arith.constant dense<0.000000e+00> : vector<32x64xf32>
    %62 = tpu.matmul %55, %61, %cst_36 {dimension_numbers = #tpu.dot_dimension_numbers<[1], [0], [0], [1], [0, 0, 1, 1], [], []>} : vector<32x32xf32>, vector<32x64xf32>, vector<32x64xf32> -> vector<32x64xf32>
    %63 = vector.broadcast %60 : vector<1x64xf32> to vector<32x64xf32>
    %64 = arith.addf %62, %63 : vector<32x64xf32>
    %cst_37 = arith.constant 0.000000e+00 : f32
    %65 = vector.broadcast %cst_37 : f32 to vector<32x64xf32>
    %66 = arith.maximumf %64, %65 : vector<32x64xf32>
    %c1 = arith.constant 1 : index
    %c0_38 = arith.constant 0 : index
    %c0_39 = arith.constant 0 : index
    %67 = vector.load %arg9[%c1, %c0_38, %c0_39] : memref<26x192x64xf32, #tpu.memory_space<vmem>>, vector<1x192x64xf32>
    %68 = vector.shape_cast %67 : vector<1x192x64xf32> to vector<192x64xf32>
    %69 = vector.extract_strided_slice %68 {offsets = [0, 0], sizes = [64, 64], strides = [1, 1]} : vector<192x64xf32> to vector<64x64xf32>
    %c1_40 = arith.constant 1 : index
    %c0_41 = arith.constant 0 : index
    %c0_42 = arith.constant 0 : index
    %70 = vector.load %arg10[%c1_40, %c0_41, %c0_42] : memref<26x1x64xf32, #tpu.memory_space<vmem>>, vector<1x1x64xf32>
    %71 = vector.shape_cast %70 : vector<1x1x64xf32> to vector<1x64xf32>
    %cst_43 = arith.constant dense<0.000000e+00> : vector<32x64xf32>
    %72 = tpu.matmul %66, %69, %cst_43 {dimension_numbers = #tpu.dot_dimension_numbers<[1], [0], [0], [1], [0, 0, 1, 1], [], []>} : vector<32x64xf32>, vector<64x64xf32>, vector<32x64xf32> -> vector<32x64xf32>
    %cst_44 = arith.constant dense<0.000000e+00> : vector<32x64xf32>
    %73 = tpu.matmul %55, %72, %cst_44 {dimension_numbers = #tpu.dot_dimension_numbers<[1], [0], [0], [1], [0, 0, 1, 1], [], []>} : vector<32x32xf32>, vector<32x64xf32>, vector<32x64xf32> -> vector<32x64xf32>
    %74 = vector.broadcast %71 : vector<1x64xf32> to vector<32x64xf32>
    %75 = arith.addf %73, %74 : vector<32x64xf32>
    %cst_45 = arith.constant 0.000000e+00 : f32
    %76 = vector.broadcast %cst_45 : f32 to vector<32x64xf32>
    %77 = arith.maximumf %75, %76 : vector<32x64xf32>
    %c2 = arith.constant 2 : index
    %c0_46 = arith.constant 0 : index
    %c0_47 = arith.constant 0 : index
    %78 = vector.load %arg9[%c2, %c0_46, %c0_47] : memref<26x192x64xf32, #tpu.memory_space<vmem>>, vector<1x192x64xf32>
    %79 = vector.shape_cast %78 : vector<1x192x64xf32> to vector<192x64xf32>
    %80 = vector.extract_strided_slice %79 {offsets = [0, 0], sizes = [64, 64], strides = [1, 1]} : vector<192x64xf32> to vector<64x64xf32>
    %c2_48 = arith.constant 2 : index
    %c0_49 = arith.constant 0 : index
    %c0_50 = arith.constant 0 : index
    %81 = vector.load %arg10[%c2_48, %c0_49, %c0_50] : memref<26x1x64xf32, #tpu.memory_space<vmem>>, vector<1x1x64xf32>
    %82 = vector.shape_cast %81 : vector<1x1x64xf32> to vector<1x64xf32>
    %cst_51 = arith.constant dense<0.000000e+00> : vector<32x64xf32>
    %83 = tpu.matmul %77, %80, %cst_51 {dimension_numbers = #tpu.dot_dimension_numbers<[1], [0], [0], [1], [0, 0, 1, 1], [], []>} : vector<32x64xf32>, vector<64x64xf32>, vector<32x64xf32> -> vector<32x64xf32>
    %cst_52 = arith.constant dense<0.000000e+00> : vector<32x64xf32>
    %84 = tpu.matmul %55, %83, %cst_52 {dimension_numbers = #tpu.dot_dimension_numbers<[1], [0], [0], [1], [0, 0, 1, 1], [], []>} : vector<32x32xf32>, vector<32x64xf32>, vector<32x64xf32> -> vector<32x64xf32>
    %85 = vector.broadcast %82 : vector<1x64xf32> to vector<32x64xf32>
    %86 = arith.addf %84, %85 : vector<32x64xf32>
    %cst_53 = arith.constant 0.000000e+00 : f32
    %87 = vector.broadcast %cst_53 : f32 to vector<32x64xf32>
    %88 = arith.maximumf %86, %87 : vector<32x64xf32>
    %89 = tpu.concatenate %66, %77, %88 in 1 : vector<32x64xf32>, vector<32x64xf32>, vector<32x64xf32> -> vector<32x192xf32>
    %c3 = arith.constant 3 : index
    %c0_54 = arith.constant 0 : index
    %c0_55 = arith.constant 0 : index
    %90 = vector.load %arg9[%c3, %c0_54, %c0_55] : memref<26x192x64xf32, #tpu.memory_space<vmem>>, vector<1x192x64xf32>
    %91 = vector.shape_cast %90 : vector<1x192x64xf32> to vector<192x64xf32>
    %cst_56 = arith.constant dense<0.000000e+00> : vector<32x64xf32>
    %92 = tpu.matmul %89, %91, %cst_56 {dimension_numbers = #tpu.dot_dimension_numbers<[1], [0], [0], [1], [0, 0, 1, 1], [], []>} : vector<32x192xf32>, vector<192x64xf32>, vector<32x64xf32> -> vector<32x64xf32>
    %c3_57 = arith.constant 3 : index
    %c0_58 = arith.constant 0 : index
    %c0_59 = arith.constant 0 : index
    %93 = vector.load %arg10[%c3_57, %c0_58, %c0_59] : memref<26x1x64xf32, #tpu.memory_space<vmem>>, vector<1x1x64xf32>
    %94 = vector.shape_cast %93 : vector<1x1x64xf32> to vector<1x64xf32>
    %95 = vector.broadcast %94 : vector<1x64xf32> to vector<32x64xf32>
    %96 = arith.addf %92, %95 : vector<32x64xf32>
    %cst_60 = arith.constant 0.000000e+00 : f32
    %97 = vector.broadcast %cst_60 : f32 to vector<32x64xf32>
    %98 = arith.maximumf %96, %97 : vector<32x64xf32>
    %99 = vector.extract_strided_slice %98 {offsets = [0, 0], sizes = [32, 8], strides = [1, 1]} : vector<32x64xf32> to vector<32x8xf32>
    %cst_61 = arith.constant dense<0xFF800000> : vector<32xf32>
    %100 = vector.multi_reduction <maximumf>, %99, %cst_61 [1] : vector<32x8xf32> to vector<32xf32>
    %cst_62 = arith.constant 0xFF800000 : f32
    %101 = vector.broadcast %cst_62 : f32 to vector<32xf32>
    %102 = arith.maximumf %101, %100 : vector<32xf32>
    %103 = vector.shape_cast %102 : vector<32xf32> to vector<32x1xf32>
    %104 = vector.broadcast %103 : vector<32x1xf32> to vector<32x8xf32>
    %105 = arith.subf %99, %104 : vector<32x8xf32>
    %106 = math.exp %105 : vector<32x8xf32>
    %cst_63 = arith.constant dense<0.000000e+00> : vector<32xf32>
    %107 = vector.multi_reduction <add>, %106, %cst_63 [1] : vector<32x8xf32> to vector<32xf32>
    %108 = vector.shape_cast %107 : vector<32xf32> to vector<32x1xf32>
    %109 = vector.broadcast %108 : vector<32x1xf32> to vector<32x8xf32>
    %110 = arith.divf %106, %109 : vector<32x8xf32>
    %c4 = arith.constant 4 : index
    %c0_64 = arith.constant 0 : index
    %c0_65 = arith.constant 0 : index
    %111 = vector.load %arg9[%c4, %c0_64, %c0_65] : memref<26x192x64xf32, #tpu.memory_space<vmem>>, vector<1x192x64xf32>
    %112 = vector.shape_cast %111 : vector<1x192x64xf32> to vector<192x64xf32>
    %113 = vector.extract_strided_slice %112 {offsets = [0, 0], sizes = [64, 64], strides = [1, 1]} : vector<192x64xf32> to vector<64x64xf32>
    %c4_66 = arith.constant 4 : index
    %c0_67 = arith.constant 0 : index
    %c0_68 = arith.constant 0 : index
    %114 = vector.load %arg10[%c4_66, %c0_67, %c0_68] : memref<26x1x64xf32, #tpu.memory_space<vmem>>, vector<1x1x64xf32>
    %115 = vector.shape_cast %114 : vector<1x1x64xf32> to vector<1x64xf32>
    %cst_69 = arith.constant dense<0.000000e+00> : vector<32x64xf32>
    %116 = tpu.matmul %35, %113, %cst_69 {dimension_numbers = #tpu.dot_dimension_numbers<[1], [0], [0], [1], [0, 0, 1, 1], [], []>} : vector<32x64xf32>, vector<64x64xf32>, vector<32x64xf32> -> vector<32x64xf32>
    %cst_70 = arith.constant dense<0.000000e+00> : vector<32x64xf32>
    %117 = tpu.matmul %55, %116, %cst_70 {dimension_numbers = #tpu.dot_dimension_numbers<[1], [0], [0], [1], [0, 0, 1, 1], [], []>} : vector<32x32xf32>, vector<32x64xf32>, vector<32x64xf32> -> vector<32x64xf32>
    %118 = vector.broadcast %115 : vector<1x64xf32> to vector<32x64xf32>
    %119 = arith.addf %117, %118 : vector<32x64xf32>
    %cst_71 = arith.constant 0.000000e+00 : f32
    %120 = vector.broadcast %cst_71 : f32 to vector<32x64xf32>
    %121 = arith.maximumf %119, %120 : vector<32x64xf32>
    %c5 = arith.constant 5 : index
    %c0_72 = arith.constant 0 : index
    %c0_73 = arith.constant 0 : index
    %122 = vector.load %arg9[%c5, %c0_72, %c0_73] : memref<26x192x64xf32, #tpu.memory_space<vmem>>, vector<1x192x64xf32>
    %123 = vector.shape_cast %122 : vector<1x192x64xf32> to vector<192x64xf32>
    %124 = vector.extract_strided_slice %123 {offsets = [0, 0], sizes = [64, 64], strides = [1, 1]} : vector<192x64xf32> to vector<64x64xf32>
    %c5_74 = arith.constant 5 : index
    %c0_75 = arith.constant 0 : index
    %c0_76 = arith.constant 0 : index
    %125 = vector.load %arg10[%c5_74, %c0_75, %c0_76] : memref<26x1x64xf32, #tpu.memory_space<vmem>>, vector<1x1x64xf32>
    %126 = vector.shape_cast %125 : vector<1x1x64xf32> to vector<1x64xf32>
    %cst_77 = arith.constant dense<0.000000e+00> : vector<32x64xf32>
    %127 = tpu.matmul %121, %124, %cst_77 {dimension_numbers = #tpu.dot_dimension_numbers<[1], [0], [0], [1], [0, 0, 1, 1], [], []>} : vector<32x64xf32>, vector<64x64xf32>, vector<32x64xf32> -> vector<32x64xf32>
    %cst_78 = arith.constant dense<0.000000e+00> : vector<32x64xf32>
    %128 = tpu.matmul %55, %127, %cst_78 {dimension_numbers = #tpu.dot_dimension_numbers<[1], [0], [0], [1], [0, 0, 1, 1], [], []>} : vector<32x32xf32>, vector<32x64xf32>, vector<32x64xf32> -> vector<32x64xf32>
    %129 = vector.broadcast %126 : vector<1x64xf32> to vector<32x64xf32>
    %130 = arith.addf %128, %129 : vector<32x64xf32>
    %cst_79 = arith.constant 0.000000e+00 : f32
    %131 = vector.broadcast %cst_79 : f32 to vector<32x64xf32>
    %132 = arith.maximumf %130, %131 : vector<32x64xf32>
    %c6 = arith.constant 6 : index
    %c0_80 = arith.constant 0 : index
    %c0_81 = arith.constant 0 : index
    %133 = vector.load %arg9[%c6, %c0_80, %c0_81] : memref<26x192x64xf32, #tpu.memory_space<vmem>>, vector<1x192x64xf32>
    %134 = vector.shape_cast %133 : vector<1x192x64xf32> to vector<192x64xf32>
    %135 = vector.extract_strided_slice %134 {offsets = [0, 0], sizes = [64, 64], strides = [1, 1]} : vector<192x64xf32> to vector<64x64xf32>
    %c6_82 = arith.constant 6 : index
    %c0_83 = arith.constant 0 : index
    %c0_84 = arith.constant 0 : index
    %136 = vector.load %arg10[%c6_82, %c0_83, %c0_84] : memref<26x1x64xf32, #tpu.memory_space<vmem>>, vector<1x1x64xf32>
    %137 = vector.shape_cast %136 : vector<1x1x64xf32> to vector<1x64xf32>
    %cst_85 = arith.constant dense<0.000000e+00> : vector<32x64xf32>
    %138 = tpu.matmul %132, %135, %cst_85 {dimension_numbers = #tpu.dot_dimension_numbers<[1], [0], [0], [1], [0, 0, 1, 1], [], []>} : vector<32x64xf32>, vector<64x64xf32>, vector<32x64xf32> -> vector<32x64xf32>
    %cst_86 = arith.constant dense<0.000000e+00> : vector<32x64xf32>
    %139 = tpu.matmul %55, %138, %cst_86 {dimension_numbers = #tpu.dot_dimension_numbers<[1], [0], [0], [1], [0, 0, 1, 1], [], []>} : vector<32x32xf32>, vector<32x64xf32>, vector<32x64xf32> -> vector<32x64xf32>
    %140 = vector.broadcast %137 : vector<1x64xf32> to vector<32x64xf32>
    %141 = arith.addf %139, %140 : vector<32x64xf32>
    %cst_87 = arith.constant 0.000000e+00 : f32
    %142 = vector.broadcast %cst_87 : f32 to vector<32x64xf32>
    %143 = arith.maximumf %141, %142 : vector<32x64xf32>
    %144 = tpu.concatenate %121, %132, %143 in 1 : vector<32x64xf32>, vector<32x64xf32>, vector<32x64xf32> -> vector<32x192xf32>
    %cst_88 = arith.constant dense<0.000000e+00> : vector<8x192xf32>
    %145 = tpu.matmul %110, %144, %cst_88 {dimension_numbers = #tpu.dot_dimension_numbers<[0], [0], [1], [1], [0, 1, 1, 1], [], []>} : vector<32x8xf32>, vector<32x192xf32>, vector<8x192xf32> -> vector<8x192xf32>
    %cst_89 = arith.constant dense<0.000000e+00> : vector<8x32xf32>
    %146 = tpu.matmul %110, %3, %cst_89 {dimension_numbers = #tpu.dot_dimension_numbers<[0], [0], [1], [1], [0, 1, 1, 1], [], []>} : vector<32x8xf32>, vector<32x32xf32>, vector<8x32xf32> -> vector<8x32xf32>
    %cst_90 = arith.constant dense<0.000000e+00> : vector<8x8xf32>
    %147 = tpu.matmul %146, %110, %cst_90 {dimension_numbers = #tpu.dot_dimension_numbers<[1], [0], [0], [1], [0, 0, 1, 1], [], []>} : vector<8x32xf32>, vector<32x8xf32>, vector<8x8xf32> -> vector<8x8xf32>
    %148 = tpu.iota {dimensions = array<i32: 0>} : vector<8x8xi32>
    %149 = tpu.iota {dimensions = array<i32: 1>} : vector<8x8xi32>
    %150 = arith.cmpi eq, %148, %149 : vector<8x8xi32>
    %151 = arith.extui %150 : vector<8x8xi1> to vector<8x8xi32>
    %152 = arith.sitofp %151 : vector<8x8xi32> to vector<8x8xf32>
    %153 = arith.addf %147, %152 : vector<8x8xf32>
    %cst_91 = arith.constant dense<0.000000e+00> : vector<8xf32>
    %154 = vector.multi_reduction <add>, %153, %cst_91 [1] : vector<8x8xf32> to vector<8xf32>
    %155 = vector.shape_cast %154 : vector<8xf32> to vector<8x1xf32>
    %cst_92 = arith.constant 9.99999996E-13 : f32
    %156 = vector.broadcast %cst_92 : f32 to vector<8x1xf32>
    %157 = arith.maximumf %155, %156 : vector<8x1xf32>
    %158 = math.rsqrt %157 : vector<8x1xf32>
    %cst_93 = arith.constant dense<0.000000e+00> : vector<8xf32>
    %159 = vector.multi_reduction <add>, %153, %cst_93 [0] : vector<8x8xf32> to vector<8xf32>
    %160 = vector.shape_cast %159 : vector<8xf32> to vector<1x8xf32>
    %cst_94 = arith.constant 9.99999996E-13 : f32
    %161 = vector.broadcast %cst_94 : f32 to vector<1x8xf32>
    %162 = arith.maximumf %160, %161 : vector<1x8xf32>
    %163 = math.rsqrt %162 : vector<1x8xf32>
    %164 = vector.broadcast %158 : vector<8x1xf32> to vector<8x8xf32>
    %165 = arith.mulf %153, %164 : vector<8x8xf32>
    %166 = vector.broadcast %163 : vector<1x8xf32> to vector<8x8xf32>
    %167 = arith.mulf %165, %166 : vector<8x8xf32>
    %c7 = arith.constant 7 : index
    %c0_95 = arith.constant 0 : index
    %c0_96 = arith.constant 0 : index
    %168 = vector.load %arg9[%c7, %c0_95, %c0_96] : memref<26x192x64xf32, #tpu.memory_space<vmem>>, vector<1x192x64xf32>
    %169 = vector.shape_cast %168 : vector<1x192x64xf32> to vector<192x64xf32>
    %c7_97 = arith.constant 7 : index
    %c0_98 = arith.constant 0 : index
    %c0_99 = arith.constant 0 : index
    %170 = vector.load %arg10[%c7_97, %c0_98, %c0_99] : memref<26x1x64xf32, #tpu.memory_space<vmem>>, vector<1x1x64xf32>
    %171 = vector.shape_cast %170 : vector<1x1x64xf32> to vector<1x64xf32>
    %cst_100 = arith.constant dense<0.000000e+00> : vector<8x64xf32>
    %172 = tpu.matmul %145, %169, %cst_100 {dimension_numbers = #tpu.dot_dimension_numbers<[1], [0], [0], [1], [0, 0, 1, 1], [], []>} : vector<8x192xf32>, vector<192x64xf32>, vector<8x64xf32> -> vector<8x64xf32>
    %cst_101 = arith.constant dense<0.000000e+00> : vector<8x64xf32>
    %173 = tpu.matmul %167, %172, %cst_101 {dimension_numbers = #tpu.dot_dimension_numbers<[1], [0], [0], [1], [0, 0, 1, 1], [], []>} : vector<8x8xf32>, vector<8x64xf32>, vector<8x64xf32> -> vector<8x64xf32>
    %174 = vector.broadcast %171 : vector<1x64xf32> to vector<8x64xf32>
    %175 = arith.addf %173, %174 : vector<8x64xf32>
    %cst_102 = arith.constant 0.000000e+00 : f32
    %176 = vector.broadcast %cst_102 : f32 to vector<8x64xf32>
    %177 = arith.maximumf %175, %176 : vector<8x64xf32>
    %c8 = arith.constant 8 : index
    %c0_103 = arith.constant 0 : index
    %c0_104 = arith.constant 0 : index
    %178 = vector.load %arg9[%c8, %c0_103, %c0_104] : memref<26x192x64xf32, #tpu.memory_space<vmem>>, vector<1x192x64xf32>
    %179 = vector.shape_cast %178 : vector<1x192x64xf32> to vector<192x64xf32>
    %180 = vector.extract_strided_slice %179 {offsets = [0, 0], sizes = [64, 64], strides = [1, 1]} : vector<192x64xf32> to vector<64x64xf32>
    %c8_105 = arith.constant 8 : index
    %c0_106 = arith.constant 0 : index
    %c0_107 = arith.constant 0 : index
    %181 = vector.load %arg10[%c8_105, %c0_106, %c0_107] : memref<26x1x64xf32, #tpu.memory_space<vmem>>, vector<1x1x64xf32>
    %182 = vector.shape_cast %181 : vector<1x1x64xf32> to vector<1x64xf32>
    %cst_108 = arith.constant dense<0.000000e+00> : vector<8x64xf32>
    %183 = tpu.matmul %177, %180, %cst_108 {dimension_numbers = #tpu.dot_dimension_numbers<[1], [0], [0], [1], [0, 0, 1, 1], [], []>} : vector<8x64xf32>, vector<64x64xf32>, vector<8x64xf32> -> vector<8x64xf32>
    %cst_109 = arith.constant dense<0.000000e+00> : vector<8x64xf32>
    %184 = tpu.matmul %167, %183, %cst_109 {dimension_numbers = #tpu.dot_dimension_numbers<[1], [0], [0], [1], [0, 0, 1, 1], [], []>} : vector<8x8xf32>, vector<8x64xf32>, vector<8x64xf32> -> vector<8x64xf32>
    %185 = vector.broadcast %182 : vector<1x64xf32> to vector<8x64xf32>
    %186 = arith.addf %184, %185 : vector<8x64xf32>
    %cst_110 = arith.constant 0.000000e+00 : f32
    %187 = vector.broadcast %cst_110 : f32 to vector<8x64xf32>
    %188 = arith.maximumf %186, %187 : vector<8x64xf32>
    %c9 = arith.constant 9 : index
    %c0_111 = arith.constant 0 : index
    %c0_112 = arith.constant 0 : index
    %189 = vector.load %arg9[%c9, %c0_111, %c0_112] : memref<26x192x64xf32, #tpu.memory_space<vmem>>, vector<1x192x64xf32>
    %190 = vector.shape_cast %189 : vector<1x192x64xf32> to vector<192x64xf32>
    %191 = vector.extract_strided_slice %190 {offsets = [0, 0], sizes = [64, 64], strides = [1, 1]} : vector<192x64xf32> to vector<64x64xf32>
    %c9_113 = arith.constant 9 : index
    %c0_114 = arith.constant 0 : index
    %c0_115 = arith.constant 0 : index
    %192 = vector.load %arg10[%c9_113, %c0_114, %c0_115] : memref<26x1x64xf32, #tpu.memory_space<vmem>>, vector<1x1x64xf32>
    %193 = vector.shape_cast %192 : vector<1x1x64xf32> to vector<1x64xf32>
    %cst_116 = arith.constant dense<0.000000e+00> : vector<8x64xf32>
    %194 = tpu.matmul %188, %191, %cst_116 {dimension_numbers = #tpu.dot_dimension_numbers<[1], [0], [0], [1], [0, 0, 1, 1], [], []>} : vector<8x64xf32>, vector<64x64xf32>, vector<8x64xf32> -> vector<8x64xf32>
    %cst_117 = arith.constant dense<0.000000e+00> : vector<8x64xf32>
    %195 = tpu.matmul %167, %194, %cst_117 {dimension_numbers = #tpu.dot_dimension_numbers<[1], [0], [0], [1], [0, 0, 1, 1], [], []>} : vector<8x8xf32>, vector<8x64xf32>, vector<8x64xf32> -> vector<8x64xf32>
    %196 = vector.broadcast %193 : vector<1x64xf32> to vector<8x64xf32>
    %197 = arith.addf %195, %196 : vector<8x64xf32>
    %cst_118 = arith.constant 0.000000e+00 : f32
    %198 = vector.broadcast %cst_118 : f32 to vector<8x64xf32>
    %199 = arith.maximumf %197, %198 : vector<8x64xf32>
    %200 = tpu.concatenate %177, %188, %199 in 1 : vector<8x64xf32>, vector<8x64xf32>, vector<8x64xf32> -> vector<8x192xf32>
    %c10 = arith.constant 10 : index
    %c0_119 = arith.constant 0 : index
    %c0_120 = arith.constant 0 : index
    %201 = vector.load %arg9[%c10, %c0_119, %c0_120] : memref<26x192x64xf32, #tpu.memory_space<vmem>>, vector<1x192x64xf32>
    %202 = vector.shape_cast %201 : vector<1x192x64xf32> to vector<192x64xf32>
    %cst_121 = arith.constant dense<0.000000e+00> : vector<8x64xf32>
    %203 = tpu.matmul %200, %202, %cst_121 {dimension_numbers = #tpu.dot_dimension_numbers<[1], [0], [0], [1], [0, 0, 1, 1], [], []>} : vector<8x192xf32>, vector<192x64xf32>, vector<8x64xf32> -> vector<8x64xf32>
    %c10_122 = arith.constant 10 : index
    %c0_123 = arith.constant 0 : index
    %c0_124 = arith.constant 0 : index
    %204 = vector.load %arg10[%c10_122, %c0_123, %c0_124] : memref<26x1x64xf32, #tpu.memory_space<vmem>>, vector<1x1x64xf32>
    %205 = vector.shape_cast %204 : vector<1x1x64xf32> to vector<1x64xf32>
    %206 = vector.broadcast %205 : vector<1x64xf32> to vector<8x64xf32>
    %207 = arith.addf %203, %206 : vector<8x64xf32>
    %cst_125 = arith.constant 0.000000e+00 : f32
    %208 = vector.broadcast %cst_125 : f32 to vector<8x64xf32>
    %209 = arith.maximumf %207, %208 : vector<8x64xf32>
    %210 = vector.extract_strided_slice %209 {offsets = [0, 0], sizes = [8, 2], strides = [1, 1]} : vector<8x64xf32> to vector<8x2xf32>
    %cst_126 = arith.constant dense<0xFF800000> : vector<8xf32>
    %211 = vector.multi_reduction <maximumf>, %210, %cst_126 [1] : vector<8x2xf32> to vector<8xf32>
    %cst_127 = arith.constant 0xFF800000 : f32
    %212 = vector.broadcast %cst_127 : f32 to vector<8xf32>
    %213 = arith.maximumf %212, %211 : vector<8xf32>
    %214 = vector.shape_cast %213 : vector<8xf32> to vector<8x1xf32>
    %215 = vector.broadcast %214 : vector<8x1xf32> to vector<8x2xf32>
    %216 = arith.subf %210, %215 : vector<8x2xf32>
    %217 = math.exp %216 : vector<8x2xf32>
    %cst_128 = arith.constant dense<0.000000e+00> : vector<8xf32>
    %218 = vector.multi_reduction <add>, %217, %cst_128 [1] : vector<8x2xf32> to vector<8xf32>
    %219 = vector.shape_cast %218 : vector<8xf32> to vector<8x1xf32>
    %220 = vector.broadcast %219 : vector<8x1xf32> to vector<8x2xf32>
    %221 = arith.divf %217, %220 : vector<8x2xf32>
    %c11 = arith.constant 11 : index
    %c0_129 = arith.constant 0 : index
    %c0_130 = arith.constant 0 : index
    %222 = vector.load %arg9[%c11, %c0_129, %c0_130] : memref<26x192x64xf32, #tpu.memory_space<vmem>>, vector<1x192x64xf32>
    %223 = vector.shape_cast %222 : vector<1x192x64xf32> to vector<192x64xf32>
    %c11_131 = arith.constant 11 : index
    %c0_132 = arith.constant 0 : index
    %c0_133 = arith.constant 0 : index
    %224 = vector.load %arg10[%c11_131, %c0_132, %c0_133] : memref<26x1x64xf32, #tpu.memory_space<vmem>>, vector<1x1x64xf32>
    %225 = vector.shape_cast %224 : vector<1x1x64xf32> to vector<1x64xf32>
    %cst_134 = arith.constant dense<0.000000e+00> : vector<8x64xf32>
    %226 = tpu.matmul %145, %223, %cst_134 {dimension_numbers = #tpu.dot_dimension_numbers<[1], [0], [0], [1], [0, 0, 1, 1], [], []>} : vector<8x192xf32>, vector<192x64xf32>, vector<8x64xf32> -> vector<8x64xf32>
    %cst_135 = arith.constant dense<0.000000e+00> : vector<8x64xf32>
    %227 = tpu.matmul %167, %226, %cst_135 {dimension_numbers = #tpu.dot_dimension_numbers<[1], [0], [0], [1], [0, 0, 1, 1], [], []>} : vector<8x8xf32>, vector<8x64xf32>, vector<8x64xf32> -> vector<8x64xf32>
    %228 = vector.broadcast %225 : vector<1x64xf32> to vector<8x64xf32>
    %229 = arith.addf %227, %228 : vector<8x64xf32>
    %cst_136 = arith.constant 0.000000e+00 : f32
    %230 = vector.broadcast %cst_136 : f32 to vector<8x64xf32>
    %231 = arith.maximumf %229, %230 : vector<8x64xf32>
    %c12 = arith.constant 12 : index
    %c0_137 = arith.constant 0 : index
    %c0_138 = arith.constant 0 : index
    %232 = vector.load %arg9[%c12, %c0_137, %c0_138] : memref<26x192x64xf32, #tpu.memory_space<vmem>>, vector<1x192x64xf32>
    %233 = vector.shape_cast %232 : vector<1x192x64xf32> to vector<192x64xf32>
    %234 = vector.extract_strided_slice %233 {offsets = [0, 0], sizes = [64, 64], strides = [1, 1]} : vector<192x64xf32> to vector<64x64xf32>
    %c12_139 = arith.constant 12 : index
    %c0_140 = arith.constant 0 : index
    %c0_141 = arith.constant 0 : index
    %235 = vector.load %arg10[%c12_139, %c0_140, %c0_141] : memref<26x1x64xf32, #tpu.memory_space<vmem>>, vector<1x1x64xf32>
    %236 = vector.shape_cast %235 : vector<1x1x64xf32> to vector<1x64xf32>
    %cst_142 = arith.constant dense<0.000000e+00> : vector<8x64xf32>
    %237 = tpu.matmul %231, %234, %cst_142 {dimension_numbers = #tpu.dot_dimension_numbers<[1], [0], [0], [1], [0, 0, 1, 1], [], []>} : vector<8x64xf32>, vector<64x64xf32>, vector<8x64xf32> -> vector<8x64xf32>
    %cst_143 = arith.constant dense<0.000000e+00> : vector<8x64xf32>
    %238 = tpu.matmul %167, %237, %cst_143 {dimension_numbers = #tpu.dot_dimension_numbers<[1], [0], [0], [1], [0, 0, 1, 1], [], []>} : vector<8x8xf32>, vector<8x64xf32>, vector<8x64xf32> -> vector<8x64xf32>
    %239 = vector.broadcast %236 : vector<1x64xf32> to vector<8x64xf32>
    %240 = arith.addf %238, %239 : vector<8x64xf32>
    %cst_144 = arith.constant 0.000000e+00 : f32
    %241 = vector.broadcast %cst_144 : f32 to vector<8x64xf32>
    %242 = arith.maximumf %240, %241 : vector<8x64xf32>
    %c13 = arith.constant 13 : index
    %c0_145 = arith.constant 0 : index
    %c0_146 = arith.constant 0 : index
    %243 = vector.load %arg9[%c13, %c0_145, %c0_146] : memref<26x192x64xf32, #tpu.memory_space<vmem>>, vector<1x192x64xf32>
    %244 = vector.shape_cast %243 : vector<1x192x64xf32> to vector<192x64xf32>
    %245 = vector.extract_strided_slice %244 {offsets = [0, 0], sizes = [64, 64], strides = [1, 1]} : vector<192x64xf32> to vector<64x64xf32>
    %c13_147 = arith.constant 13 : index
    %c0_148 = arith.constant 0 : index
    %c0_149 = arith.constant 0 : index
    %246 = vector.load %arg10[%c13_147, %c0_148, %c0_149] : memref<26x1x64xf32, #tpu.memory_space<vmem>>, vector<1x1x64xf32>
    %247 = vector.shape_cast %246 : vector<1x1x64xf32> to vector<1x64xf32>
    %cst_150 = arith.constant dense<0.000000e+00> : vector<8x64xf32>
    %248 = tpu.matmul %242, %245, %cst_150 {dimension_numbers = #tpu.dot_dimension_numbers<[1], [0], [0], [1], [0, 0, 1, 1], [], []>} : vector<8x64xf32>, vector<64x64xf32>, vector<8x64xf32> -> vector<8x64xf32>
    %cst_151 = arith.constant dense<0.000000e+00> : vector<8x64xf32>
    %249 = tpu.matmul %167, %248, %cst_151 {dimension_numbers = #tpu.dot_dimension_numbers<[1], [0], [0], [1], [0, 0, 1, 1], [], []>} : vector<8x8xf32>, vector<8x64xf32>, vector<8x64xf32> -> vector<8x64xf32>
    %250 = vector.broadcast %247 : vector<1x64xf32> to vector<8x64xf32>
    %251 = arith.addf %249, %250 : vector<8x64xf32>
    %cst_152 = arith.constant 0.000000e+00 : f32
    %252 = vector.broadcast %cst_152 : f32 to vector<8x64xf32>
    %253 = arith.maximumf %251, %252 : vector<8x64xf32>
    %254 = tpu.concatenate %231, %242, %253 in 1 : vector<8x64xf32>, vector<8x64xf32>, vector<8x64xf32> -> vector<8x192xf32>
    %cst_153 = arith.constant dense<0.000000e+00> : vector<2x192xf32>
    %255 = tpu.matmul %221, %254, %cst_153 {dimension_numbers = #tpu.dot_dimension_numbers<[0], [0], [1], [1], [0, 1, 1, 1], [], []>} : vector<8x2xf32>, vector<8x192xf32>, vector<2x192xf32> -> vector<2x192xf32>
    %cst_154 = arith.constant dense<0.000000e+00> : vector<2x8xf32>
    %256 = tpu.matmul %221, %147, %cst_154 {dimension_numbers = #tpu.dot_dimension_numbers<[0], [0], [1], [1], [0, 1, 1, 1], [], []>} : vector<8x2xf32>, vector<8x8xf32>, vector<2x8xf32> -> vector<2x8xf32>
    %cst_155 = arith.constant dense<0.000000e+00> : vector<2x2xf32>
    %257 = tpu.matmul %256, %221, %cst_155 {dimension_numbers = #tpu.dot_dimension_numbers<[1], [0], [0], [1], [0, 0, 1, 1], [], []>} : vector<2x8xf32>, vector<8x2xf32>, vector<2x2xf32> -> vector<2x2xf32>
    %258 = tpu.iota {dimensions = array<i32: 0>} : vector<2x2xi32>
    %259 = tpu.iota {dimensions = array<i32: 1>} : vector<2x2xi32>
    %260 = arith.cmpi eq, %258, %259 : vector<2x2xi32>
    %261 = arith.extui %260 : vector<2x2xi1> to vector<2x2xi32>
    %262 = arith.sitofp %261 : vector<2x2xi32> to vector<2x2xf32>
    %263 = arith.addf %257, %262 : vector<2x2xf32>
    %cst_156 = arith.constant dense<0.000000e+00> : vector<2xf32>
    %264 = vector.multi_reduction <add>, %263, %cst_156 [1] : vector<2x2xf32> to vector<2xf32>
    %265 = vector.shape_cast %264 : vector<2xf32> to vector<2x1xf32>
    %cst_157 = arith.constant 9.99999996E-13 : f32
    %266 = vector.broadcast %cst_157 : f32 to vector<2x1xf32>
    %267 = arith.maximumf %265, %266 : vector<2x1xf32>
    %268 = math.rsqrt %267 : vector<2x1xf32>
    %cst_158 = arith.constant dense<0.000000e+00> : vector<2xf32>
    %269 = vector.multi_reduction <add>, %263, %cst_158 [0] : vector<2x2xf32> to vector<2xf32>
    %270 = vector.shape_cast %269 : vector<2xf32> to vector<1x2xf32>
    %cst_159 = arith.constant 9.99999996E-13 : f32
    %271 = vector.broadcast %cst_159 : f32 to vector<1x2xf32>
    %272 = arith.maximumf %270, %271 : vector<1x2xf32>
    %273 = math.rsqrt %272 : vector<1x2xf32>
    %274 = vector.broadcast %268 : vector<2x1xf32> to vector<2x2xf32>
    %275 = arith.mulf %263, %274 : vector<2x2xf32>
    %276 = vector.broadcast %273 : vector<1x2xf32> to vector<2x2xf32>
    %277 = arith.mulf %275, %276 : vector<2x2xf32>
    %c14 = arith.constant 14 : index
    %c0_160 = arith.constant 0 : index
    %c0_161 = arith.constant 0 : index
    %278 = vector.load %arg9[%c14, %c0_160, %c0_161] : memref<26x192x64xf32, #tpu.memory_space<vmem>>, vector<1x192x64xf32>
    %279 = vector.shape_cast %278 : vector<1x192x64xf32> to vector<192x64xf32>
    %c14_162 = arith.constant 14 : index
    %c0_163 = arith.constant 0 : index
    %c0_164 = arith.constant 0 : index
    %280 = vector.load %arg10[%c14_162, %c0_163, %c0_164] : memref<26x1x64xf32, #tpu.memory_space<vmem>>, vector<1x1x64xf32>
    %281 = vector.shape_cast %280 : vector<1x1x64xf32> to vector<1x64xf32>
    %cst_165 = arith.constant dense<0.000000e+00> : vector<2x64xf32>
    %282 = tpu.matmul %255, %279, %cst_165 {dimension_numbers = #tpu.dot_dimension_numbers<[1], [0], [0], [1], [0, 0, 1, 1], [], []>} : vector<2x192xf32>, vector<192x64xf32>, vector<2x64xf32> -> vector<2x64xf32>
    %cst_166 = arith.constant dense<0.000000e+00> : vector<2x64xf32>
    %283 = tpu.matmul %277, %282, %cst_166 {dimension_numbers = #tpu.dot_dimension_numbers<[1], [0], [0], [1], [0, 0, 1, 1], [], []>} : vector<2x2xf32>, vector<2x64xf32>, vector<2x64xf32> -> vector<2x64xf32>
    %284 = vector.broadcast %281 : vector<1x64xf32> to vector<2x64xf32>
    %285 = arith.addf %283, %284 : vector<2x64xf32>
    %cst_167 = arith.constant 0.000000e+00 : f32
    %286 = vector.broadcast %cst_167 : f32 to vector<2x64xf32>
    %287 = arith.maximumf %285, %286 : vector<2x64xf32>
    %c15 = arith.constant 15 : index
    %c0_168 = arith.constant 0 : index
    %c0_169 = arith.constant 0 : index
    %288 = vector.load %arg9[%c15, %c0_168, %c0_169] : memref<26x192x64xf32, #tpu.memory_space<vmem>>, vector<1x192x64xf32>
    %289 = vector.shape_cast %288 : vector<1x192x64xf32> to vector<192x64xf32>
    %290 = vector.extract_strided_slice %289 {offsets = [0, 0], sizes = [64, 64], strides = [1, 1]} : vector<192x64xf32> to vector<64x64xf32>
    %c15_170 = arith.constant 15 : index
    %c0_171 = arith.constant 0 : index
    %c0_172 = arith.constant 0 : index
    %291 = vector.load %arg10[%c15_170, %c0_171, %c0_172] : memref<26x1x64xf32, #tpu.memory_space<vmem>>, vector<1x1x64xf32>
    %292 = vector.shape_cast %291 : vector<1x1x64xf32> to vector<1x64xf32>
    %cst_173 = arith.constant dense<0.000000e+00> : vector<2x64xf32>
    %293 = tpu.matmul %287, %290, %cst_173 {dimension_numbers = #tpu.dot_dimension_numbers<[1], [0], [0], [1], [0, 0, 1, 1], [], []>} : vector<2x64xf32>, vector<64x64xf32>, vector<2x64xf32> -> vector<2x64xf32>
    %cst_174 = arith.constant dense<0.000000e+00> : vector<2x64xf32>
    %294 = tpu.matmul %277, %293, %cst_174 {dimension_numbers = #tpu.dot_dimension_numbers<[1], [0], [0], [1], [0, 0, 1, 1], [], []>} : vector<2x2xf32>, vector<2x64xf32>, vector<2x64xf32> -> vector<2x64xf32>
    %295 = vector.broadcast %292 : vector<1x64xf32> to vector<2x64xf32>
    %296 = arith.addf %294, %295 : vector<2x64xf32>
    %cst_175 = arith.constant 0.000000e+00 : f32
    %297 = vector.broadcast %cst_175 : f32 to vector<2x64xf32>
    %298 = arith.maximumf %296, %297 : vector<2x64xf32>
    %c16 = arith.constant 16 : index
    %c0_176 = arith.constant 0 : index
    %c0_177 = arith.constant 0 : index
    %299 = vector.load %arg9[%c16, %c0_176, %c0_177] : memref<26x192x64xf32, #tpu.memory_space<vmem>>, vector<1x192x64xf32>
    %300 = vector.shape_cast %299 : vector<1x192x64xf32> to vector<192x64xf32>
    %301 = vector.extract_strided_slice %300 {offsets = [0, 0], sizes = [64, 64], strides = [1, 1]} : vector<192x64xf32> to vector<64x64xf32>
    %c16_178 = arith.constant 16 : index
    %c0_179 = arith.constant 0 : index
    %c0_180 = arith.constant 0 : index
    %302 = vector.load %arg10[%c16_178, %c0_179, %c0_180] : memref<26x1x64xf32, #tpu.memory_space<vmem>>, vector<1x1x64xf32>
    %303 = vector.shape_cast %302 : vector<1x1x64xf32> to vector<1x64xf32>
    %cst_181 = arith.constant dense<0.000000e+00> : vector<2x64xf32>
    %304 = tpu.matmul %298, %301, %cst_181 {dimension_numbers = #tpu.dot_dimension_numbers<[1], [0], [0], [1], [0, 0, 1, 1], [], []>} : vector<2x64xf32>, vector<64x64xf32>, vector<2x64xf32> -> vector<2x64xf32>
    %cst_182 = arith.constant dense<0.000000e+00> : vector<2x64xf32>
    %305 = tpu.matmul %277, %304, %cst_182 {dimension_numbers = #tpu.dot_dimension_numbers<[1], [0], [0], [1], [0, 0, 1, 1], [], []>} : vector<2x2xf32>, vector<2x64xf32>, vector<2x64xf32> -> vector<2x64xf32>
    %306 = vector.broadcast %303 : vector<1x64xf32> to vector<2x64xf32>
    %307 = arith.addf %305, %306 : vector<2x64xf32>
    %cst_183 = arith.constant 0.000000e+00 : f32
    %308 = vector.broadcast %cst_183 : f32 to vector<2x64xf32>
    %309 = arith.maximumf %307, %308 : vector<2x64xf32>
    %310 = tpu.concatenate %287, %298, %309 in 1 : vector<2x64xf32>, vector<2x64xf32>, vector<2x64xf32> -> vector<2x192xf32>
    %c17 = arith.constant 17 : index
    %c0_184 = arith.constant 0 : index
    %c0_185 = arith.constant 0 : index
    %311 = vector.load %arg9[%c17, %c0_184, %c0_185] : memref<26x192x64xf32, #tpu.memory_space<vmem>>, vector<1x192x64xf32>
    %312 = vector.shape_cast %311 : vector<1x192x64xf32> to vector<192x64xf32>
    %cst_186 = arith.constant dense<0.000000e+00> : vector<2x64xf32>
    %313 = tpu.matmul %310, %312, %cst_186 {dimension_numbers = #tpu.dot_dimension_numbers<[1], [0], [0], [1], [0, 0, 1, 1], [], []>} : vector<2x192xf32>, vector<192x64xf32>, vector<2x64xf32> -> vector<2x64xf32>
    %c17_187 = arith.constant 17 : index
    %c0_188 = arith.constant 0 : index
    %c0_189 = arith.constant 0 : index
    %314 = vector.load %arg10[%c17_187, %c0_188, %c0_189] : memref<26x1x64xf32, #tpu.memory_space<vmem>>, vector<1x1x64xf32>
    %315 = vector.shape_cast %314 : vector<1x1x64xf32> to vector<1x64xf32>
    %316 = vector.broadcast %315 : vector<1x64xf32> to vector<2x64xf32>
    %317 = arith.addf %313, %316 : vector<2x64xf32>
    %cst_190 = arith.constant 0.000000e+00 : f32
    %318 = vector.broadcast %cst_190 : f32 to vector<2x64xf32>
    %319 = arith.maximumf %317, %318 : vector<2x64xf32>
    %320 = vector.extract_strided_slice %319 {offsets = [0, 0], sizes = [2, 16], strides = [1, 1]} : vector<2x64xf32> to vector<2x16xf32>
    %cst_191 = arith.constant dense<0xFF800000> : vector<2xf32>
    %321 = vector.multi_reduction <maximumf>, %320, %cst_191 [1] : vector<2x16xf32> to vector<2xf32>
    %cst_192 = arith.constant 0xFF800000 : f32
    %322 = vector.broadcast %cst_192 : f32 to vector<2xf32>
    %323 = arith.maximumf %322, %321 : vector<2xf32>
    %324 = vector.shape_cast %323 : vector<2xf32> to vector<2x1xf32>
    %325 = vector.broadcast %324 : vector<2x1xf32> to vector<2x16xf32>
    %326 = arith.subf %320, %325 : vector<2x16xf32>
    %327 = math.exp %326 : vector<2x16xf32>
    %cst_193 = arith.constant dense<0.000000e+00> : vector<2xf32>
    %328 = vector.multi_reduction <add>, %327, %cst_193 [1] : vector<2x16xf32> to vector<2xf32>
    %329 = vector.shape_cast %328 : vector<2xf32> to vector<2x1xf32>
    %330 = vector.broadcast %329 : vector<2x1xf32> to vector<2x16xf32>
    %331 = arith.divf %327, %330 : vector<2x16xf32>
    %c18 = arith.constant 18 : index
    %c0_194 = arith.constant 0 : index
    %c0_195 = arith.constant 0 : index
    %332 = vector.load %arg9[%c18, %c0_194, %c0_195] : memref<26x192x64xf32, #tpu.memory_space<vmem>>, vector<1x192x64xf32>
    %333 = vector.shape_cast %332 : vector<1x192x64xf32> to vector<192x64xf32>
    %c18_196 = arith.constant 18 : index
    %c0_197 = arith.constant 0 : index
    %c0_198 = arith.constant 0 : index
    %334 = vector.load %arg10[%c18_196, %c0_197, %c0_198] : memref<26x1x64xf32, #tpu.memory_space<vmem>>, vector<1x1x64xf32>
    %335 = vector.shape_cast %334 : vector<1x1x64xf32> to vector<1x64xf32>
    %cst_199 = arith.constant dense<0.000000e+00> : vector<2x64xf32>
    %336 = tpu.matmul %255, %333, %cst_199 {dimension_numbers = #tpu.dot_dimension_numbers<[1], [0], [0], [1], [0, 0, 1, 1], [], []>} : vector<2x192xf32>, vector<192x64xf32>, vector<2x64xf32> -> vector<2x64xf32>
    %cst_200 = arith.constant dense<0.000000e+00> : vector<2x64xf32>
    %337 = tpu.matmul %277, %336, %cst_200 {dimension_numbers = #tpu.dot_dimension_numbers<[1], [0], [0], [1], [0, 0, 1, 1], [], []>} : vector<2x2xf32>, vector<2x64xf32>, vector<2x64xf32> -> vector<2x64xf32>
    %338 = vector.broadcast %335 : vector<1x64xf32> to vector<2x64xf32>
    %339 = arith.addf %337, %338 : vector<2x64xf32>
    %cst_201 = arith.constant 0.000000e+00 : f32
    %340 = vector.broadcast %cst_201 : f32 to vector<2x64xf32>
    %341 = arith.maximumf %339, %340 : vector<2x64xf32>
    %c19 = arith.constant 19 : index
    %c0_202 = arith.constant 0 : index
    %c0_203 = arith.constant 0 : index
    %342 = vector.load %arg9[%c19, %c0_202, %c0_203] : memref<26x192x64xf32, #tpu.memory_space<vmem>>, vector<1x192x64xf32>
    %343 = vector.shape_cast %342 : vector<1x192x64xf32> to vector<192x64xf32>
    %344 = vector.extract_strided_slice %343 {offsets = [0, 0], sizes = [64, 64], strides = [1, 1]} : vector<192x64xf32> to vector<64x64xf32>
    %c19_204 = arith.constant 19 : index
    %c0_205 = arith.constant 0 : index
    %c0_206 = arith.constant 0 : index
    %345 = vector.load %arg10[%c19_204, %c0_205, %c0_206] : memref<26x1x64xf32, #tpu.memory_space<vmem>>, vector<1x1x64xf32>
    %346 = vector.shape_cast %345 : vector<1x1x64xf32> to vector<1x64xf32>
    %cst_207 = arith.constant dense<0.000000e+00> : vector<2x64xf32>
    %347 = tpu.matmul %341, %344, %cst_207 {dimension_numbers = #tpu.dot_dimension_numbers<[1], [0], [0], [1], [0, 0, 1, 1], [], []>} : vector<2x64xf32>, vector<64x64xf32>, vector<2x64xf32> -> vector<2x64xf32>
    %cst_208 = arith.constant dense<0.000000e+00> : vector<2x64xf32>
    %348 = tpu.matmul %277, %347, %cst_208 {dimension_numbers = #tpu.dot_dimension_numbers<[1], [0], [0], [1], [0, 0, 1, 1], [], []>} : vector<2x2xf32>, vector<2x64xf32>, vector<2x64xf32> -> vector<2x64xf32>
    %349 = vector.broadcast %346 : vector<1x64xf32> to vector<2x64xf32>
    %350 = arith.addf %348, %349 : vector<2x64xf32>
    %cst_209 = arith.constant 0.000000e+00 : f32
    %351 = vector.broadcast %cst_209 : f32 to vector<2x64xf32>
    %352 = arith.maximumf %350, %351 : vector<2x64xf32>
    %c20 = arith.constant 20 : index
    %c0_210 = arith.constant 0 : index
    %c0_211 = arith.constant 0 : index
    %353 = vector.load %arg9[%c20, %c0_210, %c0_211] : memref<26x192x64xf32, #tpu.memory_space<vmem>>, vector<1x192x64xf32>
    %354 = vector.shape_cast %353 : vector<1x192x64xf32> to vector<192x64xf32>
    %355 = vector.extract_strided_slice %354 {offsets = [0, 0], sizes = [64, 64], strides = [1, 1]} : vector<192x64xf32> to vector<64x64xf32>
    %c20_212 = arith.constant 20 : index
    %c0_213 = arith.constant 0 : index
    %c0_214 = arith.constant 0 : index
    %356 = vector.load %arg10[%c20_212, %c0_213, %c0_214] : memref<26x1x64xf32, #tpu.memory_space<vmem>>, vector<1x1x64xf32>
    %357 = vector.shape_cast %356 : vector<1x1x64xf32> to vector<1x64xf32>
    %cst_215 = arith.constant dense<0.000000e+00> : vector<2x64xf32>
    %358 = tpu.matmul %352, %355, %cst_215 {dimension_numbers = #tpu.dot_dimension_numbers<[1], [0], [0], [1], [0, 0, 1, 1], [], []>} : vector<2x64xf32>, vector<64x64xf32>, vector<2x64xf32> -> vector<2x64xf32>
    %cst_216 = arith.constant dense<0.000000e+00> : vector<2x64xf32>
    %359 = tpu.matmul %277, %358, %cst_216 {dimension_numbers = #tpu.dot_dimension_numbers<[1], [0], [0], [1], [0, 0, 1, 1], [], []>} : vector<2x2xf32>, vector<2x64xf32>, vector<2x64xf32> -> vector<2x64xf32>
    %360 = vector.broadcast %357 : vector<1x64xf32> to vector<2x64xf32>
    %361 = arith.addf %359, %360 : vector<2x64xf32>
    %cst_217 = arith.constant 0.000000e+00 : f32
    %362 = vector.broadcast %cst_217 : f32 to vector<2x64xf32>
    %363 = arith.maximumf %361, %362 : vector<2x64xf32>
    %364 = tpu.concatenate %341, %352, %363 in 1 : vector<2x64xf32>, vector<2x64xf32>, vector<2x64xf32> -> vector<2x192xf32>
    %cst_218 = arith.constant dense<0.000000e+00> : vector<16x192xf32>
    %365 = tpu.matmul %331, %364, %cst_218 {dimension_numbers = #tpu.dot_dimension_numbers<[0], [0], [1], [1], [0, 1, 1, 1], [], []>} : vector<2x16xf32>, vector<2x192xf32>, vector<16x192xf32> -> vector<16x192xf32>
    %cst_219 = arith.constant dense<0.000000e+00> : vector<16x2xf32>
    %366 = tpu.matmul %331, %257, %cst_219 {dimension_numbers = #tpu.dot_dimension_numbers<[0], [0], [1], [1], [0, 1, 1, 1], [], []>} : vector<2x16xf32>, vector<2x2xf32>, vector<16x2xf32> -> vector<16x2xf32>
    %cst_220 = arith.constant dense<0.000000e+00> : vector<16x16xf32>
    %367 = tpu.matmul %366, %331, %cst_220 {dimension_numbers = #tpu.dot_dimension_numbers<[1], [0], [0], [1], [0, 0, 1, 1], [], []>} : vector<16x2xf32>, vector<2x16xf32>, vector<16x16xf32> -> vector<16x16xf32>
    %368 = tpu.iota {dimensions = array<i32: 0>} : vector<16x16xi32>
    %369 = tpu.iota {dimensions = array<i32: 1>} : vector<16x16xi32>
    %370 = arith.cmpi eq, %368, %369 : vector<16x16xi32>
    %371 = arith.extui %370 : vector<16x16xi1> to vector<16x16xi32>
    %372 = arith.sitofp %371 : vector<16x16xi32> to vector<16x16xf32>
    %373 = arith.addf %367, %372 : vector<16x16xf32>
    %cst_221 = arith.constant dense<0.000000e+00> : vector<16xf32>
    %374 = vector.multi_reduction <add>, %373, %cst_221 [1] : vector<16x16xf32> to vector<16xf32>
    %375 = vector.shape_cast %374 : vector<16xf32> to vector<16x1xf32>
    %cst_222 = arith.constant 9.99999996E-13 : f32
    %376 = vector.broadcast %cst_222 : f32 to vector<16x1xf32>
    %377 = arith.maximumf %375, %376 : vector<16x1xf32>
    %378 = math.rsqrt %377 : vector<16x1xf32>
    %cst_223 = arith.constant dense<0.000000e+00> : vector<16xf32>
    %379 = vector.multi_reduction <add>, %373, %cst_223 [0] : vector<16x16xf32> to vector<16xf32>
    %380 = vector.shape_cast %379 : vector<16xf32> to vector<1x16xf32>
    %cst_224 = arith.constant 9.99999996E-13 : f32
    %381 = vector.broadcast %cst_224 : f32 to vector<1x16xf32>
    %382 = arith.maximumf %380, %381 : vector<1x16xf32>
    %383 = math.rsqrt %382 : vector<1x16xf32>
    %384 = vector.broadcast %378 : vector<16x1xf32> to vector<16x16xf32>
    %385 = arith.mulf %373, %384 : vector<16x16xf32>
    %386 = vector.broadcast %383 : vector<1x16xf32> to vector<16x16xf32>
    %387 = arith.mulf %385, %386 : vector<16x16xf32>
    %c21 = arith.constant 21 : index
    %c0_225 = arith.constant 0 : index
    %c0_226 = arith.constant 0 : index
    %388 = vector.load %arg9[%c21, %c0_225, %c0_226] : memref<26x192x64xf32, #tpu.memory_space<vmem>>, vector<1x192x64xf32>
    %389 = vector.shape_cast %388 : vector<1x192x64xf32> to vector<192x64xf32>
    %c21_227 = arith.constant 21 : index
    %c0_228 = arith.constant 0 : index
    %c0_229 = arith.constant 0 : index
    %390 = vector.load %arg10[%c21_227, %c0_228, %c0_229] : memref<26x1x64xf32, #tpu.memory_space<vmem>>, vector<1x1x64xf32>
    %391 = vector.shape_cast %390 : vector<1x1x64xf32> to vector<1x64xf32>
    %cst_230 = arith.constant dense<0.000000e+00> : vector<16x64xf32>
    %392 = tpu.matmul %365, %389, %cst_230 {dimension_numbers = #tpu.dot_dimension_numbers<[1], [0], [0], [1], [0, 0, 1, 1], [], []>} : vector<16x192xf32>, vector<192x64xf32>, vector<16x64xf32> -> vector<16x64xf32>
    %cst_231 = arith.constant dense<0.000000e+00> : vector<16x64xf32>
    %393 = tpu.matmul %387, %392, %cst_231 {dimension_numbers = #tpu.dot_dimension_numbers<[1], [0], [0], [1], [0, 0, 1, 1], [], []>} : vector<16x16xf32>, vector<16x64xf32>, vector<16x64xf32> -> vector<16x64xf32>
    %394 = vector.broadcast %391 : vector<1x64xf32> to vector<16x64xf32>
    %395 = arith.addf %393, %394 : vector<16x64xf32>
    %cst_232 = arith.constant 0.000000e+00 : f32
    %396 = vector.broadcast %cst_232 : f32 to vector<16x64xf32>
    %397 = arith.maximumf %395, %396 : vector<16x64xf32>
    %c22 = arith.constant 22 : index
    %c0_233 = arith.constant 0 : index
    %c0_234 = arith.constant 0 : index
    %398 = vector.load %arg9[%c22, %c0_233, %c0_234] : memref<26x192x64xf32, #tpu.memory_space<vmem>>, vector<1x192x64xf32>
    %399 = vector.shape_cast %398 : vector<1x192x64xf32> to vector<192x64xf32>
    %400 = vector.extract_strided_slice %399 {offsets = [0, 0], sizes = [64, 64], strides = [1, 1]} : vector<192x64xf32> to vector<64x64xf32>
    %c22_235 = arith.constant 22 : index
    %c0_236 = arith.constant 0 : index
    %c0_237 = arith.constant 0 : index
    %401 = vector.load %arg10[%c22_235, %c0_236, %c0_237] : memref<26x1x64xf32, #tpu.memory_space<vmem>>, vector<1x1x64xf32>
    %402 = vector.shape_cast %401 : vector<1x1x64xf32> to vector<1x64xf32>
    %cst_238 = arith.constant dense<0.000000e+00> : vector<16x64xf32>
    %403 = tpu.matmul %397, %400, %cst_238 {dimension_numbers = #tpu.dot_dimension_numbers<[1], [0], [0], [1], [0, 0, 1, 1], [], []>} : vector<16x64xf32>, vector<64x64xf32>, vector<16x64xf32> -> vector<16x64xf32>
    %cst_239 = arith.constant dense<0.000000e+00> : vector<16x64xf32>
    %404 = tpu.matmul %387, %403, %cst_239 {dimension_numbers = #tpu.dot_dimension_numbers<[1], [0], [0], [1], [0, 0, 1, 1], [], []>} : vector<16x16xf32>, vector<16x64xf32>, vector<16x64xf32> -> vector<16x64xf32>
    %405 = vector.broadcast %402 : vector<1x64xf32> to vector<16x64xf32>
    %406 = arith.addf %404, %405 : vector<16x64xf32>
    %cst_240 = arith.constant 0.000000e+00 : f32
    %407 = vector.broadcast %cst_240 : f32 to vector<16x64xf32>
    %408 = arith.maximumf %406, %407 : vector<16x64xf32>
    %c23 = arith.constant 23 : index
    %c0_241 = arith.constant 0 : index
    %c0_242 = arith.constant 0 : index
    %409 = vector.load %arg9[%c23, %c0_241, %c0_242] : memref<26x192x64xf32, #tpu.memory_space<vmem>>, vector<1x192x64xf32>
    %410 = vector.shape_cast %409 : vector<1x192x64xf32> to vector<192x64xf32>
    %411 = vector.extract_strided_slice %410 {offsets = [0, 0], sizes = [64, 64], strides = [1, 1]} : vector<192x64xf32> to vector<64x64xf32>
    %c23_243 = arith.constant 23 : index
    %c0_244 = arith.constant 0 : index
    %c0_245 = arith.constant 0 : index
    %412 = vector.load %arg10[%c23_243, %c0_244, %c0_245] : memref<26x1x64xf32, #tpu.memory_space<vmem>>, vector<1x1x64xf32>
    %413 = vector.shape_cast %412 : vector<1x1x64xf32> to vector<1x64xf32>
    %cst_246 = arith.constant dense<0.000000e+00> : vector<16x64xf32>
    %414 = tpu.matmul %408, %411, %cst_246 {dimension_numbers = #tpu.dot_dimension_numbers<[1], [0], [0], [1], [0, 0, 1, 1], [], []>} : vector<16x64xf32>, vector<64x64xf32>, vector<16x64xf32> -> vector<16x64xf32>
    %cst_247 = arith.constant dense<0.000000e+00> : vector<16x64xf32>
    %415 = tpu.matmul %387, %414, %cst_247 {dimension_numbers = #tpu.dot_dimension_numbers<[1], [0], [0], [1], [0, 0, 1, 1], [], []>} : vector<16x16xf32>, vector<16x64xf32>, vector<16x64xf32> -> vector<16x64xf32>
    %416 = vector.broadcast %413 : vector<1x64xf32> to vector<16x64xf32>
    %417 = arith.addf %415, %416 : vector<16x64xf32>
    %cst_248 = arith.constant 0.000000e+00 : f32
    %418 = vector.broadcast %cst_248 : f32 to vector<16x64xf32>
    %419 = arith.maximumf %417, %418 : vector<16x64xf32>
    %cst_249 = arith.constant dense<0.000000e+00> : vector<64xf32>
    %420 = vector.multi_reduction <add>, %397, %cst_249 [0] : vector<16x64xf32> to vector<64xf32>
    %421 = vector.shape_cast %420 : vector<64xf32> to vector<1x64xf32>
    %cst_250 = arith.constant 1.600000e+01 : f32
    %422 = vector.broadcast %cst_250 : f32 to vector<1x64xf32>
    %423 = arith.divf %421, %422 : vector<1x64xf32>
    %cst_251 = arith.constant dense<0.000000e+00> : vector<64xf32>
    %424 = vector.multi_reduction <add>, %408, %cst_251 [0] : vector<16x64xf32> to vector<64xf32>
    %425 = vector.shape_cast %424 : vector<64xf32> to vector<1x64xf32>
    %cst_252 = arith.constant 1.600000e+01 : f32
    %426 = vector.broadcast %cst_252 : f32 to vector<1x64xf32>
    %427 = arith.divf %425, %426 : vector<1x64xf32>
    %cst_253 = arith.constant dense<0.000000e+00> : vector<64xf32>
    %428 = vector.multi_reduction <add>, %419, %cst_253 [0] : vector<16x64xf32> to vector<64xf32>
    %429 = vector.shape_cast %428 : vector<64xf32> to vector<1x64xf32>
    %cst_254 = arith.constant 1.600000e+01 : f32
    %430 = vector.broadcast %cst_254 : f32 to vector<1x64xf32>
    %431 = arith.divf %429, %430 : vector<1x64xf32>
    %432 = tpu.concatenate %423, %427, %431 in 1 : vector<1x64xf32>, vector<1x64xf32>, vector<1x64xf32> -> vector<1x192xf32>
    %c24 = arith.constant 24 : index
    %c0_255 = arith.constant 0 : index
    %c0_256 = arith.constant 0 : index
    %433 = vector.load %arg9[%c24, %c0_255, %c0_256] : memref<26x192x64xf32, #tpu.memory_space<vmem>>, vector<1x192x64xf32>
    %434 = vector.shape_cast %433 : vector<1x192x64xf32> to vector<192x64xf32>
    %cst_257 = arith.constant dense<0.000000e+00> : vector<1x64xf32>
    %435 = tpu.matmul %432, %434, %cst_257 {dimension_numbers = #tpu.dot_dimension_numbers<[1], [0], [0], [1], [0, 0, 1, 1], [], []>} : vector<1x192xf32>, vector<192x64xf32>, vector<1x64xf32> -> vector<1x64xf32>
    %c24_258 = arith.constant 24 : index
    %c0_259 = arith.constant 0 : index
    %c0_260 = arith.constant 0 : index
    %436 = vector.load %arg10[%c24_258, %c0_259, %c0_260] : memref<26x1x64xf32, #tpu.memory_space<vmem>>, vector<1x1x64xf32>
    %437 = vector.shape_cast %436 : vector<1x1x64xf32> to vector<1x64xf32>
    %438 = arith.addf %435, %437 : vector<1x64xf32>
    %cst_261 = arith.constant 0.000000e+00 : f32
    %439 = vector.broadcast %cst_261 : f32 to vector<1x64xf32>
    %440 = arith.maximumf %438, %439 : vector<1x64xf32>
    %c25 = arith.constant 25 : index
    %c0_262 = arith.constant 0 : index
    %c0_263 = arith.constant 0 : index
    %441 = vector.load %arg9[%c25, %c0_262, %c0_263] : memref<26x192x64xf32, #tpu.memory_space<vmem>>, vector<1x192x64xf32>
    %442 = vector.shape_cast %441 : vector<1x192x64xf32> to vector<192x64xf32>
    %443 = vector.extract_strided_slice %442 {offsets = [0, 0], sizes = [64, 64], strides = [1, 1]} : vector<192x64xf32> to vector<64x64xf32>
    %cst_264 = arith.constant dense<0.000000e+00> : vector<1x64xf32>
    %444 = tpu.matmul %440, %443, %cst_264 {dimension_numbers = #tpu.dot_dimension_numbers<[1], [0], [0], [1], [0, 0, 1, 1], [], []>} : vector<1x64xf32>, vector<64x64xf32>, vector<1x64xf32> -> vector<1x64xf32>
    %c25_265 = arith.constant 25 : index
    %c0_266 = arith.constant 0 : index
    %c0_267 = arith.constant 0 : index
    %445 = vector.load %arg10[%c25_265, %c0_266, %c0_267] : memref<26x1x64xf32, #tpu.memory_space<vmem>>, vector<1x1x64xf32>
    %446 = vector.shape_cast %445 : vector<1x1x64xf32> to vector<1x64xf32>
    %447 = arith.addf %444, %446 : vector<1x64xf32>
    %448 = vector.extract_strided_slice %447 {offsets = [0, 0], sizes = [1, 9], strides = [1, 1]} : vector<1x64xf32> to vector<1x9xf32>
    %cst_268 = arith.constant dense<0xFF800000> : vector<1xf32>
    %449 = vector.multi_reduction <maximumf>, %448, %cst_268 [1] : vector<1x9xf32> to vector<1xf32>
    %cst_269 = arith.constant 0xFF800000 : f32
    %450 = vector.broadcast %cst_269 : f32 to vector<1xf32>
    %451 = arith.maximumf %450, %449 : vector<1xf32>
    %452 = vector.shape_cast %451 : vector<1xf32> to vector<1x1xf32>
    %453 = vector.broadcast %452 : vector<1x1xf32> to vector<1x9xf32>
    %454 = arith.subf %448, %453 : vector<1x9xf32>
    %455 = math.exp %454 : vector<1x9xf32>
    %cst_270 = arith.constant dense<0.000000e+00> : vector<1xf32>
    %456 = vector.multi_reduction <add>, %455, %cst_270 [1] : vector<1x9xf32> to vector<1xf32>
    %457 = vector.shape_cast %456 : vector<1xf32> to vector<1x1xf32>
    %458 = math.log %457 : vector<1x1xf32>
    %459 = vector.broadcast %458 : vector<1x1xf32> to vector<1x9xf32>
    %460 = arith.subf %454, %459 : vector<1x9xf32>
    %c0_271 = arith.constant 0 : index
    %c0_272 = arith.constant 0 : index
    %c0_273 = arith.constant 0 : index
    %461 = vector.load %arg11[%c0_271, %c0_272, %c0_273] : memref<1x1x9xf32, #tpu.memory_space<vmem>>, vector<1x1x9xf32>
    %462 = vector.shape_cast %461 : vector<1x1x9xf32> to vector<1x9xf32>
    %463 = vector.shape_cast %460 : vector<1x9xf32> to vector<1x1x9xf32>
    tpu.vector_store %arg11[%c0_271, %c0_272, %c0_273], %463 {strides = array<i32>} : memref<1x1x9xf32, #tpu.memory_space<vmem>>, vector<1x1x9xf32>,
    return
  }
  func.func @transform_0(%arg0: i32) -> (i32, i32, i32) {
    %c0_i32 = arith.constant 0 : i32
    %c0_i32_0 = arith.constant 0 : i32
    %c0_i32_1 = arith.constant 0 : i32
    return %arg0, %c0_i32, %c0_i32_0 : i32, i32, i32
  }
  func.func @transform_1(%arg0: i32) -> (i32, i32, i32) {
    %c0_i32 = arith.constant 0 : i32
    %c0_i32_0 = arith.constant 0 : i32
    %c0_i32_1 = arith.constant 0 : i32
    return %arg0, %c0_i32, %c0_i32_0 : i32, i32, i32
  }
  func.func @transform_2(%arg0: i32) -> (i32, i32, i32) {
    %c0_i32 = arith.constant 0 : i32
    %c0_i32_0 = arith.constant 0 : i32
    %c0_i32_1 = arith.constant 0 : i32
    return %arg0, %c0_i32, %c0_i32_0 : i32, i32, i32
  }
  func.func @transform_3(%arg0: i32) -> (i32, i32) {
    %c0_i32 = arith.constant 0 : i32
    %c0_i32_0 = arith.constant 0 : i32
    %c0_i32_1 = arith.constant 0 : i32
    return %c0_i32, %c0_i32_0 : i32, i32
  }
  func.func @transform_4(%arg0: i32) -> (i32, i32) {
    %c0_i32 = arith.constant 0 : i32
    %c0_i32_0 = arith.constant 0 : i32
    %c0_i32_1 = arith.constant 0 : i32
    return %c0_i32, %c0_i32_0 : i32, i32
  }
  func.func @transform_5(%arg0: i32) -> (i32, i32) {
    %c0_i32 = arith.constant 0 : i32
    %c0_i32_0 = arith.constant 0 : i32
    %c0_i32_1 = arith.constant 0 : i32
    return %c0_i32, %c0_i32_0 : i32, i32
  }
  func.func @transform_6(%arg0: i32) -> (i32, i32) {
    %c0_i32 = arith.constant 0 : i32
    %c0_i32_0 = arith.constant 0 : i32
    %c0_i32_1 = arith.constant 0 : i32
    return %c0_i32, %c0_i32_0 : i32, i32
  }
  func.func @transform_7(%arg0: i32) -> (i32, i32) {
    %c0_i32 = arith.constant 0 : i32
    %c0_i32_0 = arith.constant 0 : i32
    %c0_i32_1 = arith.constant 0 : i32
    return %c0_i32, %c0_i32_0 : i32, i32
  }
  func.func @transform_8(%arg0: i32) -> (i32, i32, i32) {
    %c0_i32 = arith.constant 0 : i32
    %c0_i32_0 = arith.constant 0 : i32
    %c0_i32_1 = arith.constant 0 : i32
    %c0_i32_2 = arith.constant 0 : i32
    return %c0_i32, %c0_i32_0, %c0_i32_1 : i32, i32, i32
  }
  func.func @transform_9(%arg0: i32) -> (i32, i32, i32) {
    %c0_i32 = arith.constant 0 : i32
    %c0_i32_0 = arith.constant 0 : i32
    %c0_i32_1 = arith.constant 0 : i32
    %c0_i32_2 = arith.constant 0 : i32
    return %c0_i32, %c0_i32_0, %c0_i32_1 : i32, i32, i32
  }
  func.func @transform_10(%arg0: i32) -> (i32, i32, i32) {
    %c0_i32 = arith.constant 0 : i32
    %c0_i32_0 = arith.constant 0 : i32
    %c0_i32_1 = arith.constant 0 : i32
    return %arg0, %c0_i32, %c0_i32_0 : i32, i32, i32
  }
}

</mosaic_0001>

<llo_original>
// kernel: net_forward.1
$region0: #{net_forward.1}
  #allocation0 [shape = 'u32[]', space=smem, size = 0x4, offset = 0x4, fixed_abs, tag = 'smem constant byte address 0x4 - core index']
  #allocation1 [shape = 'u32[72,128]{1,0:T(1,128)}', space=vmem, size = 0x9000, scoped, tag = 'internal scratch']
  %s0 = inlined_call_operand.vmem [shape: f32[2,32,3], index: 0, kind: input, shape index: {}]
  %s1 = inlined_call_operand.hbm [shape: f32[2,32,32], index: 1, kind: input, shape index: {}]
  %s2 = inlined_call_operand.vmem [shape: f32[2,32,160], index: 2, kind: input, shape index: {}]
  %s3 = inlined_call_operand.hbm [shape: f32[32,512], index: 3, kind: input, shape index: {}]
  %s4 = inlined_call_operand.hbm [shape: f32[160,512], index: 4, kind: input, shape index: {}]
  %s5 = inlined_call_operand.hbm [shape: f32[1,512], index: 5, kind: input, shape index: {}]
  %s6 = inlined_call_operand.hbm [shape: f32[512,64], index: 6, kind: input, shape index: {}]
  %s7 = inlined_call_operand.hbm [shape: f32[1,64], index: 7, kind: input, shape index: {}]
  %s8 = inlined_call_operand.hbm [shape: f32[26,192,64], index: 8, kind: input, shape index: {}]
  %s9 = inlined_call_operand.hbm [shape: f32[26,1,64], index: 9, kind: input, shape index: {}]
  %s10 = inlined_call_operand.hbm [shape: f32[2,1,9], index: 10, kind: output, shape index: {}]
  %s11 = sld [smem:[#allocation0]]
  $region105: #{net_forward.1} parent=0
    _
  %s13 = ssub.s32 1, %s11
  %s14 = scalar_select 0, %s13, %s11
  $region1: #{net_forward.1} parent=0
    #allocation2 [shape = 'u8[32768]{0}', space=vmem, size = 0x8000, scoped, tag = 'input window, operand 1']
    #allocation3 [shape = 's32[2]{0}', space=sflag, size = 0x8, scoped, tag = 'scoped memory for net_forward.1']
    #allocation4 [shape = 's32[2]{0}', space=sflag, size = 0x8, scoped, tag = 'scoped memory for net_forward.1']
    #allocation5 [shape = 'u8[65536]{0}', space=vmem, size = 0x10000, scoped, tag = 'input window, operand 3, single buffered']
    #allocation6 [shape = 's32[1]{0}', space=sflag, size = 0x4, scoped, tag = 'scoped memory for net_forward.1']
    #allocation7 [shape = 'u8[327680]{0}', space=vmem, size = 0x50000, scoped, tag = 'input window, operand 4, single buffered']
    #allocation8 [shape = 'u8[2048]{0}', space=vmem, size = 0x800, scoped, tag = 'input window, operand 5, single buffered']
    #allocation9 [shape = 's32[1]{0}', space=sflag, size = 0x4, scoped, tag = 'scoped memory for net_forward.1']
    #allocation10 [shape = 'u8[262144]{0}', space=vmem, size = 0x40000, scoped, tag = 'input window, operand 6, single buffered']
    #allocation11 [shape = 'u8[512]{0}', space=vmem, size = 0x400, scoped, tag = 'input window, operand 7, single buffered']
    #allocation12 [shape = 's32[1]{0}', space=sflag, size = 0x4, scoped, tag = 'scoped memory for net_forward.1']
    #allocation13 [shape = 'u8[2555904]{0}', space=vmem, size = 0x270000, scoped, tag = 'input window, operand 8, single buffered']
    #allocation14 [shape = 'u8[13312]{0}', space=vmem, size = 0x3400, scoped, tag = 'input window, operand 9, single buffered']
    #allocation15 [shape = 's32[1]{0}', space=sflag, size = 0x4, scoped, tag = 'scoped memory for net_forward.1']
    #allocation16 [shape = 'u8[1024]{0}', space=vmem, size = 0x400, scoped, tag = 'output window, operand 0']
    %15 = vsyncpa [#allocation3], 0
    %s16 = scalar_lea.sflag [#allocation3], 1
    %17 = vsyncpa %s16, 0
    %18 = vsyncpa [#allocation6], 0
    %19 = vsyncpa [#allocation9], 0
    %20 = vsyncpa [#allocation12], 0
    %21 = vsyncpa [#allocation15], 0
    %22 = vsyncpa [#allocation4], 0
    %s23 = scalar_lea.sflag [#allocation4], 1
    %24 = vsyncpa %s23, 0
    loop: start=0, step=1, limit=4
    $region2: #{net_forward.1} parent=1 // loop_pre_header
      _
    $region3: #{net_forward.1} parent=1 // loop_header
      %s26 = sphi 0, %s30
      %p27 = scmp.ge.s32.totalorder %s26, 4
      %s36 = sphi 0, %s38
      %s39 = sphi 0, %s36
      %s40 = sphi 0, %s39
      %s56 = sphi 0, %s40
      %s62 = sphi 0, %s64
      %s65 = sphi 0, %s62
      %s66 = sphi 0, %s65
      %s82 = sphi 0, %s66
      %s88 = sphi 0, %s90
      %s91 = sphi 0, %s88
      %s92 = sphi 0, %s91
      %s108 = sphi 0, %s92
      %s112 = sphi 0, %s112
      %s114 = sphi 0, %s112
      %s115 = sphi 0, %s114
      %s129 = sphi 0, %s115
      %s133 = sphi 0, %s133
      %s135 = sphi 0, %s133
      %s136 = sphi 0, %s135
      %s150 = sphi 0, %s136
      %s154 = sphi 0, %s154
      %s156 = sphi 0, %s154
      %s157 = sphi 0, %s156
      %s171 = sphi 0, %s157
      %s175 = sphi 0, %s175
      %s177 = sphi 0, %s175
      %s178 = sphi 0, %s177
      %s192 = sphi 0, %s178
      %s196 = sphi 0, %s196
      %s198 = sphi 0, %s196
      %s199 = sphi 0, %s198
      %s213 = sphi 0, %s199
      %s217 = sphi 0, %s217
      %s219 = sphi 0, %s217
      %s220 = sphi 0, %s219
      %s234 = sphi 0, %s220
      %s238 = sphi 0, %s238
      %s240 = sphi 0, %s238
      %s241 = sphi 0, %s240
      %s255 = sphi 0, %s241
      %s261 = sphi 0, %s263
      %s264 = sphi 0, %s261
      %s265 = sphi 0, %s264
      %s281 = sphi 0, %s265
    $region4: #{net_forward.1} parent=1 // loop_header_branch
      %29 = sbr.rel (%p27) target = $region8
    $region5: #{net_forward.1} parent=1 // loop_body
      %s31 = ssub.s32 %s26, 1
      %s32 = ssub.s32 %s26, 2
      %s33 = sadd.s32 %s26, 1
      %s34 = ssub.s32 %s26, %s33
      %p35 = scmp.eq.s32.totalorder %s34, 0
      %s37 = sadd.s32 %s36, 1
      %s38 = scalar_select %p35, %s36, %s37
      %p41 = pneg %p35
      %p42 = scmp.eq.s32.totalorder %s26, 1
      %p43 = por %p41, %p42
      %p44 = scmp.ne.s32.totalorder %s36, %s39
      %p45 = scmp.eq.s32.totalorder %s26, 0
      %p46 = por %p44, %p45
      %p47 = scmp.ne.s32.totalorder %s36, %s39
      %p48 = scmp.eq.s32.totalorder %s31, 1
      %p49 = por %p47, %p48
      %p50 = scmp.ne.s32.totalorder %s39, %s40
      %p51 = scmp.eq.s32.totalorder %s31, 0
      %p52 = por %p50, %p51
      %p53 = scmp.ne.s32.totalorder %s39, %s40
      %p54 = scmp.eq.s32.totalorder %s32, 1
      %p55 = por %p53, %p54
      %p57 = scmp.ne.s32.totalorder %s40, %s56
      %p58 = scmp.eq.s32.totalorder %s32, 0
      %p59 = por %p57, %p58
      %s60 = ssub.s32 %s26, %s33
      %p61 = scmp.eq.s32.totalorder %s60, 0
      %s63 = sadd.s32 %s62, 1
      %s64 = scalar_select %p61, %s62, %s63
      %p67 = pneg %p61
      %p68 = scmp.eq.s32.totalorder %s26, 1
      %p69 = por %p67, %p68
      %p70 = scmp.ne.s32.totalorder %s62, %s65
      %p71 = scmp.eq.s32.totalorder %s26, 0
      %p72 = por %p70, %p71
      %p73 = scmp.ne.s32.totalorder %s62, %s65
      %p74 = scmp.eq.s32.totalorder %s31, 1
      %p75 = por %p73, %p74
      %p76 = scmp.ne.s32.totalorder %s65, %s66
      %p77 = scmp.eq.s32.totalorder %s31, 0
      %p78 = por %p76, %p77
      %p79 = scmp.ne.s32.totalorder %s65, %s66
      %p80 = scmp.eq.s32.totalorder %s32, 1
      %p81 = por %p79, %p80
      %p83 = scmp.ne.s32.totalorder %s66, %s82
      %p84 = scmp.eq.s32.totalorder %s32, 0
      %p85 = por %p83, %p84
      %s86 = ssub.s32 %s26, %s33
      %p87 = scmp.eq.s32.totalorder %s86, 0
      %s89 = sadd.s32 %s88, 1
      %s90 = scalar_select %p87, %s88, %s89
      %p93 = pneg %p87
      %p94 = scmp.eq.s32.totalorder %s26, 1
      %p95 = por %p93, %p94
      %p96 = scmp.ne.s32.totalorder %s88, %s91
      %p97 = scmp.eq.s32.totalorder %s26, 0
      %p98 = por %p96, %p97
      %p99 = scmp.ne.s32.totalorder %s88, %s91
      %p100 = scmp.eq.s32.totalorder %s31, 1
      %p101 = por %p99, %p100
      %p102 = scmp.ne.s32.totalorder %s91, %s92
      %p103 = scmp.eq.s32.totalorder %s31, 0
      %p104 = por %p102, %p103
      %p105 = scmp.ne.s32.totalorder %s91, %s92
      %p106 = scmp.eq.s32.totalorder %s32, 1
      %p107 = por %p105, %p106
      %p109 = scmp.ne.s32.totalorder %s92, %s108
      %p110 = scmp.eq.s32.totalorder %s32, 0
      %p111 = por %p109, %p110
      %s113 = sadd.s32 %s112, 1
      %p116 = scmp.eq.s32.totalorder %s26, 1
      %p117 = scmp.ne.s32.totalorder %s112, %s114
      %p118 = scmp.eq.s32.totalorder %s26, 0
      %p119 = por %p117, %p118
      %p120 = scmp.ne.s32.totalorder %s112, %s114
      %p121 = scmp.eq.s32.totalorder %s31, 1
      %p122 = por %p120, %p121
      %p123 = scmp.ne.s32.totalorder %s114, %s115
      %p124 = scmp.eq.s32.totalorder %s31, 0
      %p125 = por %p123, %p124
      %p126 = scmp.ne.s32.totalorder %s114, %s115
      %p127 = scmp.eq.s32.totalorder %s32, 1
      %p128 = por %p126, %p127
      %p130 = scmp.ne.s32.totalorder %s115, %s129
      %p131 = scmp.eq.s32.totalorder %s32, 0
      %p132 = por %p130, %p131
      %s134 = sadd.s32 %s133, 1
      %p137 = scmp.eq.s32.totalorder %s26, 1
      %p138 = scmp.ne.s32.totalorder %s133, %s135
      %p139 = scmp.eq.s32.totalorder %s26, 0
      %p140 = por %p138, %p139
      %p141 = scmp.ne.s32.totalorder %s133, %s135
      %p142 = scmp.eq.s32.totalorder %s31, 1
      %p143 = por %p141, %p142
      %p144 = scmp.ne.s32.totalorder %s135, %s136
      %p145 = scmp.eq.s32.totalorder %s31, 0
      %p146 = por %p144, %p145
      %p147 = scmp.ne.s32.totalorder %s135, %s136
      %p148 = scmp.eq.s32.totalorder %s32, 1
      %p149 = por %p147, %p148
      %p151 = scmp.ne.s32.totalorder %s136, %s150
      %p152 = scmp.eq.s32.totalorder %s32, 0
      %p153 = por %p151, %p152
      %s155 = sadd.s32 %s154, 1
      %p158 = scmp.eq.s32.totalorder %s26, 1
      %p159 = scmp.ne.s32.totalorder %s154, %s156
      %p160 = scmp.eq.s32.totalorder %s26, 0
      %p161 = por %p159, %p160
      %p162 = scmp.ne.s32.totalorder %s154, %s156
      %p163 = scmp.eq.s32.totalorder %s31, 1
      %p164 = por %p162, %p163
      %p165 = scmp.ne.s32.totalorder %s156, %s157
      %p166 = scmp.eq.s32.totalorder %s31, 0
      %p167 = por %p165, %p166
      %p168 = scmp.ne.s32.totalorder %s156, %s157
      %p169 = scmp.eq.s32.totalorder %s32, 1
      %p170 = por %p168, %p169
      %p172 = scmp.ne.s32.totalorder %s157, %s171
      %p173 = scmp.eq.s32.totalorder %s32, 0
      %p174 = por %p172, %p173
      %s176 = sadd.s32 %s175, 1
      %p179 = scmp.eq.s32.totalorder %s26, 1
      %p180 = scmp.ne.s32.totalorder %s175, %s177
      %p181 = scmp.eq.s32.totalorder %s26, 0
      %p182 = por %p180, %p181
      %p183 = scmp.ne.s32.totalorder %s175, %s177
      %p184 = scmp.eq.s32.totalorder %s31, 1
      %p185 = por %p183, %p184
      %p186 = scmp.ne.s32.totalorder %s177, %s178
      %p187 = scmp.eq.s32.totalorder %s31, 0
      %p188 = por %p186, %p187
      %p189 = scmp.ne.s32.totalorder %s177, %s178
      %p190 = scmp.eq.s32.totalorder %s32, 1
      %p191 = por %p189, %p190
      %p193 = scmp.ne.s32.totalorder %s178, %s192
      %p194 = scmp.eq.s32.totalorder %s32, 0
      %p195 = por %p193, %p194
      %s197 = sadd.s32 %s196, 1
      %p200 = scmp.eq.s32.totalorder %s26, 1
      %p201 = scmp.ne.s32.totalorder %s196, %s198
      %p202 = scmp.eq.s32.totalorder %s26, 0
      %p203 = por %p201, %p202
      %p204 = scmp.ne.s32.totalorder %s196, %s198
      %p205 = scmp.eq.s32.totalorder %s31, 1
      %p206 = por %p204, %p205
      %p207 = scmp.ne.s32.totalorder %s198, %s199
      %p208 = scmp.eq.s32.totalorder %s31, 0
      %p209 = por %p207, %p208
      %p210 = scmp.ne.s32.totalorder %s198, %s199
      %p211 = scmp.eq.s32.totalorder %s32, 1
      %p212 = por %p210, %p211
      %p214 = scmp.ne.s32.totalorder %s199, %s213
      %p215 = scmp.eq.s32.totalorder %s32, 0
      %p216 = por %p214, %p215
      %s218 = sadd.s32 %s217, 1
      %p221 = scmp.eq.s32.totalorder %s26, 1
      %p222 = scmp.ne.s32.totalorder %s217, %s219
      %p223 = scmp.eq.s32.totalorder %s26, 0
      %p224 = por %p222, %p223
      %p225 = scmp.ne.s32.totalorder %s217, %s219
      %p226 = scmp.eq.s32.totalorder %s31, 1
      %p227 = por %p225, %p226
      %p228 = scmp.ne.s32.totalorder %s219, %s220
      %p229 = scmp.eq.s32.totalorder %s31, 0
      %p230 = por %p228, %p229
      %p231 = scmp.ne.s32.totalorder %s219, %s220
      %p232 = scmp.eq.s32.totalorder %s32, 1
      %p233 = por %p231, %p232
      %p235 = scmp.ne.s32.totalorder %s220, %s234
      %p236 = scmp.eq.s32.totalorder %s32, 0
      %p237 = por %p235, %p236
      %s239 = sadd.s32 %s238, 1
      %p242 = scmp.eq.s32.totalorder %s26, 1
      %p243 = scmp.ne.s32.totalorder %s238, %s240
      %p244 = scmp.eq.s32.totalorder %s26, 0
      %p245 = por %p243, %p244
      %p246 = scmp.ne.s32.totalorder %s238, %s240
      %p247 = scmp.eq.s32.totalorder %s31, 1
      %p248 = por %p246, %p247
      %p249 = scmp.ne.s32.totalorder %s240, %s241
      %p250 = scmp.eq.s32.totalorder %s31, 0
      %p251 = por %p249, %p250
      %p252 = scmp.ne.s32.totalorder %s240, %s241
      %p253 = scmp.eq.s32.totalorder %s32, 1
      %p254 = por %p252, %p253
      %p256 = scmp.ne.s32.totalorder %s241, %s255
      %p257 = scmp.eq.s32.totalorder %s32, 0
      %p258 = por %p256, %p257
      %s259 = ssub.s32 %s26, %s33
      %p260 = scmp.eq.s32.totalorder %s259, 0
      %s262 = sadd.s32 %s261, 1
      %s263 = scalar_select %p260, %s261, %s262
      %p266 = pneg %p260
      %p267 = scmp.eq.s32.totalorder %s26, 1
      %p268 = por %p266, %p267
      %p269 = scmp.ne.s32.totalorder %s261, %s264
      %p270 = scmp.eq.s32.totalorder %s26, 0
      %p271 = por %p269, %p270
      %p272 = scmp.ne.s32.totalorder %s261, %s264
      %p273 = scmp.eq.s32.totalorder %s31, 1
      %p274 = por %p272, %p273
      %p275 = scmp.ne.s32.totalorder %s264, %s265
      %p276 = scmp.eq.s32.totalorder %s31, 0
      %p277 = por %p275, %p276
      %p278 = scmp.ne.s32.totalorder %s264, %s265
      %p279 = scmp.eq.s32.totalorder %s32, 1
      %p280 = por %p278, %p279
      %p282 = scmp.ne.s32.totalorder %s265, %s281
      %p283 = scmp.eq.s32.totalorder %s32, 0
      %p284 = por %p282, %p283
      %p285 = scmp.le.s32.totalorder 1, %s26
      %p286 = scmp.lt.s32.totalorder %s26, 3
      %p287 = pnand %p285, %p286
      %p288 = pneg %p287
      // Predicated region
      $region9: #{net_forward.1} parent=5 // pred_check
        _
      $region10: #{net_forward.1} parent=5 // pred_check_branch
        %290 = sbr.rel (%p287) target = $region12
      $region11: #{net_forward.1} parent=5 // pred_region
        %s291 = ssub.s32 %s26, 1
        // Predicated region
        $region13: #{net_forward.1} parent=11 // pred_check
          %p292 = pneg %p125
        $region14: #{net_forward.1} parent=11 // pred_check_branch
          %294 = sbr.rel (%p292) target = $region16
        $region15: #{net_forward.1} parent=11 // pred_region
          %296 = vsyncadd [#allocation6], 0
          %s297 = sshll.u32 %s3, 4
          %s298 = int_to_ptr.hbm [resolvable:$true] %s297
          %s299 = sshll.u32 [#allocation5], 4
          %s300 = int_to_ptr.vmem [resolvable:$true] %s299
          %305 = dma.hbm_to_vmem [thread:$0]  %s298, 2048, %s300, [#allocation6], 512, 512, 32
        $region16: #{net_forward.1} parent=11 // pred_fallthru
          _
        // Predicated region
        $region17: #{net_forward.1} parent=11 // pred_check
          %p306 = pneg %p146
        $region18: #{net_forward.1} parent=11 // pred_check_branch
          %308 = sbr.rel (%p306) target = $region20
        $region19: #{net_forward.1} parent=11 // pred_region
          %310 = vsyncadd [#allocation6], 0
          %s311 = sshll.u32 %s4, 4
          %s312 = int_to_ptr.hbm [resolvable:$true] %s311
          %s313 = sshll.u32 [#allocation7], 4
          %s314 = int_to_ptr.vmem [resolvable:$true] %s313
          %319 = dma.hbm_to_vmem [thread:$0]  %s312, 10240, %s314, [#allocation6], 512, 512, 32
        $region20: #{net_forward.1} parent=11 // pred_fallthru
          _
        // Predicated region
        $region21: #{net_forward.1} parent=11 // pred_check
          %p320 = pneg %p167
        $region22: #{net_forward.1} parent=11 // pred_check_branch
          %322 = sbr.rel (%p320) target = $region24
        $region23: #{net_forward.1} parent=11 // pred_region
          %324 = vsyncadd [#allocation9], 0
          %s326 = sshll.u32 %s5, 4
          %s327 = int_to_ptr.hbm [resolvable:$true] %s326
          %s328 = sshll.u32 [#allocation8], 4
          %s329 = int_to_ptr.vmem [resolvable:$true] %s328
          %331 = dma.hbm_to_vmem [thread:$0]  %s327, 64, %s329, [#allocation9]
        $region24: #{net_forward.1} parent=11 // pred_fallthru
          _
        // Predicated region
        $region25: #{net_forward.1} parent=11 // pred_check
          %p332 = pneg %p188
        $region26: #{net_forward.1} parent=11 // pred_check_branch
          %334 = sbr.rel (%p332) target = $region28
        $region27: #{net_forward.1} parent=11 // pred_region
          %336 = vsyncadd [#allocation9], 0
          %s337 = sshll.u32 %s6, 4
          %s338 = int_to_ptr.hbm [resolvable:$true] %s337
          %s339 = sshll.u32 [#allocation10], 4
          %s340 = int_to_ptr.vmem [resolvable:$true] %s339
          %345 = dma.hbm_to_vmem [thread:$0]  %s338, 8192, %s340, [#allocation9], 128, 128, 8
        $region28: #{net_forward.1} parent=11 // pred_fallthru
          _
        // Predicated region
        $region29: #{net_forward.1} parent=11 // pred_check
          %p346 = pneg %p209
        $region30: #{net_forward.1} parent=11 // pred_check_branch
          %348 = sbr.rel (%p346) target = $region32
        $region31: #{net_forward.1} parent=11 // pred_region
          %350 = vsyncadd [#allocation12], 0
          %s352 = sshll.u32 %s7, 4
          %s353 = int_to_ptr.hbm [resolvable:$true] %s352
          %s354 = sshll.u32 [#allocation11], 4
          %s355 = int_to_ptr.vmem [resolvable:$true] %s354
          %357 = dma.hbm_to_vmem [thread:$0]  %s353, 16, %s355, [#allocation12]
        $region32: #{net_forward.1} parent=11 // pred_fallthru
          _
        // Predicated region
        $region33: #{net_forward.1} parent=11 // pred_check
          %p358 = pneg %p230
        $region34: #{net_forward.1} parent=11 // pred_check_branch
          %360 = sbr.rel (%p358) target = $region36
        $region35: #{net_forward.1} parent=11 // pred_region
          %362 = vsyncadd [#allocation12], 0
          %s363 = sshll.u32 %s8, 4
          %s364 = int_to_ptr.hbm [resolvable:$true] %s363
          %s365 = sshll.u32 [#allocation13], 4
          %s366 = int_to_ptr.vmem [resolvable:$true] %s365
          %371 = dma.hbm_to_vmem [thread:$0]  %s364, 79872, %s366, [#allocation12], 128, 128, 8
        $region36: #{net_forward.1} parent=11 // pred_fallthru
          _
        // Predicated region
        $region37: #{net_forward.1} parent=11 // pred_check
          %p372 = pneg %p251
        $region38: #{net_forward.1} parent=11 // pred_check_branch
          %374 = sbr.rel (%p372) target = $region40
        $region39: #{net_forward.1} parent=11 // pred_region
          %376 = vsyncadd [#allocation15], 0
          %s377 = sshll.u32 %s9, 4
          %s378 = int_to_ptr.hbm [resolvable:$true] %s377
          %s379 = sshll.u32 [#allocation14], 4
          %s380 = int_to_ptr.vmem [resolvable:$true] %s379
          %385 = dma.hbm_to_vmem [thread:$0]  %s378, 416, %s380, [#allocation15], 16, 16, 1
        $region40: #{net_forward.1} parent=11 // pred_fallthru
          _
      $region12: #{net_forward.1} parent=5 // pred_fallthru
        _
      %p386 = scmp.lt.s32.totalorder %s26, 2
      // Predicated region
      $region41: #{net_forward.1} parent=5 // pred_check
        %p387 = pneg %p386
      $region42: #{net_forward.1} parent=5 // pred_check_branch
        %389 = sbr.rel (%p387) target = $region44
      $region43: #{net_forward.1} parent=5 // pred_region
        // Predicated region
        $region45: #{net_forward.1} parent=43 // pred_check
          %p390 = pneg %p46
        $region46: #{net_forward.1} parent=43 // pred_check_branch
          %392 = sbr.rel (%p390) target = $region48
        $region47: #{net_forward.1} parent=43 // pred_region
          %p393 = scmp.lt.s32.totalorder %s26, 1
          %s394 = scalar_select %p393, %s26, 1
          %s395 = smul.addr %s394, 4
          %s396 = smul.addr %s395, 8
          %s397 = scalar_lea.vmem %s0, %s396
        $region48: #{net_forward.1} parent=43 // pred_fallthru
          _
        // Predicated region
        $region49: #{net_forward.1} parent=43 // pred_check
          %p398 = pneg %p72
        $region50: #{net_forward.1} parent=43 // pred_check_branch
          %400 = sbr.rel (%p398) target = $region52
        $region51: #{net_forward.1} parent=43 // pred_region
          %s401 = sand.u32 %s62, 1
          %s402 = scalar_lea.sflag [#allocation3], %s401
          %s403 = sand.u32 %s62, 1
          %s404 = smul.addr %s403, 32
          %s405 = scalar_lea.vmem [#allocation2], %s404
          %407 = vsyncadd %s402, 0
          %s408 = smul.addr %s26, 4
          %s409 = smul.addr %s408, 8
          %s410 = scalar_lea.hbm %s1, %s409
          %s411 = sshll.u32 %s410, 4
          %s412 = int_to_ptr.hbm [resolvable:$true] %s411
          %s413 = sshll.u32 %s405, 4
          %s414 = int_to_ptr.vmem [resolvable:$true] %s413
          %419 = dma.hbm_to_vmem [thread:$0]  %s412, 512, %s414, %s402, 128, 128, 8
        $region52: #{net_forward.1} parent=43 // pred_fallthru
          _
        // Predicated region
        $region53: #{net_forward.1} parent=43 // pred_check
          %p420 = pneg %p98
        $region54: #{net_forward.1} parent=43 // pred_check_branch
          %422 = sbr.rel (%p420) target = $region56
        $region55: #{net_forward.1} parent=43 // pred_region
          %p423 = scmp.lt.s32.totalorder %s26, 1
          %s424 = scalar_select %p423, %s26, 1
          %s425 = smul.addr %s424, 8
          %s426 = smul.addr %s425, 8
          %s427 = scalar_lea.vmem %s2, %s426
        $region56: #{net_forward.1} parent=43 // pred_fallthru
          _
      $region44: #{net_forward.1} parent=5 // pred_fallthru
        _
      %p428 = scmp.le.s32.totalorder 1, %s26
      %p429 = scmp.lt.s32.totalorder %s26, 3
      %p430 = pnand %p428, %p429
      %p431 = pneg %p430
      // Predicated region
      $region57: #{net_forward.1} parent=5 // pred_check
        _
      $region58: #{net_forward.1} parent=5 // pred_check_branch
        %433 = sbr.rel (%p430) target = $region60
      $region59: #{net_forward.1} parent=5 // pred_region
        %s434 = ssub.s32 %s26, 1
        %s435 = sand.u32 %s65, 1
        %s436 = scalar_lea.sflag [#allocation3], %s435
        %s437 = sand.u32 %s65, 1
        %s438 = smul.addr %s437, 32
        %s439 = scalar_lea.vmem [#allocation2], %s438
        // Predicated region
        $region61: #{net_forward.1} parent=59 // pred_check
          %p440 = pneg %p78
        $region62: #{net_forward.1} parent=59 // pred_check_branch
          %442 = sbr.rel (%p440) target = $region64
        $region63: #{net_forward.1} parent=59 // pred_region
          %444 = dma.done %s436, 512
        $region64: #{net_forward.1} parent=59 // pred_fallthru
          _
        // Predicated region
        $region65: #{net_forward.1} parent=59 // pred_check
          %p445 = pneg %p125
        $region66: #{net_forward.1} parent=59 // pred_check_branch
          %447 = sbr.rel (%p445) target = $region68
        $region67: #{net_forward.1} parent=59 // pred_region
          %449 = dma.done [#allocation6], 2048
        $region68: #{net_forward.1} parent=59 // pred_fallthru
          _
        // Predicated region
        $region69: #{net_forward.1} parent=59 // pred_check
          %p450 = pneg %p146
        $region70: #{net_forward.1} parent=59 // pred_check_branch
          %452 = sbr.rel (%p450) target = $region72
        $region71: #{net_forward.1} parent=59 // pred_region
          %454 = dma.done [#allocation6], 10240
        $region72: #{net_forward.1} parent=59 // pred_fallthru
          _
        // Predicated region
        $region73: #{net_forward.1} parent=59 // pred_check
          %p455 = pneg %p167
        $region74: #{net_forward.1} parent=59 // pred_check_branch
          %457 = sbr.rel (%p455) target = $region76
        $region75: #{net_forward.1} parent=59 // pred_region
          %459 = dma.done [#allocation9], 64
        $region76: #{net_forward.1} parent=59 // pred_fallthru
          _
        // Predicated region
        $region77: #{net_forward.1} parent=59 // pred_check
          %p460 = pneg %p188
        $region78: #{net_forward.1} parent=59 // pred_check_branch
          %462 = sbr.rel (%p460) target = $region80
        $region79: #{net_forward.1} parent=59 // pred_region
          %464 = dma.done [#allocation9], 8192
        $region80: #{net_forward.1} parent=59 // pred_fallthru
          _
        // Predicated region
        $region81: #{net_forward.1} parent=59 // pred_check
          %p465 = pneg %p209
        $region82: #{net_forward.1} parent=59 // pred_check_branch
          %467 = sbr.rel (%p465) target = $region84
        $region83: #{net_forward.1} parent=59 // pred_region
          %469 = dma.done [#allocation12], 16
        $region84: #{net_forward.1} parent=59 // pred_fallthru
          _
        // Predicated region
        $region85: #{net_forward.1} parent=59 // pred_check
          %p470 = pneg %p230
        $region86: #{net_forward.1} parent=59 // pred_check_branch
          %472 = sbr.rel (%p470) target = $region88
        $region87: #{net_forward.1} parent=59 // pred_region
          %474 = dma.done [#allocation12], 79872
        $region88: #{net_forward.1} parent=59 // pred_fallthru
          _
        // Predicated region
        $region89: #{net_forward.1} parent=59 // pred_check
          %p475 = pneg %p251
        $region90: #{net_forward.1} parent=59 // pred_check_branch
          %477 = sbr.rel (%p475) target = $region92
        $region91: #{net_forward.1} parent=59 // pred_region
          %479 = dma.done [#allocation15], 416
        $region92: #{net_forward.1} parent=59 // pred_fallthru
          _
        %p480 = scmp.lt.s32.totalorder %s31, 1
        %s481 = scalar_select %p480, %s31, 1
        %s482 = smul.addr %s481, 4
        %s483 = smul.addr %s482, 8
        %s484 = scalar_lea.vmem %s0, %s483
        %p485 = pneg %p52
        %p486 = pneg %p49
        %s487 = sand.u32 %s65, 1
        %s488 = scalar_lea.sflag [#allocation3], %s487
        %s489 = sand.u32 %s65, 1
        %s490 = smul.addr %s489, 32
        %s491 = scalar_lea.vmem [#allocation2], %s490
        %p492 = pneg %p78
        %p493 = pneg %p75
        %p494 = scmp.lt.s32.totalorder %s31, 1
        %s495 = scalar_select %p494, %s31, 1
        %s496 = smul.addr %s495, 8
        %s497 = smul.addr %s496, 8
        %s498 = scalar_lea.vmem %s2, %s497
        %p499 = pneg %p104
        %p500 = pneg %p101
        %p501 = pneg %p125
        %p502 = pneg %p122
        %p503 = pneg %p146
        %p504 = pneg %p143
        %p505 = pneg %p167
        %p506 = pneg %p164
        %p507 = pneg %p188
        %p508 = pneg %p185
        %p509 = pneg %p209
        %p510 = pneg %p206
        %p511 = pneg %p230
        %p512 = pneg %p227
        %p513 = pneg %p251
        %p514 = pneg %p248
        %p515 = pneg %p277
        %p516 = pneg %p274
        %s517 = sand.u32 %s264, 1
        %s518 = scalar_lea.sflag [#allocation4], %s517
        %s519 = sand.u32 %s264, 1
        %s520 = scalar_lea.vmem [#allocation16], %s519
        %p521 = scmp.lt.s32.totalorder %s31, 1
        %s522 = scalar_select %p521, %s31, 1
        %s523 = smul.addr %s522, 4
        %s524 = smul.addr %s523, 8
        %s525 = scalar_lea.vmem %s0, %s524
        %p526 = scmp.lt.s32.totalorder %s31, 1
        %s527 = scalar_select %p526, %s31, 1
        %s528 = smul.addr %s527, 8
        %s529 = smul.addr %s528, 8
        %s530 = scalar_lea.vmem %s2, %s529
        %v531 = vld [vmem:[%s525] sm:$0xff]
        %v532 = vld [vmem:[%s525 + $0x8] sm:$0xff]
        %v533 = vld [vmem:[%s525 + $0x10] sm:$0xff]
        %v534 = vld [vmem:[%s525 + $0x18] sm:$0xff]
        %v535 = vld [vmem:[%s439] sm:$0xff]
        %v536 = vld [vmem:[%s439 + $0x8] sm:$0xff]
        %v537 = vld [vmem:[%s439 + $0x10] sm:$0xff]
        %v538 = vld [vmem:[%s439 + $0x18] sm:$0xff]
        %v539 = vmul.f32 %v531, %v531
        %v540 = vmul.f32 %v532, %v532
        %v541 = vmul.f32 %v533, %v533
        %v542 = vmul.f32 %v534, %v534
        %vm543 = vcmask 23552
        %v544 = vsel %vm543, %v539, 0.0
        %545 = vadd.xlane.f32.xlu0 %v544
        %v546 = vpop.xlane.xlu0 %545
        %v547 = vsel %vm543, %v540, 0.0
        %548 = vadd.xlane.f32.xlu0 %v547
        %v549 = vpop.xlane.xlu0 %548
        %v550 = vsel %vm543, %v541, 0.0
        %551 = vadd.xlane.f32.xlu0 %v550
        %v552 = vpop.xlane.xlu0 %551
        %v553 = vsel %vm543, %v542, 0.0
        %554 = vadd.xlane.f32.xlu0 %v553
        %v555 = vpop.xlane.xlu0 %554
        %v556 = vrsqrt.pop %v546
        %v557 = vmul.f32 %v556, %v546
        %v558 = vmul.f32 %v557, %v556
        %v559 = vmul.f32 0.5, %v558
        %v560 = vsub.f32 1.5, %v559
        %v561 = vmul.f32 %v556, %v560
        %v562 = vmul.f32 %v546, %v561
        %vm563 = vcmp.eq.f32.partialorder %v546, inf
        %v564 = vsel %vm563, %v546, %v562
        %vm565 = vcmp.eq.f32.partialorder %v546, 0.0
        %v566 = vand.u32 %v546, 2147483648
        %v567 = vsel %vm565, %v566, %v564
        %v568 = vrsqrt.pop %v549
        %v569 = vmul.f32 %v568, %v549
        %v570 = vmul.f32 %v569, %v568
        %v571 = vmul.f32 0.5, %v570
        %v572 = vsub.f32 1.5, %v571
        %v573 = vmul.f32 %v568, %v572
        %v574 = vmul.f32 %v549, %v573
        %vm575 = vcmp.eq.f32.partialorder %v549, inf
        %v576 = vsel %vm575, %v549, %v574
        %vm577 = vcmp.eq.f32.partialorder %v549, 0.0
        %v578 = vand.u32 %v549, 2147483648
        %v579 = vsel %vm577, %v578, %v576
        %v580 = vrsqrt.pop %v552
        %v581 = vmul.f32 %v580, %v552
        %v582 = vmul.f32 %v581, %v580
        %v583 = vmul.f32 0.5, %v582
        %v584 = vsub.f32 1.5, %v583
        %v585 = vmul.f32 %v580, %v584
        %v586 = vmul.f32 %v552, %v585
        %vm587 = vcmp.eq.f32.partialorder %v552, inf
        %v588 = vsel %vm587, %v552, %v586
        %vm589 = vcmp.eq.f32.partialorder %v552, 0.0
        %v590 = vand.u32 %v552, 2147483648
        %v591 = vsel %vm589, %v590, %v588
        %v592 = vrsqrt.pop %v555
        %v593 = vmul.f32 %v592, %v555
        %v594 = vmul.f32 %v593, %v592
        %v595 = vmul.f32 0.5, %v594
        %v596 = vsub.f32 1.5, %v595
        %v597 = vmul.f32 %v592, %v596
        %v598 = vmul.f32 %v555, %v597
        %vm599 = vcmp.eq.f32.partialorder %v555, inf
        %v600 = vsel %vm599, %v555, %v598
        %vm601 = vcmp.eq.f32.partialorder %v555, 0.0
        %v602 = vand.u32 %v555, 2147483648
        %v603 = vsel %vm601, %v602, %v600
        %v604 = vmax.f32 %v567, 1e-08
        %v605 = vmax.f32 %v579, 1e-08
        %v606 = vmax.f32 %v591, 1e-08
        %v607 = vmax.f32 %v603, 1e-08
        %v608 = vrcp.pop %v604
        %v609 = vmul.f32 %v604, %v608
        %v610 = vsub.f32 1.0, %v609
        %v611 = vmul.f32 %v608, %v610
        %v612 = vadd.f32 %v608, %v611
        %vm613 = vweird.f32 %v604
        %vm614 = vweird.f32 %v608
        %vm615 = vmor %vm613, %vm614
        %v616 = vsel %vm615, %v608, %v612
        %v617 = vand.u32 2147483647, %v604
        %vm618 = vcmp.eq.f32.partialorder %v617, 8.507059e+37
        %v619 = vand.u32 %v604, 2147483648
        %v620 = vor.u32 1.1754944e-38, %v619
        %v621 = vsel %vm618, %v620, %v616
        %v622 = vmul.f32 %v531, %v621
        %v623 = vrcp.pop %v605
        %v624 = vmul.f32 %v605, %v623
        %v625 = vsub.f32 1.0, %v624
        %v626 = vmul.f32 %v623, %v625
        %v627 = vadd.f32 %v623, %v626
        %vm628 = vweird.f32 %v605
        %vm629 = vweird.f32 %v623
        %vm630 = vmor %vm628, %vm629
        %v631 = vsel %vm630, %v623, %v627
        %v632 = vand.u32 2147483647, %v605
        %vm633 = vcmp.eq.f32.partialorder %v632, 8.507059e+37
        %v634 = vand.u32 %v605, 2147483648
        %v635 = vor.u32 1.1754944e-38, %v634
        %v636 = vsel %vm633, %v635, %v631
        %v637 = vmul.f32 %v532, %v636
        %v638 = vrcp.pop %v606
        %v639 = vmul.f32 %v606, %v638
        %v640 = vsub.f32 1.0, %v639
        %v641 = vmul.f32 %v638, %v640
        %v642 = vadd.f32 %v638, %v641
        %vm643 = vweird.f32 %v606
        %vm644 = vweird.f32 %v638
        %vm645 = vmor %vm643, %vm644
        %v646 = vsel %vm645, %v638, %v642
        %v647 = vand.u32 2147483647, %v606
        %vm648 = vcmp.eq.f32.partialorder %v647, 8.507059e+37
        %v649 = vand.u32 %v606, 2147483648
        %v650 = vor.u32 1.1754944e-38, %v649
        %v651 = vsel %vm648, %v650, %v646
        %v652 = vmul.f32 %v533, %v651
        %v653 = vrcp.pop %v607
        %v654 = vmul.f32 %v607, %v653
        %v655 = vsub.f32 1.0, %v654
        %v656 = vmul.f32 %v653, %v655
        %v657 = vadd.f32 %v653, %v656
        %vm658 = vweird.f32 %v607
        %vm659 = vweird.f32 %v653
        %vm660 = vmor %vm658, %vm659
        %v661 = vsel %vm660, %v653, %v657
        %v662 = vand.u32 2147483647, %v607
        %vm663 = vcmp.eq.f32.partialorder %v662, 8.507059e+37
        %v664 = vand.u32 %v607, 2147483648
        %v665 = vor.u32 1.1754944e-38, %v664
        %v666 = vsel %vm663, %v665, %v661
        %v667 = vmul.f32 %v534, %v666
        %v669 = vsel %vm543, %v622, 0
        %v672 = vsel %vm543, %v637, 0
        %v675 = vsel %vm543, %v652, 0
        %v678 = vsel %vm543, %v667, 0
        %680 = vmatpush.xpose.msra.mxu0 0.0
        %681 = vmatpush.xpose.msra.mxu0 0.0
        %682 = vmatpush.xpose.msra.mxu0 0.0
        %683 = vmatpush.xpose.msra.mxu0 0.0
        %684 = vmatpush.xpose.msra.mxu0 0.0
        %685 = vmatpush.xpose.msra.mxu0 0.0
        %686 = vmatpush.xpose.msra.mxu0 0.0
        %687 = vmatpush.xpose.msra.mxu0 0.0
        %688 = vmatpush.xpose.msra.mxu0 0.0
        %689 = vmatpush.xpose.msra.mxu0 0.0
        %690 = vmatpush.xpose.msra.mxu0 0.0
        %691 = vmatpush.xpose.msra.mxu0 0.0
        %692 = vmatpush.xpose.msra.mxu0 %v678
        %693 = vmatpush.xpose.msra.mxu0 %v675
        %694 = vmatpush.xpose.msra.mxu0 %v672
        %695 = vmatpush.xpose.msra.mxu0 %v669
        %696 = vmatmul.f32.gmra.mxu0 %v669
        %v697 = vpop.f32.mrf.mxu0
        %v698 = vadd.f32 0.0, %v697
        %699 = vmatmul.f32.gmra.mxu0 %v672
        %v700 = vpop.f32.mrf.mxu0
        %v701 = vadd.f32 0.0, %v700
        %702 = vmatmul.f32.gmra.mxu0 %v675
        %v703 = vpop.f32.mrf.mxu0
        %v704 = vadd.f32 0.0, %v703
        %705 = vmatmul.f32.gmra.mxu0 %v678
        %v706 = vpop.f32.mrf.mxu0
        %v707 = vadd.f32 0.0, %v706
        %708 = vdwg.mxu0
        %v709 = vld [vmem:[#allocation5] sm:$0xff]
        %v710 = vld [vmem:[#allocation5 + $0x8] sm:$0xff]
        %v711 = vld [vmem:[#allocation5 + $0x10] sm:$0xff]
        %v712 = vld [vmem:[#allocation5 + $0x18] sm:$0xff]
        %v713 = vld [vmem:[#allocation5 + $0x20] sm:$0xff]
        %v714 = vld [vmem:[#allocation5 + $0x28] sm:$0xff]
        %v715 = vld [vmem:[#allocation5 + $0x30] sm:$0xff]
        %v716 = vld [vmem:[#allocation5 + $0x38] sm:$0xff]
        %v717 = vld [vmem:[#allocation5 + $0x40] sm:$0xff]
        %v718 = vld [vmem:[#allocation5 + $0x48] sm:$0xff]
        %v719 = vld [vmem:[#allocation5 + $0x50] sm:$0xff]
        %v720 = vld [vmem:[#allocation5 + $0x58] sm:$0xff]
        %v721 = vld [vmem:[#allocation5 + $0x60] sm:$0xff]
        %v722 = vld [vmem:[#allocation5 + $0x68] sm:$0xff]
        %v723 = vld [vmem:[#allocation5 + $0x70] sm:$0xff]
        %v724 = vld [vmem:[#allocation5 + $0x78] sm:$0xff]
        %v725 = vld [vmem:[%s530] sm:$0xff]
        %v726 = vld [vmem:[%s530 + $0x8] sm:$0xff]
        %v727 = vld [vmem:[%s530 + $0x10] sm:$0xff]
        %v728 = vld [vmem:[%s530 + $0x18] sm:$0xff]
        %v729 = vld [vmem:[%s530 + $0x20] sm:$0xff]
        %v730 = vld [vmem:[%s530 + $0x28] sm:$0xff]
        %v731 = vld [vmem:[%s530 + $0x30] sm:$0xff]
        %v732 = vld [vmem:[%s530 + $0x38] sm:$0xff]
        %v733 = vld [vmem:[#allocation7] sm:$0xff]
        %v734 = vld [vmem:[#allocation7 + $0x8] sm:$0xff]
        %v735 = vld [vmem:[#allocation7 + $0x10] sm:$0xff]
        %v736 = vld [vmem:[#allocation7 + $0x18] sm:$0xff]
        %v737 = vld [vmem:[#allocation7 + $0x20] sm:$0xff]
        %v738 = vld [vmem:[#allocation7 + $0x28] sm:$0xff]
        %v739 = vld [vmem:[#allocation7 + $0x30] sm:$0xff]
        %v740 = vld [vmem:[#allocation7 + $0x38] sm:$0xff]
        %v741 = vld [vmem:[#allocation7 + $0x40] sm:$0xff]
        %v742 = vld [vmem:[#allocation7 + $0x48] sm:$0xff]
        %v743 = vld [vmem:[#allocation7 + $0x50] sm:$0xff]
        %v744 = vld [vmem:[#allocation7 + $0x58] sm:$0xff]
        %v745 = vld [vmem:[#allocation7 + $0x60] sm:$0xff]
        %v746 = vld [vmem:[#allocation7 + $0x68] sm:$0xff]
        %v747 = vld [vmem:[#allocation7 + $0x70] sm:$0xff]
        %v748 = vld [vmem:[#allocation7 + $0x78] sm:$0xff]
        %v749 = vld [vmem:[#allocation7 + $0x80] sm:$0xff]
        %v750 = vld [vmem:[#allocation7 + $0x88] sm:$0xff]
        %v751 = vld [vmem:[#allocation7 + $0x90] sm:$0xff]
        %v752 = vld [vmem:[#allocation7 + $0x98] sm:$0xff]
        %v753 = vld [vmem:[#allocation7 + $0xa0] sm:$0xff]
        %v754 = vld [vmem:[#allocation7 + $0xa8] sm:$0xff]
        %v755 = vld [vmem:[#allocation7 + $0xb0] sm:$0xff]
        %v756 = vld [vmem:[#allocation7 + $0xb8] sm:$0xff]
        %v757 = vld [vmem:[#allocation7 + $0xc0] sm:$0xff]
        %v758 = vld [vmem:[#allocation7 + $0xc8] sm:$0xff]
        %v759 = vld [vmem:[#allocation7 + $0xd0] sm:$0xff]
        %v760 = vld [vmem:[#allocation7 + $0xd8] sm:$0xff]
        %v761 = vld [vmem:[#allocation7 + $0xe0] sm:$0xff]
        %v762 = vld [vmem:[#allocation7 + $0xe8] sm:$0xff]
        %v763 = vld [vmem:[#allocation7 + $0xf0] sm:$0xff]
        %v764 = vld [vmem:[#allocation7 + $0xf8] sm:$0xff]
        %v765 = vld [vmem:[#allocation7 + $0x100] sm:$0xff]
        %v766 = vld [vmem:[#allocation7 + $0x108] sm:$0xff]
        %v767 = vld [vmem:[#allocation7 + $0x110] sm:$0xff]
        %v768 = vld [vmem:[#allocation7 + $0x118] sm:$0xff]
        %v769 = vld [vmem:[#allocation7 + $0x120] sm:$0xff]
        %v770 = vld [vmem:[#allocation7 + $0x128] sm:$0xff]
        %v771 = vld [vmem:[#allocation7 + $0x130] sm:$0xff]
        %v772 = vld [vmem:[#allocation7 + $0x138] sm:$0xff]
        %v773 = vld [vmem:[#allocation7 + $0x140] sm:$0xff]
        %v774 = vld [vmem:[#allocation7 + $0x148] sm:$0xff]
        %v775 = vld [vmem:[#allocation7 + $0x150] sm:$0xff]
        %v776 = vld [vmem:[#allocation7 + $0x158] sm:$0xff]
        %v777 = vld [vmem:[#allocation7 + $0x160] sm:$0xff]
        %v778 = vld [vmem:[#allocation7 + $0x168] sm:$0xff]
        %v779 = vld [vmem:[#allocation7 + $0x170] sm:$0xff]
        %v780 = vld [vmem:[#allocation7 + $0x178] sm:$0xff]
        %v781 = vld [vmem:[#allocation7 + $0x180] sm:$0xff]
        %v782 = vld [vmem:[#allocation7 + $0x188] sm:$0xff]
        %v783 = vld [vmem:[#allocation7 + $0x190] sm:$0xff]
        %v784 = vld [vmem:[#allocation7 + $0x198] sm:$0xff]
        %v785 = vld [vmem:[#allocation7 + $0x1a0] sm:$0xff]
        %v786 = vld [vmem:[#allocation7 + $0x1a8] sm:$0xff]
        %v787 = vld [vmem:[#allocation7 + $0x1b0] sm:$0xff]
        %v788 = vld [vmem:[#allocation7 + $0x1b8] sm:$0xff]
        %v789 = vld [vmem:[#allocation7 + $0x1c0] sm:$0xff]
        %v790 = vld [vmem:[#allocation7 + $0x1c8] sm:$0xff]
        %v791 = vld [vmem:[#allocation7 + $0x1d0] sm:$0xff]
        %v792 = vld [vmem:[#allocation7 + $0x1d8] sm:$0xff]
        %v793 = vld [vmem:[#allocation7 + $0x1e0] sm:$0xff]
        %v794 = vld [vmem:[#allocation7 + $0x1e8] sm:$0xff]
        %v795 = vld [vmem:[#allocation7 + $0x1f0] sm:$0xff]
        %v796 = vld [vmem:[#allocation7 + $0x1f8] sm:$0xff]
        %v797 = vld [vmem:[#allocation7 + $0x200] sm:$0xff]
        %v798 = vld [vmem:[#allocation7 + $0x208] sm:$0xff]
        %v799 = vld [vmem:[#allocation7 + $0x210] sm:$0xff]
        %v800 = vld [vmem:[#allocation7 + $0x218] sm:$0xff]
        %v801 = vld [vmem:[#allocation7 + $0x220] sm:$0xff]
        %v802 = vld [vmem:[#allocation7 + $0x228] sm:$0xff]
        %v803 = vld [vmem:[#allocation7 + $0x230] sm:$0xff]
        %v804 = vld [vmem:[#allocation7 + $0x238] sm:$0xff]
        %v805 = vld [vmem:[#allocation7 + $0x240] sm:$0xff]
        %v806 = vld [vmem:[#allocation7 + $0x248] sm:$0xff]
        %v807 = vld [vmem:[#allocation7 + $0x250] sm:$0xff]
        %v808 = vld [vmem:[#allocation7 + $0x258] sm:$0xff]
        %v809 = vld [vmem:[#allocation7 + $0x260] sm:$0xff]
        %v810 = vld [vmem:[#allocation7 + $0x268] sm:$0xff]
        %v811 = vld [vmem:[#allocation7 + $0x270] sm:$0xff]
        %v812 = vld [vmem:[#allocation7 + $0x278] sm:$0xff]
        %vm813 = vcmask 261120
        %v815 = vsel %vm813, %v726, 0
        %v818 = vsel %vm813, %v728, 0
        %v821 = vsel %vm813, %v730, 0
        %v824 = vsel %vm813, %v732, 0
        %826 = vmatpush.msra.mxu0 %v793
        %827 = vmatpush.msra.mxu0 %v789
        %828 = vmatpush.msra.mxu0 %v785
        %829 = vmatpush.msra.mxu0 %v781
        %830 = vmatpush.msra.mxu0 %v777
        %831 = vmatpush.msra.mxu0 %v773
        %832 = vmatpush.msra.mxu0 %v769
        %833 = vmatpush.msra.mxu0 %v765
        %834 = vmatpush.msra.mxu0 %v761
        %835 = vmatpush.msra.mxu0 %v757
        %836 = vmatpush.msra.mxu0 %v753
        %837 = vmatpush.msra.mxu0 %v749
        %838 = vmatpush.msra.mxu0 %v745
        %839 = vmatpush.msra.mxu0 %v741
        %840 = vmatpush.msra.mxu0 %v737
        %841 = vmatpush.msra.mxu0 %v733
        %842 = vmatmul.f32.gmra.mxu0 %v725
        %v843 = vpop.f32.mrf.mxu0
        %v844 = vadd.f32 0.0, %v843
        %845 = vmatmul.f32.gmra.mxu0 %v727
        %v846 = vpop.f32.mrf.mxu0
        %v847 = vadd.f32 0.0, %v846
        %848 = vmatmul.f32.gmra.mxu0 %v729
        %v849 = vpop.f32.mrf.mxu0
        %v850 = vadd.f32 0.0, %v849
        %851 = vmatmul.f32.gmra.mxu0 %v731
        %v852 = vpop.f32.mrf.mxu0
        %v853 = vadd.f32 0.0, %v852
        %854 = vdwg.mxu0
        %855 = vmatpush.msra.mxu0 0.0
        %856 = vmatpush.msra.mxu0 0.0
        %857 = vmatpush.msra.mxu0 0.0
        %858 = vmatpush.msra.mxu0 0.0
        %859 = vmatpush.msra.mxu0 0.0
        %860 = vmatpush.msra.mxu0 0.0
        %861 = vmatpush.msra.mxu0 0.0
        %862 = vmatpush.msra.mxu0 0.0
        %863 = vmatpush.msra.mxu0 0.0
        %864 = vmatpush.msra.mxu0 0.0
        %865 = vmatpush.msra.mxu0 0.0
        %866 = vmatpush.msra.mxu0 0.0
        %867 = vmatpush.msra.mxu0 %v809
        %868 = vmatpush.msra.mxu0 %v805
        %869 = vmatpush.msra.mxu0 %v801
        %870 = vmatpush.msra.mxu0 %v797
        %871 = vmatmul.f32.gmra.mxu0 %v815
        %v872 = vpop.f32.mrf.mxu0
        %v873 = vadd.f32 %v844, %v872
        %874 = vmatmul.f32.gmra.mxu0 %v818
        %v875 = vpop.f32.mrf.mxu0
        %v876 = vadd.f32 %v847, %v875
        %877 = vmatmul.f32.gmra.mxu0 %v821
        %v878 = vpop.f32.mrf.mxu0
        %v879 = vadd.f32 %v850, %v878
        %880 = vmatmul.f32.gmra.mxu0 %v824
        %v881 = vpop.f32.mrf.mxu0
        %v882 = vadd.f32 %v853, %v881
        %883 = vdwg.mxu0
        %884 = vmatpush.msra.mxu0 %v794
        %885 = vmatpush.msra.mxu0 %v790
        %886 = vmatpush.msra.mxu0 %v786
        %887 = vmatpush.msra.mxu0 %v782
        %888 = vmatpush.msra.mxu0 %v778
        %889 = vmatpush.msra.mxu0 %v774
        %890 = vmatpush.msra.mxu0 %v770
        %891 = vmatpush.msra.mxu0 %v766
        %892 = vmatpush.msra.mxu0 %v762
        %893 = vmatpush.msra.mxu0 %v758
        %894 = vmatpush.msra.mxu0 %v754
        %895 = vmatpush.msra.mxu0 %v750
        %896 = vmatpush.msra.mxu0 %v746
        %897 = vmatpush.msra.mxu0 %v742
        %898 = vmatpush.msra.mxu0 %v738
        %899 = vmatpush.msra.mxu0 %v734
        %900 = vmatmul.f32.gmra.mxu0 %v725
        %v901 = vpop.f32.mrf.mxu0
        %v902 = vadd.f32 0.0, %v901
        %903 = vmatmul.f32.gmra.mxu0 %v727
        %v904 = vpop.f32.mrf.mxu0
        %v905 = vadd.f32 0.0, %v904
        %906 = vmatmul.f32.gmra.mxu0 %v729
        %v907 = vpop.f32.mrf.mxu0
        %v908 = vadd.f32 0.0, %v907
        %909 = vmatmul.f32.gmra.mxu0 %v731
        %v910 = vpop.f32.mrf.mxu0
        %v911 = vadd.f32 0.0, %v910
        %912 = vdwg.mxu0
        %913 = vmatpush.msra.mxu0 0.0
        %914 = vmatpush.msra.mxu0 0.0
        %915 = vmatpush.msra.mxu0 0.0
        %916 = vmatpush.msra.mxu0 0.0
        %917 = vmatpush.msra.mxu0 0.0
        %918 = vmatpush.msra.mxu0 0.0
        %919 = vmatpush.msra.mxu0 0.0
        %920 = vmatpush.msra.mxu0 0.0
        %921 = vmatpush.msra.mxu0 0.0
        %922 = vmatpush.msra.mxu0 0.0
        %923 = vmatpush.msra.mxu0 0.0
        %924 = vmatpush.msra.mxu0 0.0
        %925 = vmatpush.msra.mxu0 %v810
        %926 = vmatpush.msra.mxu0 %v806
        %927 = vmatpush.msra.mxu0 %v802
        %928 = vmatpush.msra.mxu0 %v798
        %929 = vmatmul.f32.gmra.mxu0 %v815
        %v930 = vpop.f32.mrf.mxu0
        %v931 = vadd.f32 %v902, %v930
        %932 = vmatmul.f32.gmra.mxu0 %v818
        %v933 = vpop.f32.mrf.mxu0
        %v934 = vadd.f32 %v905, %v933
        %935 = vmatmul.f32.gmra.mxu0 %v821
        %v936 = vpop.f32.mrf.mxu0
        %v937 = vadd.f32 %v908, %v936
        %938 = vmatmul.f32.gmra.mxu0 %v824
        %v939 = vpop.f32.mrf.mxu0
        %v940 = vadd.f32 %v911, %v939
        %941 = vdwg.mxu0
        %942 = vmatpush.msra.mxu0 %v795
        %943 = vmatpush.msra.mxu0 %v791
        %944 = vmatpush.msra.mxu0 %v787
        %945 = vmatpush.msra.mxu0 %v783
        %946 = vmatpush.msra.mxu0 %v779
        %947 = vmatpush.msra.mxu0 %v775
        %948 = vmatpush.msra.mxu0 %v771
        %949 = vmatpush.msra.mxu0 %v767
        %950 = vmatpush.msra.mxu0 %v763
        %951 = vmatpush.msra.mxu0 %v759
        %952 = vmatpush.msra.mxu0 %v755
        %953 = vmatpush.msra.mxu0 %v751
        %954 = vmatpush.msra.mxu0 %v747
        %955 = vmatpush.msra.mxu0 %v743
        %956 = vmatpush.msra.mxu0 %v739
        %957 = vmatpush.msra.mxu0 %v735
        %958 = vmatmul.f32.gmra.mxu0 %v725
        %v959 = vpop.f32.mrf.mxu0
        %v960 = vadd.f32 0.0, %v959
        %961 = vmatmul.f32.gmra.mxu0 %v727
        %v962 = vpop.f32.mrf.mxu0
        %v963 = vadd.f32 0.0, %v962
        %964 = vmatmul.f32.gmra.mxu0 %v729
        %v965 = vpop.f32.mrf.mxu0
        %v966 = vadd.f32 0.0, %v965
        %967 = vmatmul.f32.gmra.mxu0 %v731
        %v968 = vpop.f32.mrf.mxu0
        %v969 = vadd.f32 0.0, %v968
        %970 = vdwg.mxu0
        %971 = vmatpush.msra.mxu0 0.0
        %972 = vmatpush.msra.mxu0 0.0
        %973 = vmatpush.msra.mxu0 0.0
        %974 = vmatpush.msra.mxu0 0.0
        %975 = vmatpush.msra.mxu0 0.0
        %976 = vmatpush.msra.mxu0 0.0
        %977 = vmatpush.msra.mxu0 0.0
        %978 = vmatpush.msra.mxu0 0.0
        %979 = vmatpush.msra.mxu0 0.0
        %980 = vmatpush.msra.mxu0 0.0
        %981 = vmatpush.msra.mxu0 0.0
        %982 = vmatpush.msra.mxu0 0.0
        %983 = vmatpush.msra.mxu0 %v811
        %984 = vmatpush.msra.mxu0 %v807
        %985 = vmatpush.msra.mxu0 %v803
        %986 = vmatpush.msra.mxu0 %v799
        %987 = vmatmul.f32.gmra.mxu0 %v815
        %v988 = vpop.f32.mrf.mxu0
        %v989 = vadd.f32 %v960, %v988
        %990 = vmatmul.f32.gmra.mxu0 %v818
        %v991 = vpop.f32.mrf.mxu0
        %v992 = vadd.f32 %v963, %v991
        %993 = vmatmul.f32.gmra.mxu0 %v821
        %v994 = vpop.f32.mrf.mxu0
        %v995 = vadd.f32 %v966, %v994
        %996 = vmatmul.f32.gmra.mxu0 %v824
        %v997 = vpop.f32.mrf.mxu0
        %v998 = vadd.f32 %v969, %v997
        %999 = vdwg.mxu0
        %1000 = vmatpush.msra.mxu0 %v796
        %1001 = vmatpush.msra.mxu0 %v792
        %1002 = vmatpush.msra.mxu0 %v788
        %1003 = vmatpush.msra.mxu0 %v784
        %1004 = vmatpush.msra.mxu0 %v780
        %1005 = vmatpush.msra.mxu0 %v776
        %1006 = vmatpush.msra.mxu0 %v772
        %1007 = vmatpush.msra.mxu0 %v768
        %1008 = vmatpush.msra.mxu0 %v764
        %1009 = vmatpush.msra.mxu0 %v760
        %1010 = vmatpush.msra.mxu0 %v756
        %1011 = vmatpush.msra.mxu0 %v752
        %1012 = vmatpush.msra.mxu0 %v748
        %1013 = vmatpush.msra.mxu0 %v744
        %1014 = vmatpush.msra.mxu0 %v740
        %1015 = vmatpush.msra.mxu0 %v736
        %1016 = vmatmul.f32.gmra.mxu0 %v725
        %v1017 = vpop.f32.mrf.mxu0
        %v1018 = vadd.f32 0.0, %v1017
        %1019 = vmatmul.f32.gmra.mxu0 %v727
        %v1020 = vpop.f32.mrf.mxu0
        %v1021 = vadd.f32 0.0, %v1020
        %1022 = vmatmul.f32.gmra.mxu0 %v729
        %v1023 = vpop.f32.mrf.mxu0
        %v1024 = vadd.f32 0.0, %v1023
        %1025 = vmatmul.f32.gmra.mxu0 %v731
        %v1026 = vpop.f32.mrf.mxu0
        %v1027 = vadd.f32 0.0, %v1026
        %1028 = vdwg.mxu0
        %1029 = vmatpush.msra.mxu0 0.0
        %1030 = vmatpush.msra.mxu0 0.0
        %1031 = vmatpush.msra.mxu0 0.0
        %1032 = vmatpush.msra.mxu0 0.0
        %1033 = vmatpush.msra.mxu0 0.0
        %1034 = vmatpush.msra.mxu0 0.0
        %1035 = vmatpush.msra.mxu0 0.0
        %1036 = vmatpush.msra.mxu0 0.0
        %1037 = vmatpush.msra.mxu0 0.0
        %1038 = vmatpush.msra.mxu0 0.0
        %1039 = vmatpush.msra.mxu0 0.0
        %1040 = vmatpush.msra.mxu0 0.0
        %1041 = vmatpush.msra.mxu0 %v812
        %1042 = vmatpush.msra.mxu0 %v808
        %1043 = vmatpush.msra.mxu0 %v804
        %1044 = vmatpush.msra.mxu0 %v800
        %1045 = vmatmul.f32.gmra.mxu0 %v815
        %v1046 = vpop.f32.mrf.mxu0
        %v1047 = vadd.f32 %v1018, %v1046
        %1048 = vmatmul.f32.gmra.mxu0 %v818
        %v1049 = vpop.f32.mrf.mxu0
        %v1050 = vadd.f32 %v1021, %v1049
        %1051 = vmatmul.f32.gmra.mxu0 %v821
        %v1052 = vpop.f32.mrf.mxu0
        %v1053 = vadd.f32 %v1024, %v1052
        %1054 = vmatmul.f32.gmra.mxu0 %v824
        %v1055 = vpop.f32.mrf.mxu0
        %v1056 = vadd.f32 %v1027, %v1055
        %1057 = vdwg.mxu0
        %v1059 = vsel %vm813, %v698, 0
        %v1062 = vsel %vm813, %v701, 0
        %v1065 = vsel %vm813, %v704, 0
        %v1068 = vsel %vm813, %v707, 0
        %1070 = vmatpush.msra.mxu0 0.0
        %1071 = vmatpush.msra.mxu0 0.0
        %1072 = vmatpush.msra.mxu0 0.0
        %1073 = vmatpush.msra.mxu0 0.0
        %1074 = vmatpush.msra.mxu0 0.0
        %1075 = vmatpush.msra.mxu0 0.0
        %1076 = vmatpush.msra.mxu0 0.0
        %1077 = vmatpush.msra.mxu0 0.0
        %1078 = vmatpush.msra.mxu0 0.0
        %1079 = vmatpush.msra.mxu0 0.0
        %1080 = vmatpush.msra.mxu0 0.0
        %1081 = vmatpush.msra.mxu0 0.0
        %1082 = vmatpush.msra.mxu0 %v721
        %1083 = vmatpush.msra.mxu0 %v717
        %1084 = vmatpush.msra.mxu0 %v713
        %1085 = vmatpush.msra.mxu0 %v709
        %1086 = vmatmul.f32.gmra.mxu0 %v1059
        %v1087 = vpop.f32.mrf.mxu0
        %v1088 = vadd.f32 %v873, %v1087
        %1089 = vmatmul.f32.gmra.mxu0 %v1062
        %v1090 = vpop.f32.mrf.mxu0
        %v1091 = vadd.f32 %v876, %v1090
        %1092 = vmatmul.f32.gmra.mxu0 %v1065
        %v1093 = vpop.f32.mrf.mxu0
        %v1094 = vadd.f32 %v879, %v1093
        %1095 = vmatmul.f32.gmra.mxu0 %v1068
        %v1096 = vpop.f32.mrf.mxu0
        %v1097 = vadd.f32 %v882, %v1096
        %1098 = vdwg.mxu0
        %1099 = vmatpush.msra.mxu0 0.0
        %1100 = vmatpush.msra.mxu0 0.0
        %1101 = vmatpush.msra.mxu0 0.0
        %1102 = vmatpush.msra.mxu0 0.0
        %1103 = vmatpush.msra.mxu0 0.0
        %1104 = vmatpush.msra.mxu0 0.0
        %1105 = vmatpush.msra.mxu0 0.0
        %1106 = vmatpush.msra.mxu0 0.0
        %1107 = vmatpush.msra.mxu0 0.0
        %1108 = vmatpush.msra.mxu0 0.0
        %1109 = vmatpush.msra.mxu0 0.0
        %1110 = vmatpush.msra.mxu0 0.0
        %1111 = vmatpush.msra.mxu0 %v722
        %1112 = vmatpush.msra.mxu0 %v718
        %1113 = vmatpush.msra.mxu0 %v714
        %1114 = vmatpush.msra.mxu0 %v710
        %1115 = vmatmul.f32.gmra.mxu0 %v1059
        %v1116 = vpop.f32.mrf.mxu0
        %v1117 = vadd.f32 %v931, %v1116
        %1118 = vmatmul.f32.gmra.mxu0 %v1062
        %v1119 = vpop.f32.mrf.mxu0
        %v1120 = vadd.f32 %v934, %v1119
        %1121 = vmatmul.f32.gmra.mxu0 %v1065
        %v1122 = vpop.f32.mrf.mxu0
        %v1123 = vadd.f32 %v937, %v1122
        %1124 = vmatmul.f32.gmra.mxu0 %v1068
        %v1125 = vpop.f32.mrf.mxu0
        %v1126 = vadd.f32 %v940, %v1125
        %1127 = vdwg.mxu0
        %1128 = vmatpush.msra.mxu0 0.0
        %1129 = vmatpush.msra.mxu0 0.0
        %1130 = vmatpush.msra.mxu0 0.0
        %1131 = vmatpush.msra.mxu0 0.0
        %1132 = vmatpush.msra.mxu0 0.0
        %1133 = vmatpush.msra.mxu0 0.0
        %1134 = vmatpush.msra.mxu0 0.0
        %1135 = vmatpush.msra.mxu0 0.0
        %1136 = vmatpush.msra.mxu0 0.0
        %1137 = vmatpush.msra.mxu0 0.0
        %1138 = vmatpush.msra.mxu0 0.0
        %1139 = vmatpush.msra.mxu0 0.0
        %1140 = vmatpush.msra.mxu0 %v723
        %1141 = vmatpush.msra.mxu0 %v719
        %1142 = vmatpush.msra.mxu0 %v715
        %1143 = vmatpush.msra.mxu0 %v711
        %1144 = vmatmul.f32.gmra.mxu0 %v1059
        %v1145 = vpop.f32.mrf.mxu0
        %v1146 = vadd.f32 %v989, %v1145
        %1147 = vmatmul.f32.gmra.mxu0 %v1062
        %v1148 = vpop.f32.mrf.mxu0
        %v1149 = vadd.f32 %v992, %v1148
        %1150 = vmatmul.f32.gmra.mxu0 %v1065
        %v1151 = vpop.f32.mrf.mxu0
        %v1152 = vadd.f32 %v995, %v1151
        %1153 = vmatmul.f32.gmra.mxu0 %v1068
        %v1154 = vpop.f32.mrf.mxu0
        %v1155 = vadd.f32 %v998, %v1154
        %1156 = vdwg.mxu0
        %1157 = vmatpush.msra.mxu0 0.0
        %1158 = vmatpush.msra.mxu0 0.0
        %1159 = vmatpush.msra.mxu0 0.0
        %1160 = vmatpush.msra.mxu0 0.0
        %1161 = vmatpush.msra.mxu0 0.0
        %1162 = vmatpush.msra.mxu0 0.0
        %1163 = vmatpush.msra.mxu0 0.0
        %1164 = vmatpush.msra.mxu0 0.0
        %1165 = vmatpush.msra.mxu0 0.0
        %1166 = vmatpush.msra.mxu0 0.0
        %1167 = vmatpush.msra.mxu0 0.0
        %1168 = vmatpush.msra.mxu0 0.0
        %1169 = vmatpush.msra.mxu0 %v724
        %1170 = vmatpush.msra.mxu0 %v720
        %1171 = vmatpush.msra.mxu0 %v716
        %1172 = vmatpush.msra.mxu0 %v712
        %1173 = vmatmul.f32.gmra.mxu0 %v1059
        %v1174 = vpop.f32.mrf.mxu0
        %v1175 = vadd.f32 %v1047, %v1174
        %1176 = vmatmul.f32.gmra.mxu0 %v1062
        %v1177 = vpop.f32.mrf.mxu0
        %v1178 = vadd.f32 %v1050, %v1177
        %1179 = vmatmul.f32.gmra.mxu0 %v1065
        %v1180 = vpop.f32.mrf.mxu0
        %v1181 = vadd.f32 %v1053, %v1180
        %1182 = vmatmul.f32.gmra.mxu0 %v1068
        %v1183 = vpop.f32.mrf.mxu0
        %v1184 = vadd.f32 %v1056, %v1183
        %1185 = vdwg.mxu0
        %v1186 = vld [vmem:[#allocation8] sm:$0xf]
        %v1188 = vperm.slane %v1186, 0
        %v1189 = vperm.slane %v1186, 1
        %v1190 = vperm.slane %v1186, 2
        %v1191 = vperm.slane %v1186, 3
        %v1196 = vadd.f32 %v1088, %v1188
        %v1197 = vadd.f32 %v1117, %v1189
        %v1198 = vadd.f32 %v1146, %v1190
        %v1199 = vadd.f32 %v1175, %v1191
        %v1200 = vadd.f32 %v1091, %v1188
        %v1201 = vadd.f32 %v1120, %v1189
        %v1202 = vadd.f32 %v1149, %v1190
        %v1203 = vadd.f32 %v1178, %v1191
        %v1204 = vadd.f32 %v1094, %v1188
        %v1205 = vadd.f32 %v1123, %v1189
        %v1206 = vadd.f32 %v1152, %v1190
        %v1207 = vadd.f32 %v1181, %v1191
        %v1208 = vadd.f32 %v1097, %v1188
        %v1209 = vadd.f32 %v1126, %v1189
        %v1210 = vadd.f32 %v1155, %v1190
        %v1211 = vadd.f32 %v1184, %v1191
        %v1212 = vmax.f32 %v1196, 0.0
        %v1213 = vmax.f32 %v1197, 0.0
        %v1214 = vmax.f32 %v1198, 0.0
        %v1215 = vmax.f32 %v1199, 0.0
        %v1216 = vmax.f32 %v1200, 0.0
        %v1217 = vmax.f32 %v1201, 0.0
        %v1218 = vmax.f32 %v1202, 0.0
        %v1219 = vmax.f32 %v1203, 0.0
        %v1220 = vmax.f32 %v1204, 0.0
        %v1221 = vmax.f32 %v1205, 0.0
        %v1222 = vmax.f32 %v1206, 0.0
        %v1223 = vmax.f32 %v1207, 0.0
        %v1224 = vmax.f32 %v1208, 0.0
        %v1225 = vmax.f32 %v1209, 0.0
        %v1226 = vmax.f32 %v1210, 0.0
        %v1227 = vmax.f32 %v1211, 0.0
        %1232 = vrot.lane.b32.xlu0 %v535, 32
        %v1233 = vpop.permute.xlu0 %1232
        %1234 = vrot.lane.b32.xlu0 %v536, 32
        %v1235 = vpop.permute.xlu0 %1234
        %1236 = vrot.lane.b32.xlu0 %v537, 32
        %v1237 = vpop.permute.xlu0 %1236
        %1238 = vrot.lane.b32.xlu0 %v538, 32
        %v1239 = vpop.permute.xlu0 %1238
        %1244 = vrot.lane.b32.xlu0 %v535, 64
        %v1245 = vpop.permute.xlu0 %1244
        %1246 = vrot.lane.b32.xlu0 %v536, 64
        %v1247 = vpop.permute.xlu0 %1246
        %1248 = vrot.lane.b32.xlu0 %v537, 64
        %v1249 = vpop.permute.xlu0 %1248
        %1250 = vrot.lane.b32.xlu0 %v538, 64
        %v1251 = vpop.permute.xlu0 %1250
        %1256 = vrot.lane.b32.xlu0 %v535, 96
        %v1257 = vpop.permute.xlu0 %1256
        %1258 = vrot.lane.b32.xlu0 %v536, 96
        %v1259 = vpop.permute.xlu0 %1258
        %1260 = vrot.lane.b32.xlu0 %v537, 96
        %v1261 = vpop.permute.xlu0 %1260
        %1262 = vrot.lane.b32.xlu0 %v538, 96
        %v1263 = vpop.permute.xlu0 %1262
        %v1268 = vsel %vm813, %v535, %v1233
        %v1269 = vsel %vm813, %v536, %v1235
        %v1270 = vsel %vm813, %v537, %v1237
        %v1271 = vsel %vm813, %v538, %v1239
        %vm1272 = vcmask 523264
        %v1273 = vsel %vm1272, %v1268, %v1245
        %v1274 = vsel %vm1272, %v1269, %v1247
        %v1275 = vsel %vm1272, %v1270, %v1249
        %v1276 = vsel %vm1272, %v1271, %v1251
        %vm1277 = vcmask 785408
        %v1278 = vsel %vm1277, %v1273, %v1257
        %v1279 = vsel %vm1277, %v1274, %v1259
        %v1280 = vsel %vm1277, %v1275, %v1261
        %v1281 = vsel %vm1277, %v1276, %v1263
        %v1282 = vsel %vm813, %v535, 0.0
        %1283 = vadd.xlane.f32.xlu0 %v1282
        %v1284 = vpop.xlane.xlu0 %1283
        %v1285 = vsel %vm813, %v536, 0.0
        %1286 = vadd.xlane.f32.xlu0 %v1285
        %v1287 = vpop.xlane.xlu0 %1286
        %v1288 = vsel %vm813, %v537, 0.0
        %1289 = vadd.xlane.f32.xlu0 %v1288
        %v1290 = vpop.xlane.xlu0 %1289
        %v1291 = vsel %vm813, %v538, 0.0
        %1292 = vadd.xlane.f32.xlu0 %v1291
        %v1293 = vpop.xlane.xlu0 %1292
        %v1294 = vmul.f32 %v1212, %v1278
        %v1295 = vmul.f32 %v1213, %v1278
        %v1296 = vmul.f32 %v1214, %v1278
        %v1297 = vmul.f32 %v1215, %v1278
        %v1298 = vmul.f32 %v1216, %v1279
        %v1299 = vmul.f32 %v1217, %v1279
        %v1300 = vmul.f32 %v1218, %v1279
        %v1301 = vmul.f32 %v1219, %v1279
        %v1302 = vmul.f32 %v1220, %v1280
        %v1303 = vmul.f32 %v1221, %v1280
        %v1304 = vmul.f32 %v1222, %v1280
        %v1305 = vmul.f32 %v1223, %v1280
        %v1306 = vmul.f32 %v1224, %v1281
        %v1307 = vmul.f32 %v1225, %v1281
        %v1308 = vmul.f32 %v1226, %v1281
        %v1309 = vmul.f32 %v1227, %v1281
        %v1310 = vld [vmem:[#allocation10] sm:$0xff]
        %v1311 = vld [vmem:[#allocation10 + $0x8] sm:$0xff]
        %v1312 = vld [vmem:[#allocation10 + $0x10] sm:$0xff]
        %v1313 = vld [vmem:[#allocation10 + $0x18] sm:$0xff]
        %v1314 = vld [vmem:[#allocation10 + $0x20] sm:$0xff]
        %v1315 = vld [vmem:[#allocation10 + $0x28] sm:$0xff]
        %v1316 = vld [vmem:[#allocation10 + $0x30] sm:$0xff]
        %v1317 = vld [vmem:[#allocation10 + $0x38] sm:$0xff]
        %v1318 = vld [vmem:[#allocation10 + $0x40] sm:$0xff]
        %v1319 = vld [vmem:[#allocation10 + $0x48] sm:$0xff]
        %v1320 = vld [vmem:[#allocation10 + $0x50] sm:$0xff]
        %v1321 = vld [vmem:[#allocation10 + $0x58] sm:$0xff]
        %v1322 = vld [vmem:[#allocation10 + $0x60] sm:$0xff]
        %v1323 = vld [vmem:[#allocation10 + $0x68] sm:$0xff]
        %v1324 = vld [vmem:[#allocation10 + $0x70] sm:$0xff]
        %v1325 = vld [vmem:[#allocation10 + $0x78] sm:$0xff]
        %v1326 = vld [vmem:[#allocation10 + $0x80] sm:$0xff]
        %v1327 = vld [vmem:[#allocation10 + $0x88] sm:$0xff]
        %v1328 = vld [vmem:[#allocation10 + $0x90] sm:$0xff]
        %v1329 = vld [vmem:[#allocation10 + $0x98] sm:$0xff]
        %v1330 = vld [vmem:[#allocation10 + $0xa0] sm:$0xff]
        %v1331 = vld [vmem:[#allocation10 + $0xa8] sm:$0xff]
        %v1332 = vld [vmem:[#allocation10 + $0xb0] sm:$0xff]
        %v1333 = vld [vmem:[#allocation10 + $0xb8] sm:$0xff]
        %v1334 = vld [vmem:[#allocation10 + $0xc0] sm:$0xff]
        %v1335 = vld [vmem:[#allocation10 + $0xc8] sm:$0xff]
        %v1336 = vld [vmem:[#allocation10 + $0xd0] sm:$0xff]
        %v1337 = vld [vmem:[#allocation10 + $0xd8] sm:$0xff]
        %v1338 = vld [vmem:[#allocation10 + $0xe0] sm:$0xff]
        %v1339 = vld [vmem:[#allocation10 + $0xe8] sm:$0xff]
        %v1340 = vld [vmem:[#allocation10 + $0xf0] sm:$0xff]
        %v1341 = vld [vmem:[#allocation10 + $0xf8] sm:$0xff]
        %v1342 = vld [vmem:[#allocation10 + $0x100] sm:$0xff]
        %v1343 = vld [vmem:[#allocation10 + $0x108] sm:$0xff]
        %v1344 = vld [vmem:[#allocation10 + $0x110] sm:$0xff]
        %v1345 = vld [vmem:[#allocation10 + $0x118] sm:$0xff]
        %v1346 = vld [vmem:[#allocation10 + $0x120] sm:$0xff]
        %v1347 = vld [vmem:[#allocation10 + $0x128] sm:$0xff]
        %v1348 = vld [vmem:[#allocation10 + $0x130] sm:$0xff]
        %v1349 = vld [vmem:[#allocation10 + $0x138] sm:$0xff]
        %v1350 = vld [vmem:[#allocation10 + $0x140] sm:$0xff]
        %v1351 = vld [vmem:[#allocation10 + $0x148] sm:$0xff]
        %v1352 = vld [vmem:[#allocation10 + $0x150] sm:$0xff]
        %v1353 = vld [vmem:[#allocation10 + $0x158] sm:$0xff]
        %v1354 = vld [vmem:[#allocation10 + $0x160] sm:$0xff]
        %v1355 = vld [vmem:[#allocation10 + $0x168] sm:$0xff]
        %v1356 = vld [vmem:[#allocation10 + $0x170] sm:$0xff]
        %v1357 = vld [vmem:[#allocation10 + $0x178] sm:$0xff]
        %v1358 = vld [vmem:[#allocation10 + $0x180] sm:$0xff]
        %v1359 = vld [vmem:[#allocation10 + $0x188] sm:$0xff]
        %v1360 = vld [vmem:[#allocation10 + $0x190] sm:$0xff]
        %v1361 = vld [vmem:[#allocation10 + $0x198] sm:$0xff]
        %v1362 = vld [vmem:[#allocation10 + $0x1a0] sm:$0xff]
        %v1363 = vld [vmem:[#allocation10 + $0x1a8] sm:$0xff]
        %v1364 = vld [vmem:[#allocation10 + $0x1b0] sm:$0xff]
        %v1365 = vld [vmem:[#allocation10 + $0x1b8] sm:$0xff]
        %v1366 = vld [vmem:[#allocation10 + $0x1c0] sm:$0xff]
        %v1367 = vld [vmem:[#allocation10 + $0x1c8] sm:$0xff]
        %v1368 = vld [vmem:[#allocation10 + $0x1d0] sm:$0xff]
        %v1369 = vld [vmem:[#allocation10 + $0x1d8] sm:$0xff]
        %v1370 = vld [vmem:[#allocation10 + $0x1e0] sm:$0xff]
        %v1371 = vld [vmem:[#allocation10 + $0x1e8] sm:$0xff]
        %v1372 = vld [vmem:[#allocation10 + $0x1f0] sm:$0xff]
        %v1373 = vld [vmem:[#allocation10 + $0x1f8] sm:$0xff]
        %v1374 = vld [vmem:[#allocation11] sm:$0x1]
        %v1376 = vperm.slane %v1374, 0
        %v1378 = vmul.f32 %v1284, %v1376
        %v1379 = vmul.f32 %v1287, %v1376
        %v1380 = vmul.f32 %v1290, %v1376
        %v1381 = vmul.f32 %v1293, %v1376
        %1382 = vmatpush.msra.mxu0 %v1325
        %1383 = vmatpush.msra.mxu0 %v1324
        %1384 = vmatpush.msra.mxu0 %v1323
        %1385 = vmatpush.msra.mxu0 %v1322
        %1386 = vmatpush.msra.mxu0 %v1321
        %1387 = vmatpush.msra.mxu0 %v1320
        %1388 = vmatpush.msra.mxu0 %v1319
        %1389 = vmatpush.msra.mxu0 %v1318
        %1390 = vmatpush.msra.mxu0 %v1317
        %1391 = vmatpush.msra.mxu0 %v1316
        %1392 = vmatpush.msra.mxu0 %v1315
        %1393 = vmatpush.msra.mxu0 %v1314
        %1394 = vmatpush.msra.mxu0 %v1313
        %1395 = vmatpush.msra.mxu0 %v1312
        %1396 = vmatpush.msra.mxu0 %v1311
        %1397 = vmatpush.msra.mxu0 %v1310
        %1398 = vmatmul.f32.gmra.mxu0 %v1294
        %v1399 = vpop.f32.mrf.mxu0
        %v1400 = vadd.f32 %v1378, %v1399
        %1401 = vmatmul.f32.gmra.mxu0 %v1298
        %v1402 = vpop.f32.mrf.mxu0
        %v1403 = vadd.f32 %v1379, %v1402
        %1404 = vmatmul.f32.gmra.mxu0 %v1302
        %v1405 = vpop.f32.mrf.mxu0
        %v1406 = vadd.f32 %v1380, %v1405
        %1407 = vmatmul.f32.gmra.mxu0 %v1306
        %v1408 = vpop.f32.mrf.mxu0
        %v1409 = vadd.f32 %v1381, %v1408
        %1410 = vdwg.mxu0
        %1411 = vmatpush.msra.mxu0 %v1341
        %1412 = vmatpush.msra.mxu0 %v1340
        %1413 = vmatpush.msra.mxu0 %v1339
        %1414 = vmatpush.msra.mxu0 %v1338
        %1415 = vmatpush.msra.mxu0 %v1337
        %1416 = vmatpush.msra.mxu0 %v1336
        %1417 = vmatpush.msra.mxu0 %v1335
        %1418 = vmatpush.msra.mxu0 %v1334
        %1419 = vmatpush.msra.mxu0 %v1333
        %1420 = vmatpush.msra.mxu0 %v1332
        %1421 = vmatpush.msra.mxu0 %v1331
        %1422 = vmatpush.msra.mxu0 %v1330
        %1423 = vmatpush.msra.mxu0 %v1329
        %1424 = vmatpush.msra.mxu0 %v1328
        %1425 = vmatpush.msra.mxu0 %v1327
        %1426 = vmatpush.msra.mxu0 %v1326
        %1427 = vmatmul.f32.gmra.mxu0 %v1295
        %v1428 = vpop.f32.mrf.mxu0
        %v1429 = vadd.f32 %v1400, %v1428
        %1430 = vmatmul.f32.gmra.mxu0 %v1299
        %v1431 = vpop.f32.mrf.mxu0
        %v1432 = vadd.f32 %v1403, %v1431
        %1433 = vmatmul.f32.gmra.mxu0 %v1303
        %v1434 = vpop.f32.mrf.mxu0
        %v1435 = vadd.f32 %v1406, %v1434
        %1436 = vmatmul.f32.gmra.mxu0 %v1307
        %v1437 = vpop.f32.mrf.mxu0
        %v1438 = vadd.f32 %v1409, %v1437
        %1439 = vdwg.mxu0
        %1440 = vmatpush.msra.mxu0 %v1357
        %1441 = vmatpush.msra.mxu0 %v1356
        %1442 = vmatpush.msra.mxu0 %v1355
        %1443 = vmatpush.msra.mxu0 %v1354
        %1444 = vmatpush.msra.mxu0 %v1353
        %1445 = vmatpush.msra.mxu0 %v1352
        %1446 = vmatpush.msra.mxu0 %v1351
        %1447 = vmatpush.msra.mxu0 %v1350
        %1448 = vmatpush.msra.mxu0 %v1349
        %1449 = vmatpush.msra.mxu0 %v1348
        %1450 = vmatpush.msra.mxu0 %v1347
        %1451 = vmatpush.msra.mxu0 %v1346
        %1452 = vmatpush.msra.mxu0 %v1345
        %1453 = vmatpush.msra.mxu0 %v1344
        %1454 = vmatpush.msra.mxu0 %v1343
        %1455 = vmatpush.msra.mxu0 %v1342
        %1456 = vmatmul.f32.gmra.mxu0 %v1296
        %v1457 = vpop.f32.mrf.mxu0
        %v1458 = vadd.f32 %v1429, %v1457
        %1459 = vmatmul.f32.gmra.mxu0 %v1300
        %v1460 = vpop.f32.mrf.mxu0
        %v1461 = vadd.f32 %v1432, %v1460
        %1462 = vmatmul.f32.gmra.mxu0 %v1304
        %v1463 = vpop.f32.mrf.mxu0
        %v1464 = vadd.f32 %v1435, %v1463
        %1465 = vmatmul.f32.gmra.mxu0 %v1308
        %v1466 = vpop.f32.mrf.mxu0
        %v1467 = vadd.f32 %v1438, %v1466
        %1468 = vdwg.mxu0
        %1469 = vmatpush.msra.mxu0 %v1373
        %1470 = vmatpush.msra.mxu0 %v1372
        %1471 = vmatpush.msra.mxu0 %v1371
        %1472 = vmatpush.msra.mxu0 %v1370
        %1473 = vmatpush.msra.mxu0 %v1369
        %1474 = vmatpush.msra.mxu0 %v1368
        %1475 = vmatpush.msra.mxu0 %v1367
        %1476 = vmatpush.msra.mxu0 %v1366
        %1477 = vmatpush.msra.mxu0 %v1365
        %1478 = vmatpush.msra.mxu0 %v1364
        %1479 = vmatpush.msra.mxu0 %v1363
        %1480 = vmatpush.msra.mxu0 %v1362
        %1481 = vmatpush.msra.mxu0 %v1361
        %1482 = vmatpush.msra.mxu0 %v1360
        %1483 = vmatpush.msra.mxu0 %v1359
        %1484 = vmatpush.msra.mxu0 %v1358
        %1485 = vmatmul.f32.gmra.mxu0 %v1297
        %v1486 = vpop.f32.mrf.mxu0
        %v1487 = vadd.f32 %v1458, %v1486
        %1488 = vmatmul.f32.gmra.mxu0 %v1301
        %v1489 = vpop.f32.mrf.mxu0
        %v1490 = vadd.f32 %v1461, %v1489
        %1491 = vmatmul.f32.gmra.mxu0 %v1305
        %v1492 = vpop.f32.mrf.mxu0
        %v1493 = vadd.f32 %v1464, %v1492
        %1494 = vmatmul.f32.gmra.mxu0 %v1309
        %v1495 = vpop.f32.mrf.mxu0
        %v1496 = vadd.f32 %v1467, %v1495
        %1497 = vdwg.mxu0
        %v1498 = vlaneseq
        %v1499 = vshrl.u32 %v1498, 7
        %v1500 = vadd.s32 %v1499, 8
        %v1501 = vadd.s32 %v1499, 16
        %v1502 = vadd.s32 %v1499, 24
        %v1503 = vlaneseq
        %v1504 = vand.u32 %v1503, 127
        %vm1505 = vcmp.eq.s32.totalorder %v1499, %v1504
        %vm1506 = vcmp.eq.s32.totalorder %v1500, %v1504
        %vm1507 = vcmp.eq.s32.totalorder %v1501, %v1504
        %vm1508 = vcmp.eq.s32.totalorder %v1502, %v1504
        %v1509 = vsel %vm1505, 1, 0
        %v1510 = vsel %vm1506, 1, 0
        %v1511 = vsel %vm1507, 1, 0
        %v1512 = vsel %vm1508, 1, 0
        %v1513 = vcvt.s32.f32 %v1509
        %v1514 = vcvt.s32.f32 %v1510
        %v1515 = vcvt.s32.f32 %v1511
        %v1516 = vcvt.s32.f32 %v1512
        %v1517 = vadd.f32 %v535, %v1513
        %v1518 = vadd.f32 %v536, %v1514
        %v1519 = vadd.f32 %v537, %v1515
        %v1520 = vadd.f32 %v538, %v1516
        %v1521 = vsel %vm813, %v1517, 0.0
        %1522 = vadd.xlane.f32.xlu0 %v1521
        %v1523 = vpop.xlane.xlu0 %1522
        %v1524 = vsel %vm813, %v1518, 0.0
        %1525 = vadd.xlane.f32.xlu0 %v1524
        %v1526 = vpop.xlane.xlu0 %1525
        %v1527 = vsel %vm813, %v1519, 0.0
        %1528 = vadd.xlane.f32.xlu0 %v1527
        %v1529 = vpop.xlane.xlu0 %1528
        %v1530 = vsel %vm813, %v1520, 0.0
        %1531 = vadd.xlane.f32.xlu0 %v1530
        %v1532 = vpop.xlane.xlu0 %1531
        %v1533 = vmax.f32 %v1523, 1e-12
        %v1534 = vmax.f32 %v1526, 1e-12
        %v1535 = vmax.f32 %v1529, 1e-12
        %v1536 = vmax.f32 %v1532, 1e-12
        %v1537 = vrsqrt.pop %v1533
        %v1538 = vmul.f32 %v1537, %v1533
        %v1539 = vmul.f32 %v1538, %v1537
        %v1540 = vmul.f32 0.5, %v1539
        %v1541 = vsub.f32 1.5, %v1540
        %v1542 = vmul.f32 %v1537, %v1541
        %vm1543 = vweird.f32 %v1533
        %vm1544 = vweird.f32 %v1537
        %vm1545 = vmor %vm1543, %vm1544
        %v1546 = vsel %vm1545, %v1537, %v1542
        %v1547 = vrsqrt.pop %v1534
        %v1548 = vmul.f32 %v1547, %v1534
        %v1549 = vmul.f32 %v1548, %v1547
        %v1550 = vmul.f32 0.5, %v1549
        %v1551 = vsub.f32 1.5, %v1550
        %v1552 = vmul.f32 %v1547, %v1551
        %vm1553 = vweird.f32 %v1534
        %vm1554 = vweird.f32 %v1547
        %vm1555 = vmor %vm1553, %vm1554
        %v1556 = vsel %vm1555, %v1547, %v1552
        %v1557 = vrsqrt.pop %v1535
        %v1558 = vmul.f32 %v1557, %v1535
        %v1559 = vmul.f32 %v1558, %v1557
        %v1560 = vmul.f32 0.5, %v1559
        %v1561 = vsub.f32 1.5, %v1560
        %v1562 = vmul.f32 %v1557, %v1561
        %vm1563 = vweird.f32 %v1535
        %vm1564 = vweird.f32 %v1557
        %vm1565 = vmor %vm1563, %vm1564
        %v1566 = vsel %vm1565, %v1557, %v1562
        %v1567 = vrsqrt.pop %v1536
        %v1568 = vmul.f32 %v1567, %v1536
        %v1569 = vmul.f32 %v1568, %v1567
        %v1570 = vmul.f32 0.5, %v1569
        %v1571 = vsub.f32 1.5, %v1570
        %v1572 = vmul.f32 %v1567, %v1571
        %vm1573 = vweird.f32 %v1536
        %vm1574 = vweird.f32 %v1567
        %vm1575 = vmor %vm1573, %vm1574
        %v1576 = vsel %vm1575, %v1567, %v1572
        %v1577 = vadd.f32 %v1521, %v1524
        %v1578 = vadd.f32 %v1577, %v1527
        %v1579 = vadd.f32 %v1578, %v1530
        %v1580 = vrot.slane %v1579, 4
        %v1581 = vadd.f32 %v1579, %v1580
        %v1582 = vrot.slane %v1581, 2
        %v1583 = vadd.f32 %v1581, %v1582
        %v1584 = vrot.slane %v1583, 1
        %v1585 = vadd.f32 %v1583, %v1584
        %v1586 = vmax.f32 %v1585, 1e-12
        %v1587 = vrsqrt.pop %v1586
        %v1588 = vmul.f32 %v1587, %v1586
        %v1589 = vmul.f32 %v1588, %v1587
        %v1590 = vmul.f32 0.5, %v1589
        %v1591 = vsub.f32 1.5, %v1590
        %v1592 = vmul.f32 %v1587, %v1591
        %vm1593 = vweird.f32 %v1586
        %vm1594 = vweird.f32 %v1587
        %vm1595 = vmor %vm1593, %vm1594
        %v1596 = vsel %vm1595, %v1587, %v1592
        %v1597 = vmul.f32 %v1517, %v1546
        %v1598 = vmul.f32 %v1518, %v1556
        %v1599 = vmul.f32 %v1519, %v1566
        %v1600 = vmul.f32 %v1520, %v1576
        %v1601 = vmul.f32 %v1597, %v1596
        %v1602 = vmul.f32 %v1598, %v1596
        %v1603 = vmul.f32 %v1599, %v1596
        %v1604 = vmul.f32 %v1600, %v1596
        %v1605 = vld [vmem:[#allocation13] sm:$0xff]
        %v1606 = vld [vmem:[#allocation13 + $0x8] sm:$0xff]
        %v1607 = vld [vmem:[#allocation13 + $0x10] sm:$0xff]
        %v1608 = vld [vmem:[#allocation13 + $0x18] sm:$0xff]
        %v1609 = vld [vmem:[#allocation13 + $0x20] sm:$0xff]
        %v1610 = vld [vmem:[#allocation13 + $0x28] sm:$0xff]
        %v1611 = vld [vmem:[#allocation13 + $0x30] sm:$0xff]
        %v1612 = vld [vmem:[#allocation13 + $0x38] sm:$0xff]
        %v1613 = vld [vmem:[#allocation14] sm:$0x1]
        %v1615 = vsel %vm1272, %v1487, 0
        %v1618 = vsel %vm1272, %v1490, 0
        %v1621 = vsel %vm1272, %v1493, 0
        %v1624 = vsel %vm1272, %v1496, 0
        %1626 = vmatpush.msra.mxu0 0.0
        %1627 = vmatpush.msra.mxu0 0.0
        %1628 = vmatpush.msra.mxu0 0.0
        %1629 = vmatpush.msra.mxu0 0.0
        %1630 = vmatpush.msra.mxu0 0.0
        %1631 = vmatpush.msra.mxu0 0.0
        %1632 = vmatpush.msra.mxu0 0.0
        %1633 = vmatpush.msra.mxu0 0.0
        %1634 = vmatpush.msra.mxu0 %v1612
        %1635 = vmatpush.msra.mxu0 %v1611
        %1636 = vmatpush.msra.mxu0 %v1610
        %1637 = vmatpush.msra.mxu0 %v1609
        %1638 = vmatpush.msra.mxu0 %v1608
        %1639 = vmatpush.msra.mxu0 %v1607
        %1640 = vmatpush.msra.mxu0 %v1606
        %1641 = vmatpush.msra.mxu0 %v1605
        %1642 = vmatmul.f32.gmra.mxu0 %v1615
        %v1643 = vpop.f32.mrf.mxu0
        %v1644 = vadd.f32 0.0, %v1643
        %1645 = vmatmul.f32.gmra.mxu0 %v1618
        %v1646 = vpop.f32.mrf.mxu0
        %v1647 = vadd.f32 0.0, %v1646
        %1648 = vmatmul.f32.gmra.mxu0 %v1621
        %v1649 = vpop.f32.mrf.mxu0
        %v1650 = vadd.f32 0.0, %v1649
        %1651 = vmatmul.f32.gmra.mxu0 %v1624
        %v1652 = vpop.f32.mrf.mxu0
        %v1653 = vadd.f32 0.0, %v1652
        %1654 = vdwg.mxu0
        %v1656 = vperm.slane %v1613, 0
        %v1659 = vsel %vm813, %v1601, 0
        %v1662 = vsel %vm813, %v1602, 0
        %v1665 = vsel %vm813, %v1603, 0
        %v1668 = vsel %vm813, %v1604, 0
        %1670 = vmatpush.msra.mxu0 0.0
        %1671 = vmatpush.msra.mxu0 0.0
        %1672 = vmatpush.msra.mxu0 0.0
        %1673 = vmatpush.msra.mxu0 0.0
        %1674 = vmatpush.msra.mxu0 0.0
        %1675 = vmatpush.msra.mxu0 0.0
        %1676 = vmatpush.msra.mxu0 0.0
        %1677 = vmatpush.msra.mxu0 0.0
        %1678 = vmatpush.msra.mxu0 0.0
        %1679 = vmatpush.msra.mxu0 0.0
        %1680 = vmatpush.msra.mxu0 0.0
        %1681 = vmatpush.msra.mxu0 0.0
        %1682 = vmatpush.msra.mxu0 %v1653
        %1683 = vmatpush.msra.mxu0 %v1650
        %1684 = vmatpush.msra.mxu0 %v1647
        %1685 = vmatpush.msra.mxu0 %v1644
        %1686 = vmatmul.f32.gmra.mxu0 %v1659
        %v1687 = vpop.f32.mrf.mxu0
        %v1688 = vadd.f32 %v1656, %v1687
        %1689 = vmatmul.f32.gmra.mxu0 %v1662
        %v1690 = vpop.f32.mrf.mxu0
        %v1691 = vadd.f32 %v1656, %v1690
        %1692 = vmatmul.f32.gmra.mxu0 %v1665
        %v1693 = vpop.f32.mrf.mxu0
        %v1694 = vadd.f32 %v1656, %v1693
        %1695 = vmatmul.f32.gmra.mxu0 %v1668
        %v1696 = vpop.f32.mrf.mxu0
        %v1697 = vadd.f32 %v1656, %v1696
        %1698 = vdwg.mxu0
        %v1699 = vmax.f32 %v1688, 0.0
        %v1700 = vmax.f32 %v1691, 0.0
        %v1701 = vmax.f32 %v1694, 0.0
        %v1702 = vmax.f32 %v1697, 0.0
        %s1703 = scalar_lea.vmem [#allocation13], 192
        %v1704 = vld [vmem:[%s1703] sm:$0xff]
        %v1705 = vld [vmem:[%s1703 + $0x8] sm:$0xff]
        %v1706 = vld [vmem:[%s1703 + $0x10] sm:$0xff]
        %v1707 = vld [vmem:[%s1703 + $0x18] sm:$0xff]
        %v1708 = vld [vmem:[%s1703 + $0x20] sm:$0xff]
        %v1709 = vld [vmem:[%s1703 + $0x28] sm:$0xff]
        %v1710 = vld [vmem:[%s1703 + $0x30] sm:$0xff]
        %v1711 = vld [vmem:[%s1703 + $0x38] sm:$0xff]
        %s1712 = scalar_lea.vmem [#allocation14], 1
        %v1713 = vld [vmem:[%s1712] sm:$0x1]
        %v1715 = vsel %vm1272, %v1699, 0
        %v1718 = vsel %vm1272, %v1700, 0
        %v1721 = vsel %vm1272, %v1701, 0
        %v1724 = vsel %vm1272, %v1702, 0
        %1726 = vmatpush.msra.mxu0 0.0
        %1727 = vmatpush.msra.mxu0 0.0
        %1728 = vmatpush.msra.mxu0 0.0
        %1729 = vmatpush.msra.mxu0 0.0
        %1730 = vmatpush.msra.mxu0 0.0
        %1731 = vmatpush.msra.mxu0 0.0
        %1732 = vmatpush.msra.mxu0 0.0
        %1733 = vmatpush.msra.mxu0 0.0
        %1734 = vmatpush.msra.mxu0 %v1711
        %1735 = vmatpush.msra.mxu0 %v1710
        %1736 = vmatpush.msra.mxu0 %v1709
        %1737 = vmatpush.msra.mxu0 %v1708
        %1738 = vmatpush.msra.mxu0 %v1707
        %1739 = vmatpush.msra.mxu0 %v1706
        %1740 = vmatpush.msra.mxu0 %v1705
        %1741 = vmatpush.msra.mxu0 %v1704
        %1742 = vmatmul.f32.gmra.mxu0 %v1715
        %v1743 = vpop.f32.mrf.mxu0
        %v1744 = vadd.f32 0.0, %v1743
        %1745 = vmatmul.f32.gmra.mxu0 %v1718
        %v1746 = vpop.f32.mrf.mxu0
        %v1747 = vadd.f32 0.0, %v1746
        %1748 = vmatmul.f32.gmra.mxu0 %v1721
        %v1749 = vpop.f32.mrf.mxu0
        %v1750 = vadd.f32 0.0, %v1749
        %1751 = vmatmul.f32.gmra.mxu0 %v1724
        %v1752 = vpop.f32.mrf.mxu0
        %v1753 = vadd.f32 0.0, %v1752
        %1754 = vdwg.mxu0
        %v1756 = vperm.slane %v1713, 0
        %1758 = vmatpush.msra.mxu0 0.0
        %1759 = vmatpush.msra.mxu0 0.0
        %1760 = vmatpush.msra.mxu0 0.0
        %1761 = vmatpush.msra.mxu0 0.0
        %1762 = vmatpush.msra.mxu0 0.0
        %1763 = vmatpush.msra.mxu0 0.0
        %1764 = vmatpush.msra.mxu0 0.0
        %1765 = vmatpush.msra.mxu0 0.0
        %1766 = vmatpush.msra.mxu0 0.0
        %1767 = vmatpush.msra.mxu0 0.0
        %1768 = vmatpush.msra.mxu0 0.0
        %1769 = vmatpush.msra.mxu0 0.0
        %1770 = vmatpush.msra.mxu0 %v1753
        %1771 = vmatpush.msra.mxu0 %v1750
        %1772 = vmatpush.msra.mxu0 %v1747
        %1773 = vmatpush.msra.mxu0 %v1744
        %1774 = vmatmul.f32.gmra.mxu0 %v1659
        %v1775 = vpop.f32.mrf.mxu0
        %v1776 = vadd.f32 %v1756, %v1775
        %1777 = vmatmul.f32.gmra.mxu0 %v1662
        %v1778 = vpop.f32.mrf.mxu0
        %v1779 = vadd.f32 %v1756, %v1778
        %1780 = vmatmul.f32.gmra.mxu0 %v1665
        %v1781 = vpop.f32.mrf.mxu0
        %v1782 = vadd.f32 %v1756, %v1781
        %1783 = vmatmul.f32.gmra.mxu0 %v1668
        %v1784 = vpop.f32.mrf.mxu0
        %v1785 = vadd.f32 %v1756, %v1784
        %1786 = vdwg.mxu0
        %v1787 = vmax.f32 %v1776, 0.0
        %v1788 = vmax.f32 %v1779, 0.0
        %v1789 = vmax.f32 %v1782, 0.0
        %v1790 = vmax.f32 %v1785, 0.0
        %s1791 = scalar_lea.vmem [#allocation13], 384
        %v1792 = vld [vmem:[%s1791] sm:$0xff]
        %v1793 = vld [vmem:[%s1791 + $0x8] sm:$0xff]
        %v1794 = vld [vmem:[%s1791 + $0x10] sm:$0xff]
        %v1795 = vld [vmem:[%s1791 + $0x18] sm:$0xff]
        %v1796 = vld [vmem:[%s1791 + $0x20] sm:$0xff]
        %v1797 = vld [vmem:[%s1791 + $0x28] sm:$0xff]
        %v1798 = vld [vmem:[%s1791 + $0x30] sm:$0xff]
        %v1799 = vld [vmem:[%s1791 + $0x38] sm:$0xff]
        %s1800 = scalar_lea.vmem [#allocation14], 2
        %v1801 = vld [vmem:[%s1800] sm:$0x1]
        %v1803 = vsel %vm1272, %v1787, 0
        %v1806 = vsel %vm1272, %v1788, 0
        %v1809 = vsel %vm1272, %v1789, 0
        %v1812 = vsel %vm1272, %v1790, 0
        %1814 = vmatpush.msra.mxu0 0.0
        %1815 = vmatpush.msra.mxu0 0.0
        %1816 = vmatpush.msra.mxu0 0.0
        %1817 = vmatpush.msra.mxu0 0.0
        %1818 = vmatpush.msra.mxu0 0.0
        %1819 = vmatpush.msra.mxu0 0.0
        %1820 = vmatpush.msra.mxu0 0.0
        %1821 = vmatpush.msra.mxu0 0.0
        %1822 = vmatpush.msra.mxu0 %v1799
        %1823 = vmatpush.msra.mxu0 %v1798
        %1824 = vmatpush.msra.mxu0 %v1797
        %1825 = vmatpush.msra.mxu0 %v1796
        %1826 = vmatpush.msra.mxu0 %v1795
        %1827 = vmatpush.msra.mxu0 %v1794
        %1828 = vmatpush.msra.mxu0 %v1793
        %1829 = vmatpush.msra.mxu0 %v1792
        %1830 = vmatmul.f32.gmra.mxu0 %v1803
        %v1831 = vpop.f32.mrf.mxu0
        %v1832 = vadd.f32 0.0, %v1831
        %1833 = vmatmul.f32.gmra.mxu0 %v1806
        %v1834 = vpop.f32.mrf.mxu0
        %v1835 = vadd.f32 0.0, %v1834
        %1836 = vmatmul.f32.gmra.mxu0 %v1809
        %v1837 = vpop.f32.mrf.mxu0
        %v1838 = vadd.f32 0.0, %v1837
        %1839 = vmatmul.f32.gmra.mxu0 %v1812
        %v1840 = vpop.f32.mrf.mxu0
        %v1841 = vadd.f32 0.0, %v1840
        %1842 = vdwg.mxu0
        %v1844 = vperm.slane %v1801, 0
        %1846 = vmatpush.msra.mxu0 0.0
        %1847 = vmatpush.msra.mxu0 0.0
        %1848 = vmatpush.msra.mxu0 0.0
        %1849 = vmatpush.msra.mxu0 0.0
        %1850 = vmatpush.msra.mxu0 0.0
        %1851 = vmatpush.msra.mxu0 0.0
        %1852 = vmatpush.msra.mxu0 0.0
        %1853 = vmatpush.msra.mxu0 0.0
        %1854 = vmatpush.msra.mxu0 0.0
        %1855 = vmatpush.msra.mxu0 0.0
        %1856 = vmatpush.msra.mxu0 0.0
        %1857 = vmatpush.msra.mxu0 0.0
        %1858 = vmatpush.msra.mxu0 %v1841
        %1859 = vmatpush.msra.mxu0 %v1838
        %1860 = vmatpush.msra.mxu0 %v1835
        %1861 = vmatpush.msra.mxu0 %v1832
        %1862 = vmatmul.f32.gmra.mxu0 %v1659
        %v1863 = vpop.f32.mrf.mxu0
        %v1864 = vadd.f32 %v1844, %v1863
        %1865 = vmatmul.f32.gmra.mxu0 %v1662
        %v1866 = vpop.f32.mrf.mxu0
        %v1867 = vadd.f32 %v1844, %v1866
        %1868 = vmatmul.f32.gmra.mxu0 %v1665
        %v1869 = vpop.f32.mrf.mxu0
        %v1870 = vadd.f32 %v1844, %v1869
        %1871 = vmatmul.f32.gmra.mxu0 %v1668
        %v1872 = vpop.f32.mrf.mxu0
        %v1873 = vadd.f32 %v1844, %v1872
        %1874 = vdwg.mxu0
        %v1875 = vmax.f32 %v1864, 0.0
        %v1876 = vmax.f32 %v1867, 0.0
        %v1877 = vmax.f32 %v1870, 0.0
        %v1878 = vmax.f32 %v1873, 0.0
        %1879 = vrot.lane.b32.xlu0 %v1787, 64
        %v1880 = vpop.permute.xlu0 %1879
        %1881 = vrot.lane.b32.xlu0 %v1788, 64
        %v1882 = vpop.permute.xlu0 %1881
        %1883 = vrot.lane.b32.xlu0 %v1789, 64
        %v1884 = vpop.permute.xlu0 %1883
        %1885 = vrot.lane.b32.xlu0 %v1790, 64
        %v1886 = vpop.permute.xlu0 %1885
        %v1891 = vsel %vm1272, %v1699, %v1880
        %v1892 = vsel %vm1272, %v1700, %v1882
        %v1893 = vsel %vm1272, %v1701, %v1884
        %v1894 = vsel %vm1272, %v1702, %v1886
        %s1895 = scalar_lea.vmem [#allocation13], 576
        %v1896 = vld [vmem:[%s1895] sm:$0xff]
        %v1897 = vld [vmem:[%s1895 + $0x8] sm:$0xff]
        %v1898 = vld [vmem:[%s1895 + $0x10] sm:$0xff]
        %v1899 = vld [vmem:[%s1895 + $0x18] sm:$0xff]
        %v1900 = vld [vmem:[%s1895 + $0x20] sm:$0xff]
        %v1901 = vld [vmem:[%s1895 + $0x28] sm:$0xff]
        %v1902 = vld [vmem:[%s1895 + $0x30] sm:$0xff]
        %v1903 = vld [vmem:[%s1895 + $0x38] sm:$0xff]
        %v1904 = vld [vmem:[%s1895 + $0x40] sm:$0xff]
        %v1905 = vld [vmem:[%s1895 + $0x48] sm:$0xff]
        %v1906 = vld [vmem:[%s1895 + $0x50] sm:$0xff]
        %v1907 = vld [vmem:[%s1895 + $0x58] sm:$0xff]
        %v1908 = vld [vmem:[%s1895 + $0x60] sm:$0xff]
        %v1909 = vld [vmem:[%s1895 + $0x68] sm:$0xff]
        %v1910 = vld [vmem:[%s1895 + $0x70] sm:$0xff]
        %v1911 = vld [vmem:[%s1895 + $0x78] sm:$0xff]
        %v1912 = vld [vmem:[%s1895 + $0x80] sm:$0xff]
        %v1913 = vld [vmem:[%s1895 + $0x88] sm:$0xff]
        %v1914 = vld [vmem:[%s1895 + $0x90] sm:$0xff]
        %v1915 = vld [vmem:[%s1895 + $0x98] sm:$0xff]
        %v1916 = vld [vmem:[%s1895 + $0xa0] sm:$0xff]
        %v1917 = vld [vmem:[%s1895 + $0xa8] sm:$0xff]
        %v1918 = vld [vmem:[%s1895 + $0xb0] sm:$0xff]
        %v1919 = vld [vmem:[%s1895 + $0xb8] sm:$0xff]
        %s1920 = scalar_lea.vmem [#allocation14], 3
        %v1921 = vld [vmem:[%s1920] sm:$0x1]
        %v1923 = vperm.slane %v1921, 0
        %v1926 = vsel %vm1272, %v1875, 0
        %v1929 = vsel %vm1272, %v1876, 0
        %v1932 = vsel %vm1272, %v1877, 0
        %v1935 = vsel %vm1272, %v1878, 0
        %1937 = vmatpush.msra.mxu0 %v1911
        %1938 = vmatpush.msra.mxu0 %v1910
        %1939 = vmatpush.msra.mxu0 %v1909
        %1940 = vmatpush.msra.mxu0 %v1908
        %1941 = vmatpush.msra.mxu0 %v1907
        %1942 = vmatpush.msra.mxu0 %v1906
        %1943 = vmatpush.msra.mxu0 %v1905
        %1944 = vmatpush.msra.mxu0 %v1904
        %1945 = vmatpush.msra.mxu0 %v1903
        %1946 = vmatpush.msra.mxu0 %v1902
        %1947 = vmatpush.msra.mxu0 %v1901
        %1948 = vmatpush.msra.mxu0 %v1900
        %1949 = vmatpush.msra.mxu0 %v1899
        %1950 = vmatpush.msra.mxu0 %v1898
        %1951 = vmatpush.msra.mxu0 %v1897
        %1952 = vmatpush.msra.mxu0 %v1896
        %1953 = vmatmul.f32.gmra.mxu0 %v1891
        %v1954 = vpop.f32.mrf.mxu0
        %v1955 = vadd.f32 %v1923, %v1954
        %1956 = vmatmul.f32.gmra.mxu0 %v1892
        %v1957 = vpop.f32.mrf.mxu0
        %v1958 = vadd.f32 %v1923, %v1957
        %1959 = vmatmul.f32.gmra.mxu0 %v1893
        %v1960 = vpop.f32.mrf.mxu0
        %v1961 = vadd.f32 %v1923, %v1960
        %1962 = vmatmul.f32.gmra.mxu0 %v1894
        %v1963 = vpop.f32.mrf.mxu0
        %v1964 = vadd.f32 %v1923, %v1963
        %1965 = vdwg.mxu0
        %1966 = vmatpush.msra.mxu0 0.0
        %1967 = vmatpush.msra.mxu0 0.0
        %1968 = vmatpush.msra.mxu0 0.0
        %1969 = vmatpush.msra.mxu0 0.0
        %1970 = vmatpush.msra.mxu0 0.0
        %1971 = vmatpush.msra.mxu0 0.0
        %1972 = vmatpush.msra.mxu0 0.0
        %1973 = vmatpush.msra.mxu0 0.0
        %1974 = vmatpush.msra.mxu0 %v1919
        %1975 = vmatpush.msra.mxu0 %v1918
        %1976 = vmatpush.msra.mxu0 %v1917
        %1977 = vmatpush.msra.mxu0 %v1916
        %1978 = vmatpush.msra.mxu0 %v1915
        %1979 = vmatpush.msra.mxu0 %v1914
        %1980 = vmatpush.msra.mxu0 %v1913
        %1981 = vmatpush.msra.mxu0 %v1912
        %1982 = vmatmul.f32.gmra.mxu0 %v1926
        %v1983 = vpop.f32.mrf.mxu0
        %v1984 = vadd.f32 %v1955, %v1983
        %1985 = vmatmul.f32.gmra.mxu0 %v1929
        %v1986 = vpop.f32.mrf.mxu0
        %v1987 = vadd.f32 %v1958, %v1986
        %1988 = vmatmul.f32.gmra.mxu0 %v1932
        %v1989 = vpop.f32.mrf.mxu0
        %v1990 = vadd.f32 %v1961, %v1989
        %1991 = vmatmul.f32.gmra.mxu0 %v1935
        %v1992 = vpop.f32.mrf.mxu0
        %v1993 = vadd.f32 %v1964, %v1992
        %1994 = vdwg.mxu0
        %v1995 = vmax.f32 %v1984, 0.0
        %v1996 = vmax.f32 %v1987, 0.0
        %v1997 = vmax.f32 %v1990, 0.0
        %v1998 = vmax.f32 %v1993, 0.0
        %vm1999 = vcmask 64512
        %v2000 = vsel %vm1999, %v1995, -inf
        %2001 = vmax.xlane.f32.xlu0 %v2000
        %v2002 = vpop.xlane.xlu0 %2001
        %v2003 = vsel %vm1999, %v1996, -inf
        %2004 = vmax.xlane.f32.xlu0 %v2003
        %v2005 = vpop.xlane.xlu0 %2004
        %v2006 = vsel %vm1999, %v1997, -inf
        %2007 = vmax.xlane.f32.xlu0 %v2006
        %v2008 = vpop.xlane.xlu0 %2007
        %v2009 = vsel %vm1999, %v1998, -inf
        %2010 = vmax.xlane.f32.xlu0 %v2009
        %v2011 = vpop.xlane.xlu0 %2010
        %v2012 = vsub.f32 %v1995, %v2002
        %v2013 = vsub.f32 %v1996, %v2005
        %v2014 = vsub.f32 %v1997, %v2008
        %v2015 = vsub.f32 %v1998, %v2011
        %v2016 = vmul.f32 %v2012, 1.442695
        %v2017 = vpow.pop %v2016
        %v2018 = vmul.f32 %v2013, 1.442695
        %v2019 = vpow.pop %v2018
        %v2020 = vmul.f32 %v2014, 1.442695
        %v2021 = vpow.pop %v2020
        %v2022 = vmul.f32 %v2015, 1.442695
        %v2023 = vpow.pop %v2022
        %v2024 = vsel %vm1999, %v2017, 0.0
        %2025 = vadd.xlane.f32.xlu0 %v2024
        %v2026 = vpop.xlane.xlu0 %2025
        %v2027 = vsel %vm1999, %v2019, 0.0
        %2028 = vadd.xlane.f32.xlu0 %v2027
        %v2029 = vpop.xlane.xlu0 %2028
        %v2030 = vsel %vm1999, %v2021, 0.0
        %2031 = vadd.xlane.f32.xlu0 %v2030
        %v2032 = vpop.xlane.xlu0 %2031
        %v2033 = vsel %vm1999, %v2023, 0.0
        %2034 = vadd.xlane.f32.xlu0 %v2033
        %v2035 = vpop.xlane.xlu0 %2034
        %v2036 = vrcp.pop %v2026
        %v2037 = vmul.f32 %v2026, %v2036
        %v2038 = vsub.f32 1.0, %v2037
        %v2039 = vmul.f32 %v2036, %v2038
        %v2040 = vadd.f32 %v2036, %v2039
        %vm2041 = vweird.f32 %v2026
        %vm2042 = vweird.f32 %v2036
        %vm2043 = vmor %vm2041, %vm2042
        %v2044 = vsel %vm2043, %v2036, %v2040
        %v2045 = vand.u32 2147483647, %v2026
        %vm2046 = vcmp.eq.f32.partialorder %v2045, 8.507059e+37
        %v2047 = vand.u32 %v2026, 2147483648
        %v2048 = vor.u32 1.1754944e-38, %v2047
        %v2049 = vsel %vm2046, %v2048, %v2044
        %v2050 = vmul.f32 %v2017, %v2049
        %v2051 = vrcp.pop %v2029
        %v2052 = vmul.f32 %v2029, %v2051
        %v2053 = vsub.f32 1.0, %v2052
        %v2054 = vmul.f32 %v2051, %v2053
        %v2055 = vadd.f32 %v2051, %v2054
        %vm2056 = vweird.f32 %v2029
        %vm2057 = vweird.f32 %v2051
        %vm2058 = vmor %vm2056, %vm2057
        %v2059 = vsel %vm2058, %v2051, %v2055
        %v2060 = vand.u32 2147483647, %v2029
        %vm2061 = vcmp.eq.f32.partialorder %v2060, 8.507059e+37
        %v2062 = vand.u32 %v2029, 2147483648
        %v2063 = vor.u32 1.1754944e-38, %v2062
        %v2064 = vsel %vm2061, %v2063, %v2059
        %v2065 = vmul.f32 %v2019, %v2064
        %v2066 = vrcp.pop %v2032
        %v2067 = vmul.f32 %v2032, %v2066
        %v2068 = vsub.f32 1.0, %v2067
        %v2069 = vmul.f32 %v2066, %v2068
        %v2070 = vadd.f32 %v2066, %v2069
        %vm2071 = vweird.f32 %v2032
        %vm2072 = vweird.f32 %v2066
        %vm2073 = vmor %vm2071, %vm2072
        %v2074 = vsel %vm2073, %v2066, %v2070
        %v2075 = vand.u32 2147483647, %v2032
        %vm2076 = vcmp.eq.f32.partialorder %v2075, 8.507059e+37
        %v2077 = vand.u32 %v2032, 2147483648
        %v2078 = vor.u32 1.1754944e-38, %v2077
        %v2079 = vsel %vm2076, %v2078, %v2074
        %v2080 = vmul.f32 %v2021, %v2079
        %v2081 = vrcp.pop %v2035
        %v2082 = vmul.f32 %v2035, %v2081
        %v2083 = vsub.f32 1.0, %v2082
        %v2084 = vmul.f32 %v2081, %v2083
        %v2085 = vadd.f32 %v2081, %v2084
        %vm2086 = vweird.f32 %v2035
        %vm2087 = vweird.f32 %v2081
        %vm2088 = vmor %vm2086, %vm2087
        %v2089 = vsel %vm2088, %v2081, %v2085
        %v2090 = vand.u32 2147483647, %v2035
        %vm2091 = vcmp.eq.f32.partialorder %v2090, 8.507059e+37
        %v2092 = vand.u32 %v2035, 2147483648
        %v2093 = vor.u32 1.1754944e-38, %v2092
        %v2094 = vsel %vm2091, %v2093, %v2089
        %v2095 = vmul.f32 %v2023, %v2094
        %s2096 = scalar_lea.vmem [#allocation13], 768
        %v2097 = vld [vmem:[%s2096] sm:$0xff]
        %v2098 = vld [vmem:[%s2096 + $0x8] sm:$0xff]
        %v2099 = vld [vmem:[%s2096 + $0x10] sm:$0xff]
        %v2100 = vld [vmem:[%s2096 + $0x18] sm:$0xff]
        %v2101 = vld [vmem:[%s2096 + $0x20] sm:$0xff]
        %v2102 = vld [vmem:[%s2096 + $0x28] sm:$0xff]
        %v2103 = vld [vmem:[%s2096 + $0x30] sm:$0xff]
        %v2104 = vld [vmem:[%s2096 + $0x38] sm:$0xff]
        %s2105 = scalar_lea.vmem [#allocation14], 4
        %v2106 = vld [vmem:[%s2105] sm:$0x1]
        %2107 = vmatpush.msra.mxu0 0.0
        %2108 = vmatpush.msra.mxu0 0.0
        %2109 = vmatpush.msra.mxu0 0.0
        %2110 = vmatpush.msra.mxu0 0.0
        %2111 = vmatpush.msra.mxu0 0.0
        %2112 = vmatpush.msra.mxu0 0.0
        %2113 = vmatpush.msra.mxu0 0.0
        %2114 = vmatpush.msra.mxu0 0.0
        %2115 = vmatpush.msra.mxu0 %v2104
        %2116 = vmatpush.msra.mxu0 %v2103
        %2117 = vmatpush.msra.mxu0 %v2102
        %2118 = vmatpush.msra.mxu0 %v2101
        %2119 = vmatpush.msra.mxu0 %v2100
        %2120 = vmatpush.msra.mxu0 %v2099
        %2121 = vmatpush.msra.mxu0 %v2098
        %2122 = vmatpush.msra.mxu0 %v2097
        %2123 = vmatmul.f32.gmra.mxu0 %v1615
        %v2124 = vpop.f32.mrf.mxu0
        %v2125 = vadd.f32 0.0, %v2124
        %2126 = vmatmul.f32.gmra.mxu0 %v1618
        %v2127 = vpop.f32.mrf.mxu0
        %v2128 = vadd.f32 0.0, %v2127
        %2129 = vmatmul.f32.gmra.mxu0 %v1621
        %v2130 = vpop.f32.mrf.mxu0
        %v2131 = vadd.f32 0.0, %v2130
        %2132 = vmatmul.f32.gmra.mxu0 %v1624
        %v2133 = vpop.f32.mrf.mxu0
        %v2134 = vadd.f32 0.0, %v2133
        %2135 = vdwg.mxu0
        %v2137 = vperm.slane %v2106, 0
        %2139 = vmatpush.msra.mxu0 0.0
        %2140 = vmatpush.msra.mxu0 0.0
        %2141 = vmatpush.msra.mxu0 0.0
        %2142 = vmatpush.msra.mxu0 0.0
        %2143 = vmatpush.msra.mxu0 0.0
        %2144 = vmatpush.msra.mxu0 0.0
        %2145 = vmatpush.msra.mxu0 0.0
        %2146 = vmatpush.msra.mxu0 0.0
        %2147 = vmatpush.msra.mxu0 0.0
        %2148 = vmatpush.msra.mxu0 0.0
        %2149 = vmatpush.msra.mxu0 0.0
        %2150 = vmatpush.msra.mxu0 0.0
        %2151 = vmatpush.msra.mxu0 %v2134
        %2152 = vmatpush.msra.mxu0 %v2131
        %2153 = vmatpush.msra.mxu0 %v2128
        %2154 = vmatpush.msra.mxu0 %v2125
        %2155 = vmatmul.f32.gmra.mxu0 %v1659
        %v2156 = vpop.f32.mrf.mxu0
        %v2157 = vadd.f32 %v2137, %v2156
        %2158 = vmatmul.f32.gmra.mxu0 %v1662
        %v2159 = vpop.f32.mrf.mxu0
        %v2160 = vadd.f32 %v2137, %v2159
        %2161 = vmatmul.f32.gmra.mxu0 %v1665
        %v2162 = vpop.f32.mrf.mxu0
        %v2163 = vadd.f32 %v2137, %v2162
        %2164 = vmatmul.f32.gmra.mxu0 %v1668
        %v2165 = vpop.f32.mrf.mxu0
        %v2166 = vadd.f32 %v2137, %v2165
        %2167 = vdwg.mxu0
        %v2168 = vmax.f32 %v2157, 0.0
        %v2169 = vmax.f32 %v2160, 0.0
        %v2170 = vmax.f32 %v2163, 0.0
        %v2171 = vmax.f32 %v2166, 0.0
        %s2172 = scalar_lea.vmem [#allocation13], 960
        %v2173 = vld [vmem:[%s2172] sm:$0xff]
        %v2174 = vld [vmem:[%s2172 + $0x8] sm:$0xff]
        %v2175 = vld [vmem:[%s2172 + $0x10] sm:$0xff]
        %v2176 = vld [vmem:[%s2172 + $0x18] sm:$0xff]
        %v2177 = vld [vmem:[%s2172 + $0x20] sm:$0xff]
        %v2178 = vld [vmem:[%s2172 + $0x28] sm:$0xff]
        %v2179 = vld [vmem:[%s2172 + $0x30] sm:$0xff]
        %v2180 = vld [vmem:[%s2172 + $0x38] sm:$0xff]
        %s2181 = scalar_lea.vmem [#allocation14], 5
        %v2182 = vld [vmem:[%s2181] sm:$0x1]
        %v2184 = vsel %vm1272, %v2168, 0
        %v2187 = vsel %vm1272, %v2169, 0
        %v2190 = vsel %vm1272, %v2170, 0
        %v2193 = vsel %vm1272, %v2171, 0
        %2195 = vmatpush.msra.mxu0 0.0
        %2196 = vmatpush.msra.mxu0 0.0
        %2197 = vmatpush.msra.mxu0 0.0
        %2198 = vmatpush.msra.mxu0 0.0
        %2199 = vmatpush.msra.mxu0 0.0
        %2200 = vmatpush.msra.mxu0 0.0
        %2201 = vmatpush.msra.mxu0 0.0
        %2202 = vmatpush.msra.mxu0 0.0
        %2203 = vmatpush.msra.mxu0 %v2180
        %2204 = vmatpush.msra.mxu0 %v2179
        %2205 = vmatpush.msra.mxu0 %v2178
        %2206 = vmatpush.msra.mxu0 %v2177
        %2207 = vmatpush.msra.mxu0 %v2176
        %2208 = vmatpush.msra.mxu0 %v2175
        %2209 = vmatpush.msra.mxu0 %v2174
        %2210 = vmatpush.msra.mxu0 %v2173
        %2211 = vmatmul.f32.gmra.mxu0 %v2184
        %v2212 = vpop.f32.mrf.mxu0
        %v2213 = vadd.f32 0.0, %v2212
        %2214 = vmatmul.f32.gmra.mxu0 %v2187
        %v2215 = vpop.f32.mrf.mxu0
        %v2216 = vadd.f32 0.0, %v2215
        %2217 = vmatmul.f32.gmra.mxu0 %v2190
        %v2218 = vpop.f32.mrf.mxu0
        %v2219 = vadd.f32 0.0, %v2218
        %2220 = vmatmul.f32.gmra.mxu0 %v2193
        %v2221 = vpop.f32.mrf.mxu0
        %v2222 = vadd.f32 0.0, %v2221
        %2223 = vdwg.mxu0
        %v2225 = vperm.slane %v2182, 0
        %2227 = vmatpush.msra.mxu0 0.0
        %2228 = vmatpush.msra.mxu0 0.0
        %2229 = vmatpush.msra.mxu0 0.0
        %2230 = vmatpush.msra.mxu0 0.0
        %2231 = vmatpush.msra.mxu0 0.0
        %2232 = vmatpush.msra.mxu0 0.0
        %2233 = vmatpush.msra.mxu0 0.0
        %2234 = vmatpush.msra.mxu0 0.0
        %2235 = vmatpush.msra.mxu0 0.0
        %2236 = vmatpush.msra.mxu0 0.0
        %2237 = vmatpush.msra.mxu0 0.0
        %2238 = vmatpush.msra.mxu0 0.0
        %2239 = vmatpush.msra.mxu0 %v2222
        %2240 = vmatpush.msra.mxu0 %v2219
        %2241 = vmatpush.msra.mxu0 %v2216
        %2242 = vmatpush.msra.mxu0 %v2213
        %2243 = vmatmul.f32.gmra.mxu0 %v1659
        %v2244 = vpop.f32.mrf.mxu0
        %v2245 = vadd.f32 %v2225, %v2244
        %2246 = vmatmul.f32.gmra.mxu0 %v1662
        %v2247 = vpop.f32.mrf.mxu0
        %v2248 = vadd.f32 %v2225, %v2247
        %2249 = vmatmul.f32.gmra.mxu0 %v1665
        %v2250 = vpop.f32.mrf.mxu0
        %v2251 = vadd.f32 %v2225, %v2250
        %2252 = vmatmul.f32.gmra.mxu0 %v1668
        %v2253 = vpop.f32.mrf.mxu0
        %v2254 = vadd.f32 %v2225, %v2253
        %2255 = vdwg.mxu0
        %v2256 = vmax.f32 %v2245, 0.0
        %v2257 = vmax.f32 %v2248, 0.0
        %v2258 = vmax.f32 %v2251, 0.0
        %v2259 = vmax.f32 %v2254, 0.0
        %s2260 = scalar_lea.vmem [#allocation13], 1152
        %v2261 = vld [vmem:[%s2260] sm:$0xff]
        %v2262 = vld [vmem:[%s2260 + $0x8] sm:$0xff]
        %v2263 = vld [vmem:[%s2260 + $0x10] sm:$0xff]
        %v2264 = vld [vmem:[%s2260 + $0x18] sm:$0xff]
        %v2265 = vld [vmem:[%s2260 + $0x20] sm:$0xff]
        %v2266 = vld [vmem:[%s2260 + $0x28] sm:$0xff]
        %v2267 = vld [vmem:[%s2260 + $0x30] sm:$0xff]
        %v2268 = vld [vmem:[%s2260 + $0x38] sm:$0xff]
        %s2269 = scalar_lea.vmem [#allocation14], 6
        %v2270 = vld [vmem:[%s2269] sm:$0x1]
        %v2272 = vsel %vm1272, %v2256, 0
        %v2275 = vsel %vm1272, %v2257, 0
        %v2278 = vsel %vm1272, %v2258, 0
        %v2281 = vsel %vm1272, %v2259, 0
        %2283 = vmatpush.msra.mxu0 0.0
        %2284 = vmatpush.msra.mxu0 0.0
        %2285 = vmatpush.msra.mxu0 0.0
        %2286 = vmatpush.msra.mxu0 0.0
        %2287 = vmatpush.msra.mxu0 0.0
        %2288 = vmatpush.msra.mxu0 0.0
        %2289 = vmatpush.msra.mxu0 0.0
        %2290 = vmatpush.msra.mxu0 0.0
        %2291 = vmatpush.msra.mxu0 %v2268
        %2292 = vmatpush.msra.mxu0 %v2267
        %2293 = vmatpush.msra.mxu0 %v2266
        %2294 = vmatpush.msra.mxu0 %v2265
        %2295 = vmatpush.msra.mxu0 %v2264
        %2296 = vmatpush.msra.mxu0 %v2263
        %2297 = vmatpush.msra.mxu0 %v2262
        %2298 = vmatpush.msra.mxu0 %v2261
        %2299 = vmatmul.f32.gmra.mxu0 %v2272
        %v2300 = vpop.f32.mrf.mxu0
        %v2301 = vadd.f32 0.0, %v2300
        %2302 = vmatmul.f32.gmra.mxu0 %v2275
        %v2303 = vpop.f32.mrf.mxu0
        %v2304 = vadd.f32 0.0, %v2303
        %2305 = vmatmul.f32.gmra.mxu0 %v2278
        %v2306 = vpop.f32.mrf.mxu0
        %v2307 = vadd.f32 0.0, %v2306
        %2308 = vmatmul.f32.gmra.mxu0 %v2281
        %v2309 = vpop.f32.mrf.mxu0
        %v2310 = vadd.f32 0.0, %v2309
        %2311 = vdwg.mxu0
        %v2313 = vperm.slane %v2270, 0
        %2315 = vmatpush.msra.mxu0 0.0
        %2316 = vmatpush.msra.mxu0 0.0
        %2317 = vmatpush.msra.mxu0 0.0
        %2318 = vmatpush.msra.mxu0 0.0
        %2319 = vmatpush.msra.mxu0 0.0
        %2320 = vmatpush.msra.mxu0 0.0
        %2321 = vmatpush.msra.mxu0 0.0
        %2322 = vmatpush.msra.mxu0 0.0
        %2323 = vmatpush.msra.mxu0 0.0
        %2324 = vmatpush.msra.mxu0 0.0
        %2325 = vmatpush.msra.mxu0 0.0
        %2326 = vmatpush.msra.mxu0 0.0
        %2327 = vmatpush.msra.mxu0 %v2310
        %2328 = vmatpush.msra.mxu0 %v2307
        %2329 = vmatpush.msra.mxu0 %v2304
        %2330 = vmatpush.msra.mxu0 %v2301
        %2331 = vmatmul.f32.gmra.mxu0 %v1659
        %v2332 = vpop.f32.mrf.mxu0
        %v2333 = vadd.f32 %v2313, %v2332
        %2334 = vmatmul.f32.gmra.mxu0 %v1662
        %v2335 = vpop.f32.mrf.mxu0
        %v2336 = vadd.f32 %v2313, %v2335
        %2337 = vmatmul.f32.gmra.mxu0 %v1665
        %v2338 = vpop.f32.mrf.mxu0
        %v2339 = vadd.f32 %v2313, %v2338
        %2340 = vmatmul.f32.gmra.mxu0 %v1668
        %v2341 = vpop.f32.mrf.mxu0
        %v2342 = vadd.f32 %v2313, %v2341
        %2343 = vdwg.mxu0
        %v2344 = vmax.f32 %v2333, 0.0
        %v2345 = vmax.f32 %v2336, 0.0
        %v2346 = vmax.f32 %v2339, 0.0
        %v2347 = vmax.f32 %v2342, 0.0
        %2348 = vrot.lane.b32.xlu0 %v2256, 64
        %v2349 = vpop.permute.xlu0 %2348
        %2350 = vrot.lane.b32.xlu0 %v2257, 64
        %v2351 = vpop.permute.xlu0 %2350
        %2352 = vrot.lane.b32.xlu0 %v2258, 64
        %v2353 = vpop.permute.xlu0 %2352
        %2354 = vrot.lane.b32.xlu0 %v2259, 64
        %v2355 = vpop.permute.xlu0 %2354
        %v2360 = vsel %vm1272, %v2168, %v2349
        %v2361 = vsel %vm1272, %v2169, %v2351
        %v2362 = vsel %vm1272, %v2170, %v2353
        %v2363 = vsel %vm1272, %v2171, %v2355
        %2364 = vxpose.xlu0.b32.start [1/16] %v2050, 128
        %2365 = vxpose.xlu0.b32.cont [2/16] %v2065, 128
        %2366 = vxpose.xlu0.b32.cont [3/16] %v2080, 128
        %2367 = vxpose.xlu0.b32.cont [4/16] %v2095, 128
        %2368 = vxpose.xlu0.b32.cont [5/16] 0.0, 128
        %2369 = vxpose.xlu0.b32.cont [6/16] 0.0, 128
        %2370 = vxpose.xlu0.b32.cont [7/16] 0.0, 128
        %2371 = vxpose.xlu0.b32.cont [8/16] 0.0, 128
        %2372 = vxpose.xlu0.b32.cont [9/16] 0.0, 128
        %2373 = vxpose.xlu0.b32.cont [10/16] 0.0, 128
        %2374 = vxpose.xlu0.b32.cont [11/16] 0.0, 128
        %2375 = vxpose.xlu0.b32.cont [12/16] 0.0, 128
        %2376 = vxpose.xlu0.b32.cont [13/16] 0.0, 128
        %2377 = vxpose.xlu0.b32.cont [14/16] 0.0, 128
        %2378 = vxpose.xlu0.b32.cont [15/16] 0.0, 128
        %2379 = vxpose.xlu0.b32.end [16/16] 0.0, 128
        %v2380 = vpop.trf.xlu0
        %v2381 = vpop.trf.xlu0
        %v2382 = vpop.trf.xlu0
        %v2383 = vpop.trf.xlu0
        %v2384 = vpop.trf.xlu0
        %v2385 = vpop.trf.xlu0
        %v2386 = vpop.trf.xlu0
        %v2387 = vpop.trf.xlu0
        %v2388 = vpop.trf.xlu0
        %v2389 = vpop.trf.xlu0
        %v2390 = vpop.trf.xlu0
        %v2391 = vpop.trf.xlu0
        %v2392 = vpop.trf.xlu0
        %v2393 = vpop.trf.xlu0
        %v2394 = vpop.trf.xlu0
        %v2395 = vpop.trf.xlu0
        %v2397 = vsel %vm813, %v2380, 0
        %2399 = vmatpush.msra.mxu0 0.0
        %2400 = vmatpush.msra.mxu0 0.0
        %2401 = vmatpush.msra.mxu0 0.0
        %2402 = vmatpush.msra.mxu0 0.0
        %2403 = vmatpush.msra.mxu0 0.0
        %2404 = vmatpush.msra.mxu0 0.0
        %2405 = vmatpush.msra.mxu0 0.0
        %2406 = vmatpush.msra.mxu0 0.0
        %2407 = vmatpush.msra.mxu0 0.0
        %2408 = vmatpush.msra.mxu0 0.0
        %2409 = vmatpush.msra.mxu0 0.0
        %2410 = vmatpush.msra.mxu0 0.0
        %2411 = vmatpush.msra.mxu0 %v2363
        %2412 = vmatpush.msra.mxu0 %v2362
        %2413 = vmatpush.msra.mxu0 %v2361
        %2414 = vmatpush.msra.mxu0 %v2360
        %2415 = vmatmul.f32.gmra.mxu0 %v2397
        %v2416 = vpop.f32.mrf.mxu0
        %v2417 = vadd.f32 0.0, %v2416
        %2418 = vdwg.mxu0
        %2419 = vmatpush.msra.mxu0 0.0
        %2420 = vmatpush.msra.mxu0 0.0
        %2421 = vmatpush.msra.mxu0 0.0
        %2422 = vmatpush.msra.mxu0 0.0
        %2423 = vmatpush.msra.mxu0 0.0
        %2424 = vmatpush.msra.mxu0 0.0
        %2425 = vmatpush.msra.mxu0 0.0
        %2426 = vmatpush.msra.mxu0 0.0
        %2427 = vmatpush.msra.mxu0 0.0
        %2428 = vmatpush.msra.mxu0 0.0
        %2429 = vmatpush.msra.mxu0 0.0
        %2430 = vmatpush.msra.mxu0 0.0
        %2431 = vmatpush.msra.mxu0 %v2347
        %2432 = vmatpush.msra.mxu0 %v2346
        %2433 = vmatpush.msra.mxu0 %v2345
        %2434 = vmatpush.msra.mxu0 %v2344
        %2435 = vmatmul.f32.gmra.mxu0 %v2397
        %v2436 = vpop.f32.mrf.mxu0
        %v2437 = vadd.f32 0.0, %v2436
        %2438 = vdwg.mxu0
        %2439 = vmatpush.msra.mxu0 0.0
        %2440 = vmatpush.msra.mxu0 0.0
        %2441 = vmatpush.msra.mxu0 0.0
        %2442 = vmatpush.msra.mxu0 0.0
        %2443 = vmatpush.msra.mxu0 0.0
        %2444 = vmatpush.msra.mxu0 0.0
        %2445 = vmatpush.msra.mxu0 0.0
        %2446 = vmatpush.msra.mxu0 0.0
        %2447 = vmatpush.msra.mxu0 0.0
        %2448 = vmatpush.msra.mxu0 0.0
        %2449 = vmatpush.msra.mxu0 0.0
        %2450 = vmatpush.msra.mxu0 0.0
        %2451 = vmatpush.msra.mxu0 %v538
        %2452 = vmatpush.msra.mxu0 %v537
        %2453 = vmatpush.msra.mxu0 %v536
        %2454 = vmatpush.msra.mxu0 %v535
        %2455 = vmatmul.f32.gmra.mxu0 %v2397
        %v2456 = vpop.f32.mrf.mxu0
        %v2457 = vadd.f32 0.0, %v2456
        %2458 = vdwg.mxu0
        %v2460 = vsel %vm813, %v2457, 0
        %2462 = vmatpush.msra.mxu0 0.0
        %2463 = vmatpush.msra.mxu0 0.0
        %2464 = vmatpush.msra.mxu0 0.0
        %2465 = vmatpush.msra.mxu0 0.0
        %2466 = vmatpush.msra.mxu0 0.0
        %2467 = vmatpush.msra.mxu0 0.0
        %2468 = vmatpush.msra.mxu0 0.0
        %2469 = vmatpush.msra.mxu0 0.0
        %2470 = vmatpush.msra.mxu0 0.0
        %2471 = vmatpush.msra.mxu0 0.0
        %2472 = vmatpush.msra.mxu0 0.0
        %2473 = vmatpush.msra.mxu0 0.0
        %2474 = vmatpush.msra.mxu0 %v2095
        %2475 = vmatpush.msra.mxu0 %v2080
        %2476 = vmatpush.msra.mxu0 %v2065
        %2477 = vmatpush.msra.mxu0 %v2050
        %2478 = vmatmul.f32.gmra.mxu0 %v2460
        %v2479 = vpop.f32.mrf.mxu0
        %v2480 = vadd.f32 0.0, %v2479
        %2481 = vdwg.mxu0
        %v2482 = vadd.f32 %v2480, %v1513
        %v2483 = vsel %vm1999, %v2482, 0.0
        %2484 = vadd.xlane.f32.xlu0 %v2483
        %v2485 = vpop.xlane.xlu0 %2484
        %v2486 = vmax.f32 %v2485, 1e-12
        %v2487 = vrsqrt.pop %v2486
        %v2488 = vmul.f32 %v2487, %v2486
        %v2489 = vmul.f32 %v2488, %v2487
        %v2490 = vmul.f32 0.5, %v2489
        %v2491 = vsub.f32 1.5, %v2490
        %v2492 = vmul.f32 %v2487, %v2491
        %vm2493 = vweird.f32 %v2486
        %vm2494 = vweird.f32 %v2487
        %vm2495 = vmor %vm2493, %vm2494
        %v2496 = vsel %vm2495, %v2487, %v2492
        %v2497 = vrot.slane %v2483, 4
        %v2498 = vadd.f32 %v2483, %v2497
        %v2499 = vrot.slane %v2498, 2
        %v2500 = vadd.f32 %v2498, %v2499
        %v2501 = vrot.slane %v2500, 1
        %v2502 = vadd.f32 %v2500, %v2501
        %v2503 = vmax.f32 %v2502, 1e-12
        %v2504 = vrsqrt.pop %v2503
        %v2505 = vmul.f32 %v2504, %v2503
        %v2506 = vmul.f32 %v2505, %v2504
        %v2507 = vmul.f32 0.5, %v2506
        %v2508 = vsub.f32 1.5, %v2507
        %v2509 = vmul.f32 %v2504, %v2508
        %vm2510 = vweird.f32 %v2503
        %vm2511 = vweird.f32 %v2504
        %vm2512 = vmor %vm2510, %vm2511
        %v2513 = vsel %vm2512, %v2504, %v2509
        %v2514 = vmul.f32 %v2482, %v2496
        %v2515 = vmul.f32 %v2514, %v2513
        %s2516 = scalar_lea.vmem [#allocation13], 1344
        %v2517 = vld [vmem:[%s2516] sm:$0xff]
        %v2518 = vld [vmem:[%s2516 + $0x8] sm:$0xff]
        %v2519 = vld [vmem:[%s2516 + $0x10] sm:$0xff]
        %v2520 = vld [vmem:[%s2516 + $0x18] sm:$0xff]
        %v2521 = vld [vmem:[%s2516 + $0x20] sm:$0xff]
        %v2522 = vld [vmem:[%s2516 + $0x28] sm:$0xff]
        %v2523 = vld [vmem:[%s2516 + $0x30] sm:$0xff]
        %v2524 = vld [vmem:[%s2516 + $0x38] sm:$0xff]
        %v2525 = vld [vmem:[%s2516 + $0x40] sm:$0xff]
        %v2526 = vld [vmem:[%s2516 + $0x48] sm:$0xff]
        %v2527 = vld [vmem:[%s2516 + $0x50] sm:$0xff]
        %v2528 = vld [vmem:[%s2516 + $0x58] sm:$0xff]
        %v2529 = vld [vmem:[%s2516 + $0x60] sm:$0xff]
        %v2530 = vld [vmem:[%s2516 + $0x68] sm:$0xff]
        %v2531 = vld [vmem:[%s2516 + $0x70] sm:$0xff]
        %v2532 = vld [vmem:[%s2516 + $0x78] sm:$0xff]
        %v2533 = vld [vmem:[%s2516 + $0x80] sm:$0xff]
        %v2534 = vld [vmem:[%s2516 + $0x88] sm:$0xff]
        %v2535 = vld [vmem:[%s2516 + $0x90] sm:$0xff]
        %v2536 = vld [vmem:[%s2516 + $0x98] sm:$0xff]
        %v2537 = vld [vmem:[%s2516 + $0xa0] sm:$0xff]
        %v2538 = vld [vmem:[%s2516 + $0xa8] sm:$0xff]
        %v2539 = vld [vmem:[%s2516 + $0xb0] sm:$0xff]
        %v2540 = vld [vmem:[%s2516 + $0xb8] sm:$0xff]
        %s2541 = scalar_lea.vmem [#allocation14], 7
        %v2542 = vld [vmem:[%s2541] sm:$0x1]
        %v2544 = vsel %vm1272, %v2437, 0
        %2546 = vmatpush.msra.mxu0 %v2532
        %2547 = vmatpush.msra.mxu0 %v2531
        %2548 = vmatpush.msra.mxu0 %v2530
        %2549 = vmatpush.msra.mxu0 %v2529
        %2550 = vmatpush.msra.mxu0 %v2528
        %2551 = vmatpush.msra.mxu0 %v2527
        %2552 = vmatpush.msra.mxu0 %v2526
        %2553 = vmatpush.msra.mxu0 %v2525
        %2554 = vmatpush.msra.mxu0 %v2524
        %2555 = vmatpush.msra.mxu0 %v2523
        %2556 = vmatpush.msra.mxu0 %v2522
        %2557 = vmatpush.msra.mxu0 %v2521
        %2558 = vmatpush.msra.mxu0 %v2520
        %2559 = vmatpush.msra.mxu0 %v2519
        %2560 = vmatpush.msra.mxu0 %v2518
        %2561 = vmatpush.msra.mxu0 %v2517
        %2562 = vmatmul.f32.gmra.mxu0 %v2417
        %v2563 = vpop.f32.mrf.mxu0
        %v2564 = vadd.f32 0.0, %v2563
        %2565 = vdwg.mxu0
        %2566 = vmatpush.msra.mxu0 0.0
        %2567 = vmatpush.msra.mxu0 0.0
        %2568 = vmatpush.msra.mxu0 0.0
        %2569 = vmatpush.msra.mxu0 0.0
        %2570 = vmatpush.msra.mxu0 0.0
        %2571 = vmatpush.msra.mxu0 0.0
        %2572 = vmatpush.msra.mxu0 0.0
        %2573 = vmatpush.msra.mxu0 0.0
        %2574 = vmatpush.msra.mxu0 %v2540
        %2575 = vmatpush.msra.mxu0 %v2539
        %2576 = vmatpush.msra.mxu0 %v2538
        %2577 = vmatpush.msra.mxu0 %v2537
        %2578 = vmatpush.msra.mxu0 %v2536
        %2579 = vmatpush.msra.mxu0 %v2535
        %2580 = vmatpush.msra.mxu0 %v2534
        %2581 = vmatpush.msra.mxu0 %v2533
        %2582 = vmatmul.f32.gmra.mxu0 %v2544
        %v2583 = vpop.f32.mrf.mxu0
        %v2584 = vadd.f32 %v2564, %v2583
        %2585 = vdwg.mxu0
        %v2587 = vperm.slane %v2542, 0
        %v2590 = vsel %vm1999, %v2515, 0
        %2592 = vmatpush.msra.mxu0 0.0
        %2593 = vmatpush.msra.mxu0 0.0
        %2594 = vmatpush.msra.mxu0 0.0
        %2595 = vmatpush.msra.mxu0 0.0
        %2596 = vmatpush.msra.mxu0 0.0
        %2597 = vmatpush.msra.mxu0 0.0
        %2598 = vmatpush.msra.mxu0 0.0
        %2599 = vmatpush.msra.mxu0 0.0
        %2600 = vmatpush.msra.mxu0 0.0
        %2601 = vmatpush.msra.mxu0 0.0
        %2602 = vmatpush.msra.mxu0 0.0
        %2603 = vmatpush.msra.mxu0 0.0
        %2604 = vmatpush.msra.mxu0 0.0
        %2605 = vmatpush.msra.mxu0 0.0
        %2606 = vmatpush.msra.mxu0 0.0
        %2607 = vmatpush.msra.mxu0 %v2584
        %2608 = vmatmul.f32.gmra.mxu0 %v2590
        %v2609 = vpop.f32.mrf.mxu0
        %v2610 = vadd.f32 %v2587, %v2609
        %2611 = vdwg.mxu0
        %v2612 = vmax.f32 %v2610, 0.0
        %s2613 = scalar_lea.vmem [#allocation13], 1536
        %v2614 = vld [vmem:[%s2613] sm:$0xff]
        %v2615 = vld [vmem:[%s2613 + $0x8] sm:$0xff]
        %v2616 = vld [vmem:[%s2613 + $0x10] sm:$0xff]
        %v2617 = vld [vmem:[%s2613 + $0x18] sm:$0xff]
        %v2618 = vld [vmem:[%s2613 + $0x20] sm:$0xff]
        %v2619 = vld [vmem:[%s2613 + $0x28] sm:$0xff]
        %v2620 = vld [vmem:[%s2613 + $0x30] sm:$0xff]
        %v2621 = vld [vmem:[%s2613 + $0x38] sm:$0xff]
        %s2622 = scalar_lea.vmem [#allocation14], 8
        %v2623 = vld [vmem:[%s2622] sm:$0x1]
        %v2625 = vsel %vm1272, %v2612, 0
        %2627 = vmatpush.msra.mxu0 0.0
        %2628 = vmatpush.msra.mxu0 0.0
        %2629 = vmatpush.msra.mxu0 0.0
        %2630 = vmatpush.msra.mxu0 0.0
        %2631 = vmatpush.msra.mxu0 0.0
        %2632 = vmatpush.msra.mxu0 0.0
        %2633 = vmatpush.msra.mxu0 0.0
        %2634 = vmatpush.msra.mxu0 0.0
        %2635 = vmatpush.msra.mxu0 %v2621
        %2636 = vmatpush.msra.mxu0 %v2620
        %2637 = vmatpush.msra.mxu0 %v2619
        %2638 = vmatpush.msra.mxu0 %v2618
        %2639 = vmatpush.msra.mxu0 %v2617
        %2640 = vmatpush.msra.mxu0 %v2616
        %2641 = vmatpush.msra.mxu0 %v2615
        %2642 = vmatpush.msra.mxu0 %v2614
        %2643 = vmatmul.f32.gmra.mxu0 %v2625
        %v2644 = vpop.f32.mrf.mxu0
        %v2645 = vadd.f32 0.0, %v2644
        %2646 = vdwg.mxu0
        %v2648 = vperm.slane %v2623, 0
        %2650 = vmatpush.msra.mxu0 0.0
        %2651 = vmatpush.msra.mxu0 0.0
        %2652 = vmatpush.msra.mxu0 0.0
        %2653 = vmatpush.msra.mxu0 0.0
        %2654 = vmatpush.msra.mxu0 0.0
        %2655 = vmatpush.msra.mxu0 0.0
        %2656 = vmatpush.msra.mxu0 0.0
        %2657 = vmatpush.msra.mxu0 0.0
        %2658 = vmatpush.msra.mxu0 0.0
        %2659 = vmatpush.msra.mxu0 0.0
        %2660 = vmatpush.msra.mxu0 0.0
        %2661 = vmatpush.msra.mxu0 0.0
        %2662 = vmatpush.msra.mxu0 0.0
        %2663 = vmatpush.msra.mxu0 0.0
        %2664 = vmatpush.msra.mxu0 0.0
        %2665 = vmatpush.msra.mxu0 %v2645
        %2666 = vmatmul.f32.gmra.mxu0 %v2590
        %v2667 = vpop.f32.mrf.mxu0
        %v2668 = vadd.f32 %v2648, %v2667
        %2669 = vdwg.mxu0
        %v2670 = vmax.f32 %v2668, 0.0
        %s2671 = scalar_lea.vmem [#allocation13], 1728
        %v2672 = vld [vmem:[%s2671] sm:$0xff]
        %v2673 = vld [vmem:[%s2671 + $0x8] sm:$0xff]
        %v2674 = vld [vmem:[%s2671 + $0x10] sm:$0xff]
        %v2675 = vld [vmem:[%s2671 + $0x18] sm:$0xff]
        %v2676 = vld [vmem:[%s2671 + $0x20] sm:$0xff]
        %v2677 = vld [vmem:[%s2671 + $0x28] sm:$0xff]
        %v2678 = vld [vmem:[%s2671 + $0x30] sm:$0xff]
        %v2679 = vld [vmem:[%s2671 + $0x38] sm:$0xff]
        %s2680 = scalar_lea.vmem [#allocation14], 9
        %v2681 = vld [vmem:[%s2680] sm:$0x1]
        %v2683 = vsel %vm1272, %v2670, 0
        %2685 = vmatpush.msra.mxu0 0.0
        %2686 = vmatpush.msra.mxu0 0.0
        %2687 = vmatpush.msra.mxu0 0.0
        %2688 = vmatpush.msra.mxu0 0.0
        %2689 = vmatpush.msra.mxu0 0.0
        %2690 = vmatpush.msra.mxu0 0.0
        %2691 = vmatpush.msra.mxu0 0.0
        %2692 = vmatpush.msra.mxu0 0.0
        %2693 = vmatpush.msra.mxu0 %v2679
        %2694 = vmatpush.msra.mxu0 %v2678
        %2695 = vmatpush.msra.mxu0 %v2677
        %2696 = vmatpush.msra.mxu0 %v2676
        %2697 = vmatpush.msra.mxu0 %v2675
        %2698 = vmatpush.msra.mxu0 %v2674
        %2699 = vmatpush.msra.mxu0 %v2673
        %2700 = vmatpush.msra.mxu0 %v2672
        %2701 = vmatmul.f32.gmra.mxu0 %v2683
        %v2702 = vpop.f32.mrf.mxu0
        %v2703 = vadd.f32 0.0, %v2702
        %2704 = vdwg.mxu0
        %v2706 = vperm.slane %v2681, 0
        %2708 = vmatpush.msra.mxu0 0.0
        %2709 = vmatpush.msra.mxu0 0.0
        %2710 = vmatpush.msra.mxu0 0.0
        %2711 = vmatpush.msra.mxu0 0.0
        %2712 = vmatpush.msra.mxu0 0.0
        %2713 = vmatpush.msra.mxu0 0.0
        %2714 = vmatpush.msra.mxu0 0.0
        %2715 = vmatpush.msra.mxu0 0.0
        %2716 = vmatpush.msra.mxu0 0.0
        %2717 = vmatpush.msra.mxu0 0.0
        %2718 = vmatpush.msra.mxu0 0.0
        %2719 = vmatpush.msra.mxu0 0.0
        %2720 = vmatpush.msra.mxu0 0.0
        %2721 = vmatpush.msra.mxu0 0.0
        %2722 = vmatpush.msra.mxu0 0.0
        %2723 = vmatpush.msra.mxu0 %v2703
        %2724 = vmatmul.f32.gmra.mxu0 %v2590
        %v2725 = vpop.f32.mrf.mxu0
        %v2726 = vadd.f32 %v2706, %v2725
        %2727 = vdwg.mxu0
        %v2728 = vmax.f32 %v2726, 0.0
        %2729 = vrot.lane.b32.xlu0 %v2670, 64
        %v2730 = vpop.permute.xlu0 %2729
        %v2732 = vsel %vm1272, %v2612, %v2730
        %s2733 = scalar_lea.vmem [#allocation13], 1920
        %v2734 = vld [vmem:[%s2733] sm:$0xff]
        %v2735 = vld [vmem:[%s2733 + $0x8] sm:$0xff]
        %v2736 = vld [vmem:[%s2733 + $0x10] sm:$0xff]
        %v2737 = vld [vmem:[%s2733 + $0x18] sm:$0xff]
        %v2738 = vld [vmem:[%s2733 + $0x20] sm:$0xff]
        %v2739 = vld [vmem:[%s2733 + $0x28] sm:$0xff]
        %v2740 = vld [vmem:[%s2733 + $0x30] sm:$0xff]
        %v2741 = vld [vmem:[%s2733 + $0x38] sm:$0xff]
        %v2742 = vld [vmem:[%s2733 + $0x40] sm:$0xff]
        %v2743 = vld [vmem:[%s2733 + $0x48] sm:$0xff]
        %v2744 = vld [vmem:[%s2733 + $0x50] sm:$0xff]
        %v2745 = vld [vmem:[%s2733 + $0x58] sm:$0xff]
        %v2746 = vld [vmem:[%s2733 + $0x60] sm:$0xff]
        %v2747 = vld [vmem:[%s2733 + $0x68] sm:$0xff]
        %v2748 = vld [vmem:[%s2733 + $0x70] sm:$0xff]
        %v2749 = vld [vmem:[%s2733 + $0x78] sm:$0xff]
        %v2750 = vld [vmem:[%s2733 + $0x80] sm:$0xff]
        %v2751 = vld [vmem:[%s2733 + $0x88] sm:$0xff]
        %v2752 = vld [vmem:[%s2733 + $0x90] sm:$0xff]
        %v2753 = vld [vmem:[%s2733 + $0x98] sm:$0xff]
        %v2754 = vld [vmem:[%s2733 + $0xa0] sm:$0xff]
        %v2755 = vld [vmem:[%s2733 + $0xa8] sm:$0xff]
        %v2756 = vld [vmem:[%s2733 + $0xb0] sm:$0xff]
        %v2757 = vld [vmem:[%s2733 + $0xb8] sm:$0xff]
        %s2758 = scalar_lea.vmem [#allocation14], 10
        %v2759 = vld [vmem:[%s2758] sm:$0x1]
        %v2761 = vperm.slane %v2759, 0
        %v2764 = vsel %vm1272, %v2728, 0
        %2766 = vmatpush.msra.mxu0 %v2749
        %2767 = vmatpush.msra.mxu0 %v2748
        %2768 = vmatpush.msra.mxu0 %v2747
        %2769 = vmatpush.msra.mxu0 %v2746
        %2770 = vmatpush.msra.mxu0 %v2745
        %2771 = vmatpush.msra.mxu0 %v2744
        %2772 = vmatpush.msra.mxu0 %v2743
        %2773 = vmatpush.msra.mxu0 %v2742
        %2774 = vmatpush.msra.mxu0 %v2741
        %2775 = vmatpush.msra.mxu0 %v2740
        %2776 = vmatpush.msra.mxu0 %v2739
        %2777 = vmatpush.msra.mxu0 %v2738
        %2778 = vmatpush.msra.mxu0 %v2737
        %2779 = vmatpush.msra.mxu0 %v2736
        %2780 = vmatpush.msra.mxu0 %v2735
        %2781 = vmatpush.msra.mxu0 %v2734
        %2782 = vmatmul.f32.gmra.mxu0 %v2732
        %v2783 = vpop.f32.mrf.mxu0
        %v2784 = vadd.f32 %v2761, %v2783
        %2785 = vdwg.mxu0
        %2786 = vmatpush.msra.mxu0 0.0
        %2787 = vmatpush.msra.mxu0 0.0
        %2788 = vmatpush.msra.mxu0 0.0
        %2789 = vmatpush.msra.mxu0 0.0
        %2790 = vmatpush.msra.mxu0 0.0
        %2791 = vmatpush.msra.mxu0 0.0
        %2792 = vmatpush.msra.mxu0 0.0
        %2793 = vmatpush.msra.mxu0 0.0
        %2794 = vmatpush.msra.mxu0 %v2757
        %2795 = vmatpush.msra.mxu0 %v2756
        %2796 = vmatpush.msra.mxu0 %v2755
        %2797 = vmatpush.msra.mxu0 %v2754
        %2798 = vmatpush.msra.mxu0 %v2753
        %2799 = vmatpush.msra.mxu0 %v2752
        %2800 = vmatpush.msra.mxu0 %v2751
        %2801 = vmatpush.msra.mxu0 %v2750
        %2802 = vmatmul.f32.gmra.mxu0 %v2764
        %v2803 = vpop.f32.mrf.mxu0
        %v2804 = vadd.f32 %v2784, %v2803
        %2805 = vdwg.mxu0
        %v2806 = vmax.f32 %v2804, 0.0
        %vm2807 = vcmask 15360
        %v2808 = vsel %vm2807, %v2806, -inf
        %2809 = vmax.xlane.f32.xlu0 %v2808
        %v2810 = vpop.xlane.xlu0 %2809
        %v2811 = vsub.f32 %v2806, %v2810
        %v2812 = vmul.f32 %v2811, 1.442695
        %v2813 = vpow.pop %v2812
        %v2814 = vsel %vm2807, %v2813, 0.0
        %2815 = vadd.xlane.f32.xlu0 %v2814
        %v2816 = vpop.xlane.xlu0 %2815
        %v2817 = vrcp.pop %v2816
        %v2818 = vmul.f32 %v2816, %v2817
        %v2819 = vsub.f32 1.0, %v2818
        %v2820 = vmul.f32 %v2817, %v2819
        %v2821 = vadd.f32 %v2817, %v2820
        %vm2822 = vweird.f32 %v2816
        %vm2823 = vweird.f32 %v2817
        %vm2824 = vmor %vm2822, %vm2823
        %v2825 = vsel %vm2824, %v2817, %v2821
        %v2826 = vand.u32 2147483647, %v2816
        %vm2827 = vcmp.eq.f32.partialorder %v2826, 8.507059e+37
        %v2828 = vand.u32 %v2816, 2147483648
        %v2829 = vor.u32 1.1754944e-38, %v2828
        %v2830 = vsel %vm2827, %v2829, %v2825
        %v2831 = vmul.f32 %v2813, %v2830
        %s2832 = scalar_lea.vmem [#allocation13], 2112
        %v2833 = vld [vmem:[%s2832] sm:$0xff]
        %v2834 = vld [vmem:[%s2832 + $0x8] sm:$0xff]
        %v2835 = vld [vmem:[%s2832 + $0x10] sm:$0xff]
        %v2836 = vld [vmem:[%s2832 + $0x18] sm:$0xff]
        %v2837 = vld [vmem:[%s2832 + $0x20] sm:$0xff]
        %v2838 = vld [vmem:[%s2832 + $0x28] sm:$0xff]
        %v2839 = vld [vmem:[%s2832 + $0x30] sm:$0xff]
        %v2840 = vld [vmem:[%s2832 + $0x38] sm:$0xff]
        %v2841 = vld [vmem:[%s2832 + $0x40] sm:$0xff]
        %v2842 = vld [vmem:[%s2832 + $0x48] sm:$0xff]
        %v2843 = vld [vmem:[%s2832 + $0x50] sm:$0xff]
        %v2844 = vld [vmem:[%s2832 + $0x58] sm:$0xff]
        %v2845 = vld [vmem:[%s2832 + $0x60] sm:$0xff]
        %v2846 = vld [vmem:[%s2832 + $0x68] sm:$0xff]
        %v2847 = vld [vmem:[%s2832 + $0x70] sm:$0xff]
        %v2848 = vld [vmem:[%s2832 + $0x78] sm:$0xff]
        %v2849 = vld [vmem:[%s2832 + $0x80] sm:$0xff]
        %v2850 = vld [vmem:[%s2832 + $0x88] sm:$0xff]
        %v2851 = vld [vmem:[%s2832 + $0x90] sm:$0xff]
        %v2852 = vld [vmem:[%s2832 + $0x98] sm:$0xff]
        %v2853 = vld [vmem:[%s2832 + $0xa0] sm:$0xff]
        %v2854 = vld [vmem:[%s2832 + $0xa8] sm:$0xff]
        %v2855 = vld [vmem:[%s2832 + $0xb0] sm:$0xff]
        %v2856 = vld [vmem:[%s2832 + $0xb8] sm:$0xff]
        %s2857 = scalar_lea.vmem [#allocation14], 11
        %v2858 = vld [vmem:[%s2857] sm:$0x1]
        %2859 = vmatpush.msra.mxu0 %v2848
        %2860 = vmatpush.msra.mxu0 %v2847
        %2861 = vmatpush.msra.mxu0 %v2846
        %2862 = vmatpush.msra.mxu0 %v2845
        %2863 = vmatpush.msra.mxu0 %v2844
        %2864 = vmatpush.msra.mxu0 %v2843
        %2865 = vmatpush.msra.mxu0 %v2842
        %2866 = vmatpush.msra.mxu0 %v2841
        %2867 = vmatpush.msra.mxu0 %v2840
        %2868 = vmatpush.msra.mxu0 %v2839
        %2869 = vmatpush.msra.mxu0 %v2838
        %2870 = vmatpush.msra.mxu0 %v2837
        %2871 = vmatpush.msra.mxu0 %v2836
        %2872 = vmatpush.msra.mxu0 %v2835
        %2873 = vmatpush.msra.mxu0 %v2834
        %2874 = vmatpush.msra.mxu0 %v2833
        %2875 = vmatmul.f32.gmra.mxu0 %v2417
        %v2876 = vpop.f32.mrf.mxu0
        %v2877 = vadd.f32 0.0, %v2876
        %2878 = vdwg.mxu0
        %2879 = vmatpush.msra.mxu0 0.0
        %2880 = vmatpush.msra.mxu0 0.0
        %2881 = vmatpush.msra.mxu0 0.0
        %2882 = vmatpush.msra.mxu0 0.0
        %2883 = vmatpush.msra.mxu0 0.0
        %2884 = vmatpush.msra.mxu0 0.0
        %2885 = vmatpush.msra.mxu0 0.0
        %2886 = vmatpush.msra.mxu0 0.0
        %2887 = vmatpush.msra.mxu0 %v2856
        %2888 = vmatpush.msra.mxu0 %v2855
        %2889 = vmatpush.msra.mxu0 %v2854
        %2890 = vmatpush.msra.mxu0 %v2853
        %2891 = vmatpush.msra.mxu0 %v2852
        %2892 = vmatpush.msra.mxu0 %v2851
        %2893 = vmatpush.msra.mxu0 %v2850
        %2894 = vmatpush.msra.mxu0 %v2849
        %2895 = vmatmul.f32.gmra.mxu0 %v2544
        %v2896 = vpop.f32.mrf.mxu0
        %v2897 = vadd.f32 %v2877, %v2896
        %2898 = vdwg.mxu0
        %v2900 = vperm.slane %v2858, 0
        %2902 = vmatpush.msra.mxu0 0.0
        %2903 = vmatpush.msra.mxu0 0.0
        %2904 = vmatpush.msra.mxu0 0.0
        %2905 = vmatpush.msra.mxu0 0.0
        %2906 = vmatpush.msra.mxu0 0.0
        %2907 = vmatpush.msra.mxu0 0.0
        %2908 = vmatpush.msra.mxu0 0.0
        %2909 = vmatpush.msra.mxu0 0.0
        %2910 = vmatpush.msra.mxu0 0.0
        %2911 = vmatpush.msra.mxu0 0.0
        %2912 = vmatpush.msra.mxu0 0.0
        %2913 = vmatpush.msra.mxu0 0.0
        %2914 = vmatpush.msra.mxu0 0.0
        %2915 = vmatpush.msra.mxu0 0.0
        %2916 = vmatpush.msra.mxu0 0.0
        %2917 = vmatpush.msra.mxu0 %v2897
        %2918 = vmatmul.f32.gmra.mxu0 %v2590
        %v2919 = vpop.f32.mrf.mxu0
        %v2920 = vadd.f32 %v2900, %v2919
        %2921 = vdwg.mxu0
        %v2922 = vmax.f32 %v2920, 0.0
        %s2923 = scalar_lea.vmem [#allocation13], 2304
        %v2924 = vld [vmem:[%s2923] sm:$0xff]
        %v2925 = vld [vmem:[%s2923 + $0x8] sm:$0xff]
        %v2926 = vld [vmem:[%s2923 + $0x10] sm:$0xff]
        %v2927 = vld [vmem:[%s2923 + $0x18] sm:$0xff]
        %v2928 = vld [vmem:[%s2923 + $0x20] sm:$0xff]
        %v2929 = vld [vmem:[%s2923 + $0x28] sm:$0xff]
        %v2930 = vld [vmem:[%s2923 + $0x30] sm:$0xff]
        %v2931 = vld [vmem:[%s2923 + $0x38] sm:$0xff]
        %s2932 = scalar_lea.vmem [#allocation14], 12
        %v2933 = vld [vmem:[%s2932] sm:$0x1]
        %v2935 = vsel %vm1272, %v2922, 0
        %2937 = vmatpush.msra.mxu0 0.0
        %2938 = vmatpush.msra.mxu0 0.0
        %2939 = vmatpush.msra.mxu0 0.0
        %2940 = vmatpush.msra.mxu0 0.0
        %2941 = vmatpush.msra.mxu0 0.0
        %2942 = vmatpush.msra.mxu0 0.0
        %2943 = vmatpush.msra.mxu0 0.0
        %2944 = vmatpush.msra.mxu0 0.0
        %2945 = vmatpush.msra.mxu0 %v2931
        %2946 = vmatpush.msra.mxu0 %v2930
        %2947 = vmatpush.msra.mxu0 %v2929
        %2948 = vmatpush.msra.mxu0 %v2928
        %2949 = vmatpush.msra.mxu0 %v2927
        %2950 = vmatpush.msra.mxu0 %v2926
        %2951 = vmatpush.msra.mxu0 %v2925
        %2952 = vmatpush.msra.mxu0 %v2924
        %2953 = vmatmul.f32.gmra.mxu0 %v2935
        %v2954 = vpop.f32.mrf.mxu0
        %v2955 = vadd.f32 0.0, %v2954
        %2956 = vdwg.mxu0
        %v2958 = vperm.slane %v2933, 0
        %2960 = vmatpush.msra.mxu0 0.0
        %2961 = vmatpush.msra.mxu0 0.0
        %2962 = vmatpush.msra.mxu0 0.0
        %2963 = vmatpush.msra.mxu0 0.0
        %2964 = vmatpush.msra.mxu0 0.0
        %2965 = vmatpush.msra.mxu0 0.0
        %2966 = vmatpush.msra.mxu0 0.0
        %2967 = vmatpush.msra.mxu0 0.0
        %2968 = vmatpush.msra.mxu0 0.0
        %2969 = vmatpush.msra.mxu0 0.0
        %2970 = vmatpush.msra.mxu0 0.0
        %2971 = vmatpush.msra.mxu0 0.0
        %2972 = vmatpush.msra.mxu0 0.0
        %2973 = vmatpush.msra.mxu0 0.0
        %2974 = vmatpush.msra.mxu0 0.0
        %2975 = vmatpush.msra.mxu0 %v2955
        %2976 = vmatmul.f32.gmra.mxu0 %v2590
        %v2977 = vpop.f32.mrf.mxu0
        %v2978 = vadd.f32 %v2958, %v2977
        %2979 = vdwg.mxu0
        %v2980 = vmax.f32 %v2978, 0.0
        %s2981 = scalar_lea.vmem [#allocation13], 2496
        %v2982 = vld [vmem:[%s2981] sm:$0xff]
        %v2983 = vld [vmem:[%s2981 + $0x8] sm:$0xff]
        %v2984 = vld [vmem:[%s2981 + $0x10] sm:$0xff]
        %v2985 = vld [vmem:[%s2981 + $0x18] sm:$0xff]
        %v2986 = vld [vmem:[%s2981 + $0x20] sm:$0xff]
        %v2987 = vld [vmem:[%s2981 + $0x28] sm:$0xff]
        %v2988 = vld [vmem:[%s2981 + $0x30] sm:$0xff]
        %v2989 = vld [vmem:[%s2981 + $0x38] sm:$0xff]
        %s2990 = scalar_lea.vmem [#allocation14], 13
        %v2991 = vld [vmem:[%s2990] sm:$0x1]
        %v2993 = vsel %vm1272, %v2980, 0
        %2995 = vmatpush.msra.mxu0 0.0
        %2996 = vmatpush.msra.mxu0 0.0
        %2997 = vmatpush.msra.mxu0 0.0
        %2998 = vmatpush.msra.mxu0 0.0
        %2999 = vmatpush.msra.mxu0 0.0
        %3000 = vmatpush.msra.mxu0 0.0
        %3001 = vmatpush.msra.mxu0 0.0
        %3002 = vmatpush.msra.mxu0 0.0
        %3003 = vmatpush.msra.mxu0 %v2989
        %3004 = vmatpush.msra.mxu0 %v2988
        %3005 = vmatpush.msra.mxu0 %v2987
        %3006 = vmatpush.msra.mxu0 %v2986
        %3007 = vmatpush.msra.mxu0 %v2985
        %3008 = vmatpush.msra.mxu0 %v2984
        %3009 = vmatpush.msra.mxu0 %v2983
        %3010 = vmatpush.msra.mxu0 %v2982
        %3011 = vmatmul.f32.gmra.mxu0 %v2993
        %v3012 = vpop.f32.mrf.mxu0
        %v3013 = vadd.f32 0.0, %v3012
        %3014 = vdwg.mxu0
        %v3016 = vperm.slane %v2991, 0
        %3018 = vmatpush.msra.mxu0 0.0
        %3019 = vmatpush.msra.mxu0 0.0
        %3020 = vmatpush.msra.mxu0 0.0
        %3021 = vmatpush.msra.mxu0 0.0
        %3022 = vmatpush.msra.mxu0 0.0
        %3023 = vmatpush.msra.mxu0 0.0
        %3024 = vmatpush.msra.mxu0 0.0
        %3025 = vmatpush.msra.mxu0 0.0
        %3026 = vmatpush.msra.mxu0 0.0
        %3027 = vmatpush.msra.mxu0 0.0
        %3028 = vmatpush.msra.mxu0 0.0
        %3029 = vmatpush.msra.mxu0 0.0
        %3030 = vmatpush.msra.mxu0 0.0
        %3031 = vmatpush.msra.mxu0 0.0
        %3032 = vmatpush.msra.mxu0 0.0
        %3033 = vmatpush.msra.mxu0 %v3013
        %3034 = vmatmul.f32.gmra.mxu0 %v2590
        %v3035 = vpop.f32.mrf.mxu0
        %v3036 = vadd.f32 %v3016, %v3035
        %3037 = vdwg.mxu0
        %v3038 = vmax.f32 %v3036, 0.0
        %3039 = vrot.lane.b32.xlu0 %v2980, 64
        %v3040 = vpop.permute.xlu0 %3039
        %v3042 = vsel %vm1272, %v2922, %v3040
        %3043 = vxpose.xlu0.b32.start [1/16] %v2831, 128
        %3044 = vxpose.xlu0.b32.cont [2/16] 0.0, 128
        %3045 = vxpose.xlu0.b32.cont [3/16] 0.0, 128
        %3046 = vxpose.xlu0.b32.cont [4/16] 0.0, 128
        %3047 = vxpose.xlu0.b32.cont [5/16] 0.0, 128
        %3048 = vxpose.xlu0.b32.cont [6/16] 0.0, 128
        %3049 = vxpose.xlu0.b32.cont [7/16] 0.0, 128
        %3050 = vxpose.xlu0.b32.cont [8/16] 0.0, 128
        %3051 = vxpose.xlu0.b32.cont [9/16] 0.0, 128
        %3052 = vxpose.xlu0.b32.cont [10/16] 0.0, 128
        %3053 = vxpose.xlu0.b32.cont [11/16] 0.0, 128
        %3054 = vxpose.xlu0.b32.cont [12/16] 0.0, 128
        %3055 = vxpose.xlu0.b32.cont [13/16] 0.0, 128
        %3056 = vxpose.xlu0.b32.cont [14/16] 0.0, 128
        %3057 = vxpose.xlu0.b32.cont [15/16] 0.0, 128
        %3058 = vxpose.xlu0.b32.end [16/16] 0.0, 128
        %v3059 = vpop.trf.xlu0
        %v3060 = vpop.trf.xlu0
        %v3061 = vpop.trf.xlu0
        %v3062 = vpop.trf.xlu0
        %v3063 = vpop.trf.xlu0
        %v3064 = vpop.trf.xlu0
        %v3065 = vpop.trf.xlu0
        %v3066 = vpop.trf.xlu0
        %v3067 = vpop.trf.xlu0
        %v3068 = vpop.trf.xlu0
        %v3069 = vpop.trf.xlu0
        %v3070 = vpop.trf.xlu0
        %v3071 = vpop.trf.xlu0
        %v3072 = vpop.trf.xlu0
        %v3073 = vpop.trf.xlu0
        %v3074 = vpop.trf.xlu0
        %v3076 = vsel %vm1999, %v3059, 0
        %3078 = vmatpush.msra.mxu0 0.0
        %3079 = vmatpush.msra.mxu0 0.0
        %3080 = vmatpush.msra.mxu0 0.0
        %3081 = vmatpush.msra.mxu0 0.0
        %3082 = vmatpush.msra.mxu0 0.0
        %3083 = vmatpush.msra.mxu0 0.0
        %3084 = vmatpush.msra.mxu0 0.0
        %3085 = vmatpush.msra.mxu0 0.0
        %3086 = vmatpush.msra.mxu0 0.0
        %3087 = vmatpush.msra.mxu0 0.0
        %3088 = vmatpush.msra.mxu0 0.0
        %3089 = vmatpush.msra.mxu0 0.0
        %3090 = vmatpush.msra.mxu0 0.0
        %3091 = vmatpush.msra.mxu0 0.0
        %3092 = vmatpush.msra.mxu0 0.0
        %3093 = vmatpush.msra.mxu0 %v3042
        %3094 = vmatmul.f32.gmra.mxu0 %v3076
        %v3095 = vpop.f32.mrf.mxu0
        %v3096 = vadd.f32 0.0, %v3095
        %3097 = vdwg.mxu0
        %3098 = vmatpush.msra.mxu0 0.0
        %3099 = vmatpush.msra.mxu0 0.0
        %3100 = vmatpush.msra.mxu0 0.0
        %3101 = vmatpush.msra.mxu0 0.0
        %3102 = vmatpush.msra.mxu0 0.0
        %3103 = vmatpush.msra.mxu0 0.0
        %3104 = vmatpush.msra.mxu0 0.0
        %3105 = vmatpush.msra.mxu0 0.0
        %3106 = vmatpush.msra.mxu0 0.0
        %3107 = vmatpush.msra.mxu0 0.0
        %3108 = vmatpush.msra.mxu0 0.0
        %3109 = vmatpush.msra.mxu0 0.0
        %3110 = vmatpush.msra.mxu0 0.0
        %3111 = vmatpush.msra.mxu0 0.0
        %3112 = vmatpush.msra.mxu0 0.0
        %3113 = vmatpush.msra.mxu0 %v3038
        %3114 = vmatmul.f32.gmra.mxu0 %v3076
        %v3115 = vpop.f32.mrf.mxu0
        %v3116 = vadd.f32 0.0, %v3115
        %3117 = vdwg.mxu0
        %3118 = vmatpush.msra.mxu0 0.0
        %3119 = vmatpush.msra.mxu0 0.0
        %3120 = vmatpush.msra.mxu0 0.0
        %3121 = vmatpush.msra.mxu0 0.0
        %3122 = vmatpush.msra.mxu0 0.0
        %3123 = vmatpush.msra.mxu0 0.0
        %3124 = vmatpush.msra.mxu0 0.0
        %3125 = vmatpush.msra.mxu0 0.0
        %3126 = vmatpush.msra.mxu0 0.0
        %3127 = vmatpush.msra.mxu0 0.0
        %3128 = vmatpush.msra.mxu0 0.0
        %3129 = vmatpush.msra.mxu0 0.0
        %3130 = vmatpush.msra.mxu0 0.0
        %3131 = vmatpush.msra.mxu0 0.0
        %3132 = vmatpush.msra.mxu0 0.0
        %3133 = vmatpush.msra.mxu0 %v2480
        %3134 = vmatmul.f32.gmra.mxu0 %v3076
        %v3135 = vpop.f32.mrf.mxu0
        %v3136 = vadd.f32 0.0, %v3135
        %3137 = vdwg.mxu0
        %v3139 = vsel %vm1999, %v3136, 0
        %3141 = vmatpush.msra.mxu0 0.0
        %3142 = vmatpush.msra.mxu0 0.0
        %3143 = vmatpush.msra.mxu0 0.0
        %3144 = vmatpush.msra.mxu0 0.0
        %3145 = vmatpush.msra.mxu0 0.0
        %3146 = vmatpush.msra.mxu0 0.0
        %3147 = vmatpush.msra.mxu0 0.0
        %3148 = vmatpush.msra.mxu0 0.0
        %3149 = vmatpush.msra.mxu0 0.0
        %3150 = vmatpush.msra.mxu0 0.0
        %3151 = vmatpush.msra.mxu0 0.0
        %3152 = vmatpush.msra.mxu0 0.0
        %3153 = vmatpush.msra.mxu0 0.0
        %3154 = vmatpush.msra.mxu0 0.0
        %3155 = vmatpush.msra.mxu0 0.0
        %3156 = vmatpush.msra.mxu0 %v2831
        %3157 = vmatmul.f32.gmra.mxu0 %v3139
        %v3158 = vpop.f32.mrf.mxu0
        %v3159 = vadd.f32 0.0, %v3158
        %3160 = vdwg.mxu0
        %v3161 = vadd.f32 %v3159, %v1513
        %vm3162 = vcmask 9216
        %v3163 = vsel %vm3162, %v3161, 0.0
        %3164 = vadd.xlane.f32.xlu0 %v3163
        %v3165 = vpop.xlane.xlu0 %3164
        %v3166 = vmax.f32 %v3165, 1e-12
        %v3167 = vrsqrt.pop %v3166
        %v3168 = vmul.f32 %v3167, %v3166
        %v3169 = vmul.f32 %v3168, %v3167
        %v3170 = vmul.f32 0.5, %v3169
        %v3171 = vsub.f32 1.5, %v3170
        %v3172 = vmul.f32 %v3167, %v3171
        %vm3173 = vweird.f32 %v3166
        %vm3174 = vweird.f32 %v3167
        %vm3175 = vmor %vm3173, %vm3174
        %v3176 = vsel %vm3175, %v3167, %v3172
        %v3177 = vrot.slane %v3163, 4
        %v3178 = vadd.f32 %v3163, %v3177
        %v3179 = vrot.slane %v3178, 2
        %v3180 = vadd.f32 %v3178, %v3179
        %v3181 = vrot.slane %v3180, 1
        %v3182 = vadd.f32 %v3180, %v3181
        %v3183 = vmax.f32 %v3182, 1e-12
        %v3184 = vrsqrt.pop %v3183
        %v3185 = vmul.f32 %v3184, %v3183
        %v3186 = vmul.f32 %v3185, %v3184
        %v3187 = vmul.f32 0.5, %v3186
        %v3188 = vsub.f32 1.5, %v3187
        %v3189 = vmul.f32 %v3184, %v3188
        %vm3190 = vweird.f32 %v3183
        %vm3191 = vweird.f32 %v3184
        %vm3192 = vmor %vm3190, %vm3191
        %v3193 = vsel %vm3192, %v3184, %v3189
        %v3194 = vmul.f32 %v3161, %v3176
        %v3195 = vmul.f32 %v3194, %v3193
        %s3196 = scalar_lea.vmem [#allocation13], 2688
        %v3197 = vld [vmem:[%s3196] sm:$0xff]
        %v3198 = vld [vmem:[%s3196 + $0x8] sm:$0xff]
        %v3199 = vld [vmem:[%s3196 + $0x10] sm:$0xff]
        %v3200 = vld [vmem:[%s3196 + $0x18] sm:$0xff]
        %v3201 = vld [vmem:[%s3196 + $0x20] sm:$0xff]
        %v3202 = vld [vmem:[%s3196 + $0x28] sm:$0xff]
        %v3203 = vld [vmem:[%s3196 + $0x30] sm:$0xff]
        %v3204 = vld [vmem:[%s3196 + $0x38] sm:$0xff]
        %v3205 = vld [vmem:[%s3196 + $0x40] sm:$0xff]
        %v3206 = vld [vmem:[%s3196 + $0x48] sm:$0xff]
        %v3207 = vld [vmem:[%s3196 + $0x50] sm:$0xff]
        %v3208 = vld [vmem:[%s3196 + $0x58] sm:$0xff]
        %v3209 = vld [vmem:[%s3196 + $0x60] sm:$0xff]
        %v3210 = vld [vmem:[%s3196 + $0x68] sm:$0xff]
        %v3211 = vld [vmem:[%s3196 + $0x70] sm:$0xff]
        %v3212 = vld [vmem:[%s3196 + $0x78] sm:$0xff]
        %v3213 = vld [vmem:[%s3196 + $0x80] sm:$0xff]
        %v3214 = vld [vmem:[%s3196 + $0x88] sm:$0xff]
        %v3215 = vld [vmem:[%s3196 + $0x90] sm:$0xff]
        %v3216 = vld [vmem:[%s3196 + $0x98] sm:$0xff]
        %v3217 = vld [vmem:[%s3196 + $0xa0] sm:$0xff]
        %v3218 = vld [vmem:[%s3196 + $0xa8] sm:$0xff]
        %v3219 = vld [vmem:[%s3196 + $0xb0] sm:$0xff]
        %v3220 = vld [vmem:[%s3196 + $0xb8] sm:$0xff]
        %s3221 = scalar_lea.vmem [#allocation14], 14
        %v3222 = vld [vmem:[%s3221] sm:$0x1]
        %v3224 = vsel %vm1272, %v3116, 0
        %3226 = vmatpush.msra.mxu0 %v3212
        %3227 = vmatpush.msra.mxu0 %v3211
        %3228 = vmatpush.msra.mxu0 %v3210
        %3229 = vmatpush.msra.mxu0 %v3209
        %3230 = vmatpush.msra.mxu0 %v3208
        %3231 = vmatpush.msra.mxu0 %v3207
        %3232 = vmatpush.msra.mxu0 %v3206
        %3233 = vmatpush.msra.mxu0 %v3205
        %3234 = vmatpush.msra.mxu0 %v3204
        %3235 = vmatpush.msra.mxu0 %v3203
        %3236 = vmatpush.msra.mxu0 %v3202
        %3237 = vmatpush.msra.mxu0 %v3201
        %3238 = vmatpush.msra.mxu0 %v3200
        %3239 = vmatpush.msra.mxu0 %v3199
        %3240 = vmatpush.msra.mxu0 %v3198
        %3241 = vmatpush.msra.mxu0 %v3197
        %3242 = vmatmul.f32.gmra.mxu0 %v3096
        %v3243 = vpop.f32.mrf.mxu0
        %v3244 = vadd.f32 0.0, %v3243
        %3245 = vdwg.mxu0
        %3246 = vmatpush.msra.mxu0 0.0
        %3247 = vmatpush.msra.mxu0 0.0
        %3248 = vmatpush.msra.mxu0 0.0
        %3249 = vmatpush.msra.mxu0 0.0
        %3250 = vmatpush.msra.mxu0 0.0
        %3251 = vmatpush.msra.mxu0 0.0
        %3252 = vmatpush.msra.mxu0 0.0
        %3253 = vmatpush.msra.mxu0 0.0
        %3254 = vmatpush.msra.mxu0 %v3220
        %3255 = vmatpush.msra.mxu0 %v3219
        %3256 = vmatpush.msra.mxu0 %v3218
        %3257 = vmatpush.msra.mxu0 %v3217
        %3258 = vmatpush.msra.mxu0 %v3216
        %3259 = vmatpush.msra.mxu0 %v3215
        %3260 = vmatpush.msra.mxu0 %v3214
        %3261 = vmatpush.msra.mxu0 %v3213
        %3262 = vmatmul.f32.gmra.mxu0 %v3224
        %v3263 = vpop.f32.mrf.mxu0
        %v3264 = vadd.f32 %v3244, %v3263
        %3265 = vdwg.mxu0
        %v3267 = vperm.slane %v3222, 0
        %v3270 = vsel %vm2807, %v3195, 0
        %vm3272 = vcmask 1041408
        %v3274 = vsel %vm3272, %v3264, 0
        %3276 = vmatpush.msra.mxu0 0.0
        %3277 = vmatpush.msra.mxu0 0.0
        %3278 = vmatpush.msra.mxu0 0.0
        %3279 = vmatpush.msra.mxu0 0.0
        %3280 = vmatpush.msra.mxu0 0.0
        %3281 = vmatpush.msra.mxu0 0.0
        %3282 = vmatpush.msra.mxu0 0.0
        %3283 = vmatpush.msra.mxu0 0.0
        %3284 = vmatpush.msra.mxu0 0.0
        %3285 = vmatpush.msra.mxu0 0.0
        %3286 = vmatpush.msra.mxu0 0.0
        %3287 = vmatpush.msra.mxu0 0.0
        %3288 = vmatpush.msra.mxu0 0.0
        %3289 = vmatpush.msra.mxu0 0.0
        %3290 = vmatpush.msra.mxu0 0.0
        %3291 = vmatpush.msra.mxu0 %v3274
        %3292 = vmatmul.f32.gmra.mxu0 %v3270
        %v3293 = vpop.f32.mrf.mxu0
        %v3294 = vadd.f32 %v3267, %v3293
        %3295 = vdwg.mxu0
        %v3296 = vmax.f32 %v3294, 0.0
        %s3297 = scalar_lea.vmem [#allocation13], 2880
        %v3298 = vld [vmem:[%s3297] sm:$0xff]
        %v3299 = vld [vmem:[%s3297 + $0x8] sm:$0xff]
        %v3300 = vld [vmem:[%s3297 + $0x10] sm:$0xff]
        %v3301 = vld [vmem:[%s3297 + $0x18] sm:$0xff]
        %v3302 = vld [vmem:[%s3297 + $0x20] sm:$0xff]
        %v3303 = vld [vmem:[%s3297 + $0x28] sm:$0xff]
        %v3304 = vld [vmem:[%s3297 + $0x30] sm:$0xff]
        %v3305 = vld [vmem:[%s3297 + $0x38] sm:$0xff]
        %s3306 = scalar_lea.vmem [#allocation14], 15
        %v3307 = vld [vmem:[%s3306] sm:$0x1]
        %v3309 = vsel %vm1272, %v3296, 0
        %3311 = vmatpush.msra.mxu0 0.0
        %3312 = vmatpush.msra.mxu0 0.0
        %3313 = vmatpush.msra.mxu0 0.0
        %3314 = vmatpush.msra.mxu0 0.0
        %3315 = vmatpush.msra.mxu0 0.0
        %3316 = vmatpush.msra.mxu0 0.0
        %3317 = vmatpush.msra.mxu0 0.0
        %3318 = vmatpush.msra.mxu0 0.0
        %3319 = vmatpush.msra.mxu0 %v3305
        %3320 = vmatpush.msra.mxu0 %v3304
        %3321 = vmatpush.msra.mxu0 %v3303
        %3322 = vmatpush.msra.mxu0 %v3302
        %3323 = vmatpush.msra.mxu0 %v3301
        %3324 = vmatpush.msra.mxu0 %v3300
        %3325 = vmatpush.msra.mxu0 %v3299
        %3326 = vmatpush.msra.mxu0 %v3298
        %3327 = vmatmul.f32.gmra.mxu0 %v3309
        %v3328 = vpop.f32.mrf.mxu0
        %v3329 = vadd.f32 0.0, %v3328
        %3330 = vdwg.mxu0
        %v3332 = vperm.slane %v3307, 0
        %v3335 = vsel %vm3272, %v3329, 0
        %3337 = vmatpush.msra.mxu0 0.0
        %3338 = vmatpush.msra.mxu0 0.0
        %3339 = vmatpush.msra.mxu0 0.0
        %3340 = vmatpush.msra.mxu0 0.0
        %3341 = vmatpush.msra.mxu0 0.0
        %3342 = vmatpush.msra.mxu0 0.0
        %3343 = vmatpush.msra.mxu0 0.0
        %3344 = vmatpush.msra.mxu0 0.0
        %3345 = vmatpush.msra.mxu0 0.0
        %3346 = vmatpush.msra.mxu0 0.0
        %3347 = vmatpush.msra.mxu0 0.0
        %3348 = vmatpush.msra.mxu0 0.0
        %3349 = vmatpush.msra.mxu0 0.0
        %3350 = vmatpush.msra.mxu0 0.0
        %3351 = vmatpush.msra.mxu0 0.0
        %3352 = vmatpush.msra.mxu0 %v3335
        %3353 = vmatmul.f32.gmra.mxu0 %v3270
        %v3354 = vpop.f32.mrf.mxu0
        %v3355 = vadd.f32 %v3332, %v3354
        %3356 = vdwg.mxu0
        %v3357 = vmax.f32 %v3355, 0.0
        %s3358 = scalar_lea.vmem [#allocation13], 3072
        %v3359 = vld [vmem:[%s3358] sm:$0xff]
        %v3360 = vld [vmem:[%s3358 + $0x8] sm:$0xff]
        %v3361 = vld [vmem:[%s3358 + $0x10] sm:$0xff]
        %v3362 = vld [vmem:[%s3358 + $0x18] sm:$0xff]
        %v3363 = vld [vmem:[%s3358 + $0x20] sm:$0xff]
        %v3364 = vld [vmem:[%s3358 + $0x28] sm:$0xff]
        %v3365 = vld [vmem:[%s3358 + $0x30] sm:$0xff]
        %v3366 = vld [vmem:[%s3358 + $0x38] sm:$0xff]
        %s3367 = scalar_lea.vmem [#allocation14], 16
        %v3368 = vld [vmem:[%s3367] sm:$0x1]
        %v3370 = vsel %vm1272, %v3357, 0
        %3372 = vmatpush.msra.mxu0 0.0
        %3373 = vmatpush.msra.mxu0 0.0
        %3374 = vmatpush.msra.mxu0 0.0
        %3375 = vmatpush.msra.mxu0 0.0
        %3376 = vmatpush.msra.mxu0 0.0
        %3377 = vmatpush.msra.mxu0 0.0
        %3378 = vmatpush.msra.mxu0 0.0
        %3379 = vmatpush.msra.mxu0 0.0
        %3380 = vmatpush.msra.mxu0 %v3366
        %3381 = vmatpush.msra.mxu0 %v3365
        %3382 = vmatpush.msra.mxu0 %v3364
        %3383 = vmatpush.msra.mxu0 %v3363
        %3384 = vmatpush.msra.mxu0 %v3362
        %3385 = vmatpush.msra.mxu0 %v3361
        %3386 = vmatpush.msra.mxu0 %v3360
        %3387 = vmatpush.msra.mxu0 %v3359
        %3388 = vmatmul.f32.gmra.mxu0 %v3370
        %v3389 = vpop.f32.mrf.mxu0
        %v3390 = vadd.f32 0.0, %v3389
        %3391 = vdwg.mxu0
        %v3393 = vperm.slane %v3368, 0
        %v3396 = vsel %vm3272, %v3390, 0
        %3398 = vmatpush.msra.mxu0 0.0
        %3399 = vmatpush.msra.mxu0 0.0
        %3400 = vmatpush.msra.mxu0 0.0
        %3401 = vmatpush.msra.mxu0 0.0
        %3402 = vmatpush.msra.mxu0 0.0
        %3403 = vmatpush.msra.mxu0 0.0
        %3404 = vmatpush.msra.mxu0 0.0
        %3405 = vmatpush.msra.mxu0 0.0
        %3406 = vmatpush.msra.mxu0 0.0
        %3407 = vmatpush.msra.mxu0 0.0
        %3408 = vmatpush.msra.mxu0 0.0
        %3409 = vmatpush.msra.mxu0 0.0
        %3410 = vmatpush.msra.mxu0 0.0
        %3411 = vmatpush.msra.mxu0 0.0
        %3412 = vmatpush.msra.mxu0 0.0
        %3413 = vmatpush.msra.mxu0 %v3396
        %3414 = vmatmul.f32.gmra.mxu0 %v3270
        %v3415 = vpop.f32.mrf.mxu0
        %v3416 = vadd.f32 %v3393, %v3415
        %3417 = vdwg.mxu0
        %v3418 = vmax.f32 %v3416, 0.0
        %3419 = vrot.lane.b32.xlu0 %v3357, 64
        %v3420 = vpop.permute.xlu0 %3419
        %v3422 = vsel %vm1272, %v3296, %v3420
        %s3423 = scalar_lea.vmem [#allocation13], 3264
        %v3424 = vld [vmem:[%s3423] sm:$0xff]
        %v3425 = vld [vmem:[%s3423 + $0x8] sm:$0xff]
        %v3426 = vld [vmem:[%s3423 + $0x10] sm:$0xff]
        %v3427 = vld [vmem:[%s3423 + $0x18] sm:$0xff]
        %v3428 = vld [vmem:[%s3423 + $0x20] sm:$0xff]
        %v3429 = vld [vmem:[%s3423 + $0x28] sm:$0xff]
        %v3430 = vld [vmem:[%s3423 + $0x30] sm:$0xff]
        %v3431 = vld [vmem:[%s3423 + $0x38] sm:$0xff]
        %v3432 = vld [vmem:[%s3423 + $0x40] sm:$0xff]
        %v3433 = vld [vmem:[%s3423 + $0x48] sm:$0xff]
        %v3434 = vld [vmem:[%s3423 + $0x50] sm:$0xff]
        %v3435 = vld [vmem:[%s3423 + $0x58] sm:$0xff]
        %v3436 = vld [vmem:[%s3423 + $0x60] sm:$0xff]
        %v3437 = vld [vmem:[%s3423 + $0x68] sm:$0xff]
        %v3438 = vld [vmem:[%s3423 + $0x70] sm:$0xff]
        %v3439 = vld [vmem:[%s3423 + $0x78] sm:$0xff]
        %v3440 = vld [vmem:[%s3423 + $0x80] sm:$0xff]
        %v3441 = vld [vmem:[%s3423 + $0x88] sm:$0xff]
        %v3442 = vld [vmem:[%s3423 + $0x90] sm:$0xff]
        %v3443 = vld [vmem:[%s3423 + $0x98] sm:$0xff]
        %v3444 = vld [vmem:[%s3423 + $0xa0] sm:$0xff]
        %v3445 = vld [vmem:[%s3423 + $0xa8] sm:$0xff]
        %v3446 = vld [vmem:[%s3423 + $0xb0] sm:$0xff]
        %v3447 = vld [vmem:[%s3423 + $0xb8] sm:$0xff]
        %s3448 = scalar_lea.vmem [#allocation14], 17
        %v3449 = vld [vmem:[%s3448] sm:$0x1]
        %v3451 = vperm.slane %v3449, 0
        %v3454 = vsel %vm1272, %v3418, 0
        %3456 = vmatpush.msra.mxu0 %v3439
        %3457 = vmatpush.msra.mxu0 %v3438
        %3458 = vmatpush.msra.mxu0 %v3437
        %3459 = vmatpush.msra.mxu0 %v3436
        %3460 = vmatpush.msra.mxu0 %v3435
        %3461 = vmatpush.msra.mxu0 %v3434
        %3462 = vmatpush.msra.mxu0 %v3433
        %3463 = vmatpush.msra.mxu0 %v3432
        %3464 = vmatpush.msra.mxu0 %v3431
        %3465 = vmatpush.msra.mxu0 %v3430
        %3466 = vmatpush.msra.mxu0 %v3429
        %3467 = vmatpush.msra.mxu0 %v3428
        %3468 = vmatpush.msra.mxu0 %v3427
        %3469 = vmatpush.msra.mxu0 %v3426
        %3470 = vmatpush.msra.mxu0 %v3425
        %3471 = vmatpush.msra.mxu0 %v3424
        %3472 = vmatmul.f32.gmra.mxu0 %v3422
        %v3473 = vpop.f32.mrf.mxu0
        %v3474 = vadd.f32 %v3451, %v3473
        %3475 = vdwg.mxu0
        %3476 = vmatpush.msra.mxu0 0.0
        %3477 = vmatpush.msra.mxu0 0.0
        %3478 = vmatpush.msra.mxu0 0.0
        %3479 = vmatpush.msra.mxu0 0.0
        %3480 = vmatpush.msra.mxu0 0.0
        %3481 = vmatpush.msra.mxu0 0.0
        %3482 = vmatpush.msra.mxu0 0.0
        %3483 = vmatpush.msra.mxu0 0.0
        %3484 = vmatpush.msra.mxu0 %v3447
        %3485 = vmatpush.msra.mxu0 %v3446
        %3486 = vmatpush.msra.mxu0 %v3445
        %3487 = vmatpush.msra.mxu0 %v3444
        %3488 = vmatpush.msra.mxu0 %v3443
        %3489 = vmatpush.msra.mxu0 %v3442
        %3490 = vmatpush.msra.mxu0 %v3441
        %3491 = vmatpush.msra.mxu0 %v3440
        %3492 = vmatmul.f32.gmra.mxu0 %v3454
        %v3493 = vpop.f32.mrf.mxu0
        %v3494 = vadd.f32 %v3474, %v3493
        %3495 = vdwg.mxu0
        %v3496 = vmax.f32 %v3494, 0.0
        %vm3497 = vcmask 123904
        %v3498 = vsel %vm3497, %v3496, -inf
        %3499 = vmax.xlane.f32.xlu0 %v3498
        %v3500 = vpop.xlane.xlu0 %3499
        %v3501 = vsub.f32 %v3496, %v3500
        %v3502 = vmul.f32 %v3501, 1.442695
        %v3503 = vpow.pop %v3502
        %v3504 = vsel %vm3497, %v3503, 0.0
        %3505 = vadd.xlane.f32.xlu0 %v3504
        %v3506 = vpop.xlane.xlu0 %3505
        %v3507 = vrcp.pop %v3506
        %v3508 = vmul.f32 %v3506, %v3507
        %v3509 = vsub.f32 1.0, %v3508
        %v3510 = vmul.f32 %v3507, %v3509
        %v3511 = vadd.f32 %v3507, %v3510
        %vm3512 = vweird.f32 %v3506
        %vm3513 = vweird.f32 %v3507
        %vm3514 = vmor %vm3512, %vm3513
        %v3515 = vsel %vm3514, %v3507, %v3511
        %v3516 = vand.u32 2147483647, %v3506
        %vm3517 = vcmp.eq.f32.partialorder %v3516, 8.507059e+37
        %v3518 = vand.u32 %v3506, 2147483648
        %v3519 = vor.u32 1.1754944e-38, %v3518
        %v3520 = vsel %vm3517, %v3519, %v3515
        %v3521 = vmul.f32 %v3503, %v3520
        %s3522 = scalar_lea.vmem [#allocation13], 3456
        %v3523 = vld [vmem:[%s3522] sm:$0xff]
        %v3524 = vld [vmem:[%s3522 + $0x8] sm:$0xff]
        %v3525 = vld [vmem:[%s3522 + $0x10] sm:$0xff]
        %v3526 = vld [vmem:[%s3522 + $0x18] sm:$0xff]
        %v3527 = vld [vmem:[%s3522 + $0x20] sm:$0xff]
        %v3528 = vld [vmem:[%s3522 + $0x28] sm:$0xff]
        %v3529 = vld [vmem:[%s3522 + $0x30] sm:$0xff]
        %v3530 = vld [vmem:[%s3522 + $0x38] sm:$0xff]
        %v3531 = vld [vmem:[%s3522 + $0x40] sm:$0xff]
        %v3532 = vld [vmem:[%s3522 + $0x48] sm:$0xff]
        %v3533 = vld [vmem:[%s3522 + $0x50] sm:$0xff]
        %v3534 = vld [vmem:[%s3522 + $0x58] sm:$0xff]
        %v3535 = vld [vmem:[%s3522 + $0x60] sm:$0xff]
        %v3536 = vld [vmem:[%s3522 + $0x68] sm:$0xff]
        %v3537 = vld [vmem:[%s3522 + $0x70] sm:$0xff]
        %v3538 = vld [vmem:[%s3522 + $0x78] sm:$0xff]
        %v3539 = vld [vmem:[%s3522 + $0x80] sm:$0xff]
        %v3540 = vld [vmem:[%s3522 + $0x88] sm:$0xff]
        %v3541 = vld [vmem:[%s3522 + $0x90] sm:$0xff]
        %v3542 = vld [vmem:[%s3522 + $0x98] sm:$0xff]
        %v3543 = vld [vmem:[%s3522 + $0xa0] sm:$0xff]
        %v3544 = vld [vmem:[%s3522 + $0xa8] sm:$0xff]
        %v3545 = vld [vmem:[%s3522 + $0xb0] sm:$0xff]
        %v3546 = vld [vmem:[%s3522 + $0xb8] sm:$0xff]
        %s3547 = scalar_lea.vmem [#allocation14], 18
        %v3548 = vld [vmem:[%s3547] sm:$0x1]
        %3549 = vmatpush.msra.mxu0 %v3538
        %3550 = vmatpush.msra.mxu0 %v3537
        %3551 = vmatpush.msra.mxu0 %v3536
        %3552 = vmatpush.msra.mxu0 %v3535
        %3553 = vmatpush.msra.mxu0 %v3534
        %3554 = vmatpush.msra.mxu0 %v3533
        %3555 = vmatpush.msra.mxu0 %v3532
        %3556 = vmatpush.msra.mxu0 %v3531
        %3557 = vmatpush.msra.mxu0 %v3530
        %3558 = vmatpush.msra.mxu0 %v3529
        %3559 = vmatpush.msra.mxu0 %v3528
        %3560 = vmatpush.msra.mxu0 %v3527
        %3561 = vmatpush.msra.mxu0 %v3526
        %3562 = vmatpush.msra.mxu0 %v3525
        %3563 = vmatpush.msra.mxu0 %v3524
        %3564 = vmatpush.msra.mxu0 %v3523
        %3565 = vmatmul.f32.gmra.mxu0 %v3096
        %v3566 = vpop.f32.mrf.mxu0
        %v3567 = vadd.f32 0.0, %v3566
        %3568 = vdwg.mxu0
        %3569 = vmatpush.msra.mxu0 0.0
        %3570 = vmatpush.msra.mxu0 0.0
        %3571 = vmatpush.msra.mxu0 0.0
        %3572 = vmatpush.msra.mxu0 0.0
        %3573 = vmatpush.msra.mxu0 0.0
        %3574 = vmatpush.msra.mxu0 0.0
        %3575 = vmatpush.msra.mxu0 0.0
        %3576 = vmatpush.msra.mxu0 0.0
        %3577 = vmatpush.msra.mxu0 %v3546
        %3578 = vmatpush.msra.mxu0 %v3545
        %3579 = vmatpush.msra.mxu0 %v3544
        %3580 = vmatpush.msra.mxu0 %v3543
        %3581 = vmatpush.msra.mxu0 %v3542
        %3582 = vmatpush.msra.mxu0 %v3541
        %3583 = vmatpush.msra.mxu0 %v3540
        %3584 = vmatpush.msra.mxu0 %v3539
        %3585 = vmatmul.f32.gmra.mxu0 %v3224
        %v3586 = vpop.f32.mrf.mxu0
        %v3587 = vadd.f32 %v3567, %v3586
        %3588 = vdwg.mxu0
        %v3590 = vperm.slane %v3548, 0
        %v3593 = vsel %vm3272, %v3587, 0
        %3595 = vmatpush.msra.mxu0 0.0
        %3596 = vmatpush.msra.mxu0 0.0
        %3597 = vmatpush.msra.mxu0 0.0
        %3598 = vmatpush.msra.mxu0 0.0
        %3599 = vmatpush.msra.mxu0 0.0
        %3600 = vmatpush.msra.mxu0 0.0
        %3601 = vmatpush.msra.mxu0 0.0
        %3602 = vmatpush.msra.mxu0 0.0
        %3603 = vmatpush.msra.mxu0 0.0
        %3604 = vmatpush.msra.mxu0 0.0
        %3605 = vmatpush.msra.mxu0 0.0
        %3606 = vmatpush.msra.mxu0 0.0
        %3607 = vmatpush.msra.mxu0 0.0
        %3608 = vmatpush.msra.mxu0 0.0
        %3609 = vmatpush.msra.mxu0 0.0
        %3610 = vmatpush.msra.mxu0 %v3593
        %3611 = vmatmul.f32.gmra.mxu0 %v3270
        %v3612 = vpop.f32.mrf.mxu0
        %v3613 = vadd.f32 %v3590, %v3612
        %3614 = vdwg.mxu0
        %v3615 = vmax.f32 %v3613, 0.0
        %s3616 = scalar_lea.vmem [#allocation13], 3648
        %v3617 = vld [vmem:[%s3616] sm:$0xff]
        %v3618 = vld [vmem:[%s3616 + $0x8] sm:$0xff]
        %v3619 = vld [vmem:[%s3616 + $0x10] sm:$0xff]
        %v3620 = vld [vmem:[%s3616 + $0x18] sm:$0xff]
        %v3621 = vld [vmem:[%s3616 + $0x20] sm:$0xff]
        %v3622 = vld [vmem:[%s3616 + $0x28] sm:$0xff]
        %v3623 = vld [vmem:[%s3616 + $0x30] sm:$0xff]
        %v3624 = vld [vmem:[%s3616 + $0x38] sm:$0xff]
        %s3625 = scalar_lea.vmem [#allocation14], 19
        %v3626 = vld [vmem:[%s3625] sm:$0x1]
        %v3628 = vsel %vm1272, %v3615, 0
        %3630 = vmatpush.msra.mxu0 0.0
        %3631 = vmatpush.msra.mxu0 0.0
        %3632 = vmatpush.msra.mxu0 0.0
        %3633 = vmatpush.msra.mxu0 0.0
        %3634 = vmatpush.msra.mxu0 0.0
        %3635 = vmatpush.msra.mxu0 0.0
        %3636 = vmatpush.msra.mxu0 0.0
        %3637 = vmatpush.msra.mxu0 0.0
        %3638 = vmatpush.msra.mxu0 %v3624
        %3639 = vmatpush.msra.mxu0 %v3623
        %3640 = vmatpush.msra.mxu0 %v3622
        %3641 = vmatpush.msra.mxu0 %v3621
        %3642 = vmatpush.msra.mxu0 %v3620
        %3643 = vmatpush.msra.mxu0 %v3619
        %3644 = vmatpush.msra.mxu0 %v3618
        %3645 = vmatpush.msra.mxu0 %v3617
        %3646 = vmatmul.f32.gmra.mxu0 %v3628
        %v3647 = vpop.f32.mrf.mxu0
        %v3648 = vadd.f32 0.0, %v3647
        %3649 = vdwg.mxu0
        %v3651 = vperm.slane %v3626, 0
        %v3654 = vsel %vm3272, %v3648, 0
        %3656 = vmatpush.msra.mxu0 0.0
        %3657 = vmatpush.msra.mxu0 0.0
        %3658 = vmatpush.msra.mxu0 0.0
        %3659 = vmatpush.msra.mxu0 0.0
        %3660 = vmatpush.msra.mxu0 0.0
        %3661 = vmatpush.msra.mxu0 0.0
        %3662 = vmatpush.msra.mxu0 0.0
        %3663 = vmatpush.msra.mxu0 0.0
        %3664 = vmatpush.msra.mxu0 0.0
        %3665 = vmatpush.msra.mxu0 0.0
        %3666 = vmatpush.msra.mxu0 0.0
        %3667 = vmatpush.msra.mxu0 0.0
        %3668 = vmatpush.msra.mxu0 0.0
        %3669 = vmatpush.msra.mxu0 0.0
        %3670 = vmatpush.msra.mxu0 0.0
        %3671 = vmatpush.msra.mxu0 %v3654
        %3672 = vmatmul.f32.gmra.mxu0 %v3270
        %v3673 = vpop.f32.mrf.mxu0
        %v3674 = vadd.f32 %v3651, %v3673
        %3675 = vdwg.mxu0
        %v3676 = vmax.f32 %v3674, 0.0
        %s3677 = scalar_lea.vmem [#allocation13], 3840
        %v3678 = vld [vmem:[%s3677] sm:$0xff]
        %v3679 = vld [vmem:[%s3677 + $0x8] sm:$0xff]
        %v3680 = vld [vmem:[%s3677 + $0x10] sm:$0xff]
        %v3681 = vld [vmem:[%s3677 + $0x18] sm:$0xff]
        %v3682 = vld [vmem:[%s3677 + $0x20] sm:$0xff]
        %v3683 = vld [vmem:[%s3677 + $0x28] sm:$0xff]
        %v3684 = vld [vmem:[%s3677 + $0x30] sm:$0xff]
        %v3685 = vld [vmem:[%s3677 + $0x38] sm:$0xff]
        %s3686 = scalar_lea.vmem [#allocation14], 20
        %v3687 = vld [vmem:[%s3686] sm:$0x1]
        %v3689 = vsel %vm1272, %v3676, 0
        %3691 = vmatpush.msra.mxu0 0.0
        %3692 = vmatpush.msra.mxu0 0.0
        %3693 = vmatpush.msra.mxu0 0.0
        %3694 = vmatpush.msra.mxu0 0.0
        %3695 = vmatpush.msra.mxu0 0.0
        %3696 = vmatpush.msra.mxu0 0.0
        %3697 = vmatpush.msra.mxu0 0.0
        %3698 = vmatpush.msra.mxu0 0.0
        %3699 = vmatpush.msra.mxu0 %v3685
        %3700 = vmatpush.msra.mxu0 %v3684
        %3701 = vmatpush.msra.mxu0 %v3683
        %3702 = vmatpush.msra.mxu0 %v3682
        %3703 = vmatpush.msra.mxu0 %v3681
        %3704 = vmatpush.msra.mxu0 %v3680
        %3705 = vmatpush.msra.mxu0 %v3679
        %3706 = vmatpush.msra.mxu0 %v3678
        %3707 = vmatmul.f32.gmra.mxu0 %v3689
        %v3708 = vpop.f32.mrf.mxu0
        %v3709 = vadd.f32 0.0, %v3708
        %3710 = vdwg.mxu0
        %v3712 = vperm.slane %v3687, 0
        %v3715 = vsel %vm3272, %v3709, 0
        %3717 = vmatpush.msra.mxu0 0.0
        %3718 = vmatpush.msra.mxu0 0.0
        %3719 = vmatpush.msra.mxu0 0.0
        %3720 = vmatpush.msra.mxu0 0.0
        %3721 = vmatpush.msra.mxu0 0.0
        %3722 = vmatpush.msra.mxu0 0.0
        %3723 = vmatpush.msra.mxu0 0.0
        %3724 = vmatpush.msra.mxu0 0.0
        %3725 = vmatpush.msra.mxu0 0.0
        %3726 = vmatpush.msra.mxu0 0.0
        %3727 = vmatpush.msra.mxu0 0.0
        %3728 = vmatpush.msra.mxu0 0.0
        %3729 = vmatpush.msra.mxu0 0.0
        %3730 = vmatpush.msra.mxu0 0.0
        %3731 = vmatpush.msra.mxu0 0.0
        %3732 = vmatpush.msra.mxu0 %v3715
        %3733 = vmatmul.f32.gmra.mxu0 %v3270
        %v3734 = vpop.f32.mrf.mxu0
        %v3735 = vadd.f32 %v3712, %v3734
        %3736 = vdwg.mxu0
        %v3737 = vmax.f32 %v3735, 0.0
        %3738 = vrot.lane.b32.xlu0 %v3676, 64
        %v3739 = vpop.permute.xlu0 %3738
        %v3741 = vsel %vm1272, %v3615, %v3739
        %3742 = vxpose.xlu0.b32.start [1/16] %v3521, 128
        %3743 = vxpose.xlu0.b32.cont [2/16] 0.0, 128
        %3744 = vxpose.xlu0.b32.cont [3/16] 0.0, 128
        %3745 = vxpose.xlu0.b32.cont [4/16] 0.0, 128
        %3746 = vxpose.xlu0.b32.cont [5/16] 0.0, 128
        %3747 = vxpose.xlu0.b32.cont [6/16] 0.0, 128
        %3748 = vxpose.xlu0.b32.cont [7/16] 0.0, 128
        %3749 = vxpose.xlu0.b32.cont [8/16] 0.0, 128
        %3750 = vxpose.xlu0.b32.cont [9/16] 0.0, 128
        %3751 = vxpose.xlu0.b32.cont [10/16] 0.0, 128
        %3752 = vxpose.xlu0.b32.cont [11/16] 0.0, 128
        %3753 = vxpose.xlu0.b32.cont [12/16] 0.0, 128
        %3754 = vxpose.xlu0.b32.cont [13/16] 0.0, 128
        %3755 = vxpose.xlu0.b32.cont [14/16] 0.0, 128
        %3756 = vxpose.xlu0.b32.cont [15/16] 0.0, 128
        %3757 = vxpose.xlu0.b32.end [16/16] 0.0, 128
        %v3758 = vpop.trf.xlu0
        %v3759 = vpop.trf.xlu0
        %v3760 = vpop.trf.xlu0
        %v3761 = vpop.trf.xlu0
        %v3762 = vpop.trf.xlu0
        %v3763 = vpop.trf.xlu0
        %v3764 = vpop.trf.xlu0
        %v3765 = vpop.trf.xlu0
        %v3766 = vpop.trf.xlu0
        %v3767 = vpop.trf.xlu0
        %v3768 = vpop.trf.xlu0
        %v3769 = vpop.trf.xlu0
        %v3770 = vpop.trf.xlu0
        %v3771 = vpop.trf.xlu0
        %v3772 = vpop.trf.xlu0
        %v3773 = vpop.trf.xlu0
        %v3775 = vsel %vm2807, %v3758, 0
        %v3778 = vsel %vm2807, %v3759, 0
        %v3781 = vsel %vm3272, %v3741, 0
        %v3784 = vsel %vm3272, %v3737, 0
        %3786 = vmatpush.msra.mxu0 0.0
        %3787 = vmatpush.msra.mxu0 0.0
        %3788 = vmatpush.msra.mxu0 0.0
        %3789 = vmatpush.msra.mxu0 0.0
        %3790 = vmatpush.msra.mxu0 0.0
        %3791 = vmatpush.msra.mxu0 0.0
        %3792 = vmatpush.msra.mxu0 0.0
        %3793 = vmatpush.msra.mxu0 0.0
        %3794 = vmatpush.msra.mxu0 0.0
        %3795 = vmatpush.msra.mxu0 0.0
        %3796 = vmatpush.msra.mxu0 0.0
        %3797 = vmatpush.msra.mxu0 0.0
        %3798 = vmatpush.msra.mxu0 0.0
        %3799 = vmatpush.msra.mxu0 0.0
        %3800 = vmatpush.msra.mxu0 0.0
        %3801 = vmatpush.msra.mxu0 %v3781
        %3802 = vmatmul.f32.gmra.mxu0 %v3775
        %v3803 = vpop.f32.mrf.mxu0
        %v3804 = vadd.f32 0.0, %v3803
        %3805 = vmatmul.f32.gmra.mxu0 %v3778
        %v3806 = vpop.f32.mrf.mxu0
        %v3807 = vadd.f32 0.0, %v3806
        %3808 = vdwg.mxu0
        %3809 = vmatpush.msra.mxu0 0.0
        %3810 = vmatpush.msra.mxu0 0.0
        %3811 = vmatpush.msra.mxu0 0.0
        %3812 = vmatpush.msra.mxu0 0.0
        %3813 = vmatpush.msra.mxu0 0.0
        %3814 = vmatpush.msra.mxu0 0.0
        %3815 = vmatpush.msra.mxu0 0.0
        %3816 = vmatpush.msra.mxu0 0.0
        %3817 = vmatpush.msra.mxu0 0.0
        %3818 = vmatpush.msra.mxu0 0.0
        %3819 = vmatpush.msra.mxu0 0.0
        %3820 = vmatpush.msra.mxu0 0.0
        %3821 = vmatpush.msra.mxu0 0.0
        %3822 = vmatpush.msra.mxu0 0.0
        %3823 = vmatpush.msra.mxu0 0.0
        %3824 = vmatpush.msra.mxu0 %v3784
        %3825 = vmatmul.f32.gmra.mxu0 %v3775
        %v3826 = vpop.f32.mrf.mxu0
        %v3827 = vadd.f32 0.0, %v3826
        %3828 = vmatmul.f32.gmra.mxu0 %v3778
        %v3829 = vpop.f32.mrf.mxu0
        %v3830 = vadd.f32 0.0, %v3829
        %3831 = vdwg.mxu0
        %v3833 = vsel %vm3272, %v3159, 0
        %3835 = vmatpush.msra.mxu0 0.0
        %3836 = vmatpush.msra.mxu0 0.0
        %3837 = vmatpush.msra.mxu0 0.0
        %3838 = vmatpush.msra.mxu0 0.0
        %3839 = vmatpush.msra.mxu0 0.0
        %3840 = vmatpush.msra.mxu0 0.0
        %3841 = vmatpush.msra.mxu0 0.0
        %3842 = vmatpush.msra.mxu0 0.0
        %3843 = vmatpush.msra.mxu0 0.0
        %3844 = vmatpush.msra.mxu0 0.0
        %3845 = vmatpush.msra.mxu0 0.0
        %3846 = vmatpush.msra.mxu0 0.0
        %3847 = vmatpush.msra.mxu0 0.0
        %3848 = vmatpush.msra.mxu0 0.0
        %3849 = vmatpush.msra.mxu0 0.0
        %3850 = vmatpush.msra.mxu0 %v3833
        %3851 = vmatmul.f32.gmra.mxu0 %v3775
        %v3852 = vpop.f32.mrf.mxu0
        %v3853 = vadd.f32 0.0, %v3852
        %3854 = vmatmul.f32.gmra.mxu0 %v3778
        %v3855 = vpop.f32.mrf.mxu0
        %v3856 = vadd.f32 0.0, %v3855
        %3857 = vdwg.mxu0
        %v3859 = vsel %vm2807, %v3853, 0
        %v3862 = vsel %vm2807, %v3856, 0
        %v3865 = vsel %vm3272, %v3521, 0
        %3867 = vmatpush.msra.mxu0 0.0
        %3868 = vmatpush.msra.mxu0 0.0
        %3869 = vmatpush.msra.mxu0 0.0
        %3870 = vmatpush.msra.mxu0 0.0
        %3871 = vmatpush.msra.mxu0 0.0
        %3872 = vmatpush.msra.mxu0 0.0
        %3873 = vmatpush.msra.mxu0 0.0
        %3874 = vmatpush.msra.mxu0 0.0
        %3875 = vmatpush.msra.mxu0 0.0
        %3876 = vmatpush.msra.mxu0 0.0
        %3877 = vmatpush.msra.mxu0 0.0
        %3878 = vmatpush.msra.mxu0 0.0
        %3879 = vmatpush.msra.mxu0 0.0
        %3880 = vmatpush.msra.mxu0 0.0
        %3881 = vmatpush.msra.mxu0 0.0
        %3882 = vmatpush.msra.mxu0 %v3865
        %3883 = vmatmul.f32.gmra.mxu0 %v3859
        %v3884 = vpop.f32.mrf.mxu0
        %v3885 = vadd.f32 %v1513, %v3884
        %3886 = vmatmul.f32.gmra.mxu0 %v3862
        %v3887 = vpop.f32.mrf.mxu0
        %v3888 = vadd.f32 %v1514, %v3887
        %3889 = vdwg.mxu0
        %vm3890 = vcmask 130048
        %v3891 = vsel %vm3890, %v3885, 0.0
        %3892 = vadd.xlane.f32.xlu0 %v3891
        %v3893 = vpop.xlane.xlu0 %3892
        %v3894 = vsel %vm3890, %v3888, 0.0
        %3895 = vadd.xlane.f32.xlu0 %v3894
        %v3896 = vpop.xlane.xlu0 %3895
        %v3897 = vmax.f32 %v3893, 1e-12
        %v3898 = vmax.f32 %v3896, 1e-12
        %v3899 = vrsqrt.pop %v3897
        %v3900 = vmul.f32 %v3899, %v3897
        %v3901 = vmul.f32 %v3900, %v3899
        %v3902 = vmul.f32 0.5, %v3901
        %v3903 = vsub.f32 1.5, %v3902
        %v3904 = vmul.f32 %v3899, %v3903
        %vm3905 = vweird.f32 %v3897
        %vm3906 = vweird.f32 %v3899
        %vm3907 = vmor %vm3905, %vm3906
        %v3908 = vsel %vm3907, %v3899, %v3904
        %v3909 = vrsqrt.pop %v3898
        %v3910 = vmul.f32 %v3909, %v3898
        %v3911 = vmul.f32 %v3910, %v3909
        %v3912 = vmul.f32 0.5, %v3911
        %v3913 = vsub.f32 1.5, %v3912
        %v3914 = vmul.f32 %v3909, %v3913
        %vm3915 = vweird.f32 %v3898
        %vm3916 = vweird.f32 %v3909
        %vm3917 = vmor %vm3915, %vm3916
        %v3918 = vsel %vm3917, %v3909, %v3914
        %v3919 = vadd.f32 %v3891, %v3894
        %v3920 = vrot.slane %v3919, 4
        %v3921 = vadd.f32 %v3919, %v3920
        %v3922 = vrot.slane %v3921, 2
        %v3923 = vadd.f32 %v3921, %v3922
        %v3924 = vrot.slane %v3923, 1
        %v3925 = vadd.f32 %v3923, %v3924
        %v3926 = vmax.f32 %v3925, 1e-12
        %v3927 = vrsqrt.pop %v3926
        %v3928 = vmul.f32 %v3927, %v3926
        %v3929 = vmul.f32 %v3928, %v3927
        %v3930 = vmul.f32 0.5, %v3929
        %v3931 = vsub.f32 1.5, %v3930
        %v3932 = vmul.f32 %v3927, %v3931
        %vm3933 = vweird.f32 %v3926
        %vm3934 = vweird.f32 %v3927
        %vm3935 = vmor %vm3933, %vm3934
        %v3936 = vsel %vm3935, %v3927, %v3932
        %v3937 = vmul.f32 %v3885, %v3908
        %v3938 = vmul.f32 %v3888, %v3918
        %v3939 = vmul.f32 %v3937, %v3936
        %v3940 = vmul.f32 %v3938, %v3936
        %s3941 = scalar_lea.vmem [#allocation13], 4032
        %v3942 = vld [vmem:[%s3941] sm:$0xff]
        %v3943 = vld [vmem:[%s3941 + $0x8] sm:$0xff]
        %v3944 = vld [vmem:[%s3941 + $0x10] sm:$0xff]
        %v3945 = vld [vmem:[%s3941 + $0x18] sm:$0xff]
        %v3946 = vld [vmem:[%s3941 + $0x20] sm:$0xff]
        %v3947 = vld [vmem:[%s3941 + $0x28] sm:$0xff]
        %v3948 = vld [vmem:[%s3941 + $0x30] sm:$0xff]
        %v3949 = vld [vmem:[%s3941 + $0x38] sm:$0xff]
        %v3950 = vld [vmem:[%s3941 + $0x40] sm:$0xff]
        %v3951 = vld [vmem:[%s3941 + $0x48] sm:$0xff]
        %v3952 = vld [vmem:[%s3941 + $0x50] sm:$0xff]
        %v3953 = vld [vmem:[%s3941 + $0x58] sm:$0xff]
        %v3954 = vld [vmem:[%s3941 + $0x60] sm:$0xff]
        %v3955 = vld [vmem:[%s3941 + $0x68] sm:$0xff]
        %v3956 = vld [vmem:[%s3941 + $0x70] sm:$0xff]
        %v3957 = vld [vmem:[%s3941 + $0x78] sm:$0xff]
        %v3958 = vld [vmem:[%s3941 + $0x80] sm:$0xff]
        %v3959 = vld [vmem:[%s3941 + $0x88] sm:$0xff]
        %v3960 = vld [vmem:[%s3941 + $0x90] sm:$0xff]
        %v3961 = vld [vmem:[%s3941 + $0x98] sm:$0xff]
        %v3962 = vld [vmem:[%s3941 + $0xa0] sm:$0xff]
        %v3963 = vld [vmem:[%s3941 + $0xa8] sm:$0xff]
        %v3964 = vld [vmem:[%s3941 + $0xb0] sm:$0xff]
        %v3965 = vld [vmem:[%s3941 + $0xb8] sm:$0xff]
        %s3966 = scalar_lea.vmem [#allocation14], 21
        %v3967 = vld [vmem:[%s3966] sm:$0x1]
        %v3969 = vsel %vm1272, %v3827, 0
        %v3972 = vsel %vm1272, %v3830, 0
        %3974 = vmatpush.msra.mxu0 %v3957
        %3975 = vmatpush.msra.mxu0 %v3956
        %3976 = vmatpush.msra.mxu0 %v3955
        %3977 = vmatpush.msra.mxu0 %v3954
        %3978 = vmatpush.msra.mxu0 %v3953
        %3979 = vmatpush.msra.mxu0 %v3952
        %3980 = vmatpush.msra.mxu0 %v3951
        %3981 = vmatpush.msra.mxu0 %v3950
        %3982 = vmatpush.msra.mxu0 %v3949
        %3983 = vmatpush.msra.mxu0 %v3948
        %3984 = vmatpush.msra.mxu0 %v3947
        %3985 = vmatpush.msra.mxu0 %v3946
        %3986 = vmatpush.msra.mxu0 %v3945
        %3987 = vmatpush.msra.mxu0 %v3944
        %3988 = vmatpush.msra.mxu0 %v3943
        %3989 = vmatpush.msra.mxu0 %v3942
        %3990 = vmatmul.f32.gmra.mxu0 %v3804
        %v3991 = vpop.f32.mrf.mxu0
        %v3992 = vadd.f32 0.0, %v3991
        %3993 = vmatmul.f32.gmra.mxu0 %v3807
        %v3994 = vpop.f32.mrf.mxu0
        %v3995 = vadd.f32 0.0, %v3994
        %3996 = vdwg.mxu0
        %3997 = vmatpush.msra.mxu0 0.0
        %3998 = vmatpush.msra.mxu0 0.0
        %3999 = vmatpush.msra.mxu0 0.0
        %4000 = vmatpush.msra.mxu0 0.0
        %4001 = vmatpush.msra.mxu0 0.0
        %4002 = vmatpush.msra.mxu0 0.0
        %4003 = vmatpush.msra.mxu0 0.0
        %4004 = vmatpush.msra.mxu0 0.0
        %4005 = vmatpush.msra.mxu0 %v3965
        %4006 = vmatpush.msra.mxu0 %v3964
        %4007 = vmatpush.msra.mxu0 %v3963
        %4008 = vmatpush.msra.mxu0 %v3962
        %4009 = vmatpush.msra.mxu0 %v3961
        %4010 = vmatpush.msra.mxu0 %v3960
        %4011 = vmatpush.msra.mxu0 %v3959
        %4012 = vmatpush.msra.mxu0 %v3958
        %4013 = vmatmul.f32.gmra.mxu0 %v3969
        %v4014 = vpop.f32.mrf.mxu0
        %v4015 = vadd.f32 %v3992, %v4014
        %4016 = vmatmul.f32.gmra.mxu0 %v3972
        %v4017 = vpop.f32.mrf.mxu0
        %v4018 = vadd.f32 %v3995, %v4017
        %4019 = vdwg.mxu0
        %v4021 = vperm.slane %v3967, 0
        %v4024 = vsel %vm3890, %v3939, 0
        %v4027 = vsel %vm3890, %v3940, 0
        %4029 = vmatpush.msra.mxu0 0.0
        %4030 = vmatpush.msra.mxu0 0.0
        %4031 = vmatpush.msra.mxu0 0.0
        %4032 = vmatpush.msra.mxu0 0.0
        %4033 = vmatpush.msra.mxu0 0.0
        %4034 = vmatpush.msra.mxu0 0.0
        %4035 = vmatpush.msra.mxu0 0.0
        %4036 = vmatpush.msra.mxu0 0.0
        %4037 = vmatpush.msra.mxu0 0.0
        %4038 = vmatpush.msra.mxu0 0.0
        %4039 = vmatpush.msra.mxu0 0.0
        %4040 = vmatpush.msra.mxu0 0.0
        %4041 = vmatpush.msra.mxu0 0.0
        %4042 = vmatpush.msra.mxu0 0.0
        %4043 = vmatpush.msra.mxu0 %v4018
        %4044 = vmatpush.msra.mxu0 %v4015
        %4045 = vmatmul.f32.gmra.mxu0 %v4024
        %v4046 = vpop.f32.mrf.mxu0
        %v4047 = vadd.f32 %v4021, %v4046
        %4048 = vmatmul.f32.gmra.mxu0 %v4027
        %v4049 = vpop.f32.mrf.mxu0
        %v4050 = vadd.f32 %v4021, %v4049
        %4051 = vdwg.mxu0
        %v4052 = vmax.f32 %v4047, 0.0
        %v4053 = vmax.f32 %v4050, 0.0
        %s4054 = scalar_lea.vmem [#allocation13], 4224
        %v4055 = vld [vmem:[%s4054] sm:$0xff]
        %v4056 = vld [vmem:[%s4054 + $0x8] sm:$0xff]
        %v4057 = vld [vmem:[%s4054 + $0x10] sm:$0xff]
        %v4058 = vld [vmem:[%s4054 + $0x18] sm:$0xff]
        %v4059 = vld [vmem:[%s4054 + $0x20] sm:$0xff]
        %v4060 = vld [vmem:[%s4054 + $0x28] sm:$0xff]
        %v4061 = vld [vmem:[%s4054 + $0x30] sm:$0xff]
        %v4062 = vld [vmem:[%s4054 + $0x38] sm:$0xff]
        %s4063 = scalar_lea.vmem [#allocation14], 22
        %v4064 = vld [vmem:[%s4063] sm:$0x1]
        %v4066 = vsel %vm1272, %v4052, 0
        %v4069 = vsel %vm1272, %v4053, 0
        %4071 = vmatpush.msra.mxu0 0.0
        %4072 = vmatpush.msra.mxu0 0.0
        %4073 = vmatpush.msra.mxu0 0.0
        %4074 = vmatpush.msra.mxu0 0.0
        %4075 = vmatpush.msra.mxu0 0.0
        %4076 = vmatpush.msra.mxu0 0.0
        %4077 = vmatpush.msra.mxu0 0.0
        %4078 = vmatpush.msra.mxu0 0.0
        %4079 = vmatpush.msra.mxu0 %v4062
        %4080 = vmatpush.msra.mxu0 %v4061
        %4081 = vmatpush.msra.mxu0 %v4060
        %4082 = vmatpush.msra.mxu0 %v4059
        %4083 = vmatpush.msra.mxu0 %v4058
        %4084 = vmatpush.msra.mxu0 %v4057
        %4085 = vmatpush.msra.mxu0 %v4056
        %4086 = vmatpush.msra.mxu0 %v4055
        %4087 = vmatmul.f32.gmra.mxu0 %v4066
        %v4088 = vpop.f32.mrf.mxu0
        %v4089 = vadd.f32 0.0, %v4088
        %4090 = vmatmul.f32.gmra.mxu0 %v4069
        %v4091 = vpop.f32.mrf.mxu0
        %v4092 = vadd.f32 0.0, %v4091
        %4093 = vdwg.mxu0
        %v4095 = vperm.slane %v4064, 0
        %4097 = vmatpush.msra.mxu0 0.0
        %4098 = vmatpush.msra.mxu0 0.0
        %4099 = vmatpush.msra.mxu0 0.0
        %4100 = vmatpush.msra.mxu0 0.0
        %4101 = vmatpush.msra.mxu0 0.0
        %4102 = vmatpush.msra.mxu0 0.0
        %4103 = vmatpush.msra.mxu0 0.0
        %4104 = vmatpush.msra.mxu0 0.0
        %4105 = vmatpush.msra.mxu0 0.0
        %4106 = vmatpush.msra.mxu0 0.0
        %4107 = vmatpush.msra.mxu0 0.0
        %4108 = vmatpush.msra.mxu0 0.0
        %4109 = vmatpush.msra.mxu0 0.0
        %4110 = vmatpush.msra.mxu0 0.0
        %4111 = vmatpush.msra.mxu0 %v4092
        %4112 = vmatpush.msra.mxu0 %v4089
        %4113 = vmatmul.f32.gmra.mxu0 %v4024
        %v4114 = vpop.f32.mrf.mxu0
        %v4115 = vadd.f32 %v4095, %v4114
        %4116 = vmatmul.f32.gmra.mxu0 %v4027
        %v4117 = vpop.f32.mrf.mxu0
        %v4118 = vadd.f32 %v4095, %v4117
        %4119 = vdwg.mxu0
        %v4120 = vmax.f32 %v4115, 0.0
        %v4121 = vmax.f32 %v4118, 0.0
        %s4122 = scalar_lea.vmem [#allocation13], 4416
        %v4123 = vld [vmem:[%s4122] sm:$0xff]
        %v4124 = vld [vmem:[%s4122 + $0x8] sm:$0xff]
        %v4125 = vld [vmem:[%s4122 + $0x10] sm:$0xff]
        %v4126 = vld [vmem:[%s4122 + $0x18] sm:$0xff]
        %v4127 = vld [vmem:[%s4122 + $0x20] sm:$0xff]
        %v4128 = vld [vmem:[%s4122 + $0x28] sm:$0xff]
        %v4129 = vld [vmem:[%s4122 + $0x30] sm:$0xff]
        %v4130 = vld [vmem:[%s4122 + $0x38] sm:$0xff]
        %s4131 = scalar_lea.vmem [#allocation14], 23
        %v4132 = vld [vmem:[%s4131] sm:$0x1]
        %v4134 = vsel %vm1272, %v4120, 0
        %v4137 = vsel %vm1272, %v4121, 0
        %4139 = vmatpush.msra.mxu0 0.0
        %4140 = vmatpush.msra.mxu0 0.0
        %4141 = vmatpush.msra.mxu0 0.0
        %4142 = vmatpush.msra.mxu0 0.0
        %4143 = vmatpush.msra.mxu0 0.0
        %4144 = vmatpush.msra.mxu0 0.0
        %4145 = vmatpush.msra.mxu0 0.0
        %4146 = vmatpush.msra.mxu0 0.0
        %4147 = vmatpush.msra.mxu0 %v4130
        %4148 = vmatpush.msra.mxu0 %v4129
        %4149 = vmatpush.msra.mxu0 %v4128
        %4150 = vmatpush.msra.mxu0 %v4127
        %4151 = vmatpush.msra.mxu0 %v4126
        %4152 = vmatpush.msra.mxu0 %v4125
        %4153 = vmatpush.msra.mxu0 %v4124
        %4154 = vmatpush.msra.mxu0 %v4123
        %4155 = vmatmul.f32.gmra.mxu0 %v4134
        %v4156 = vpop.f32.mrf.mxu0
        %v4157 = vadd.f32 0.0, %v4156
        %4158 = vmatmul.f32.gmra.mxu0 %v4137
        %v4159 = vpop.f32.mrf.mxu0
        %v4160 = vadd.f32 0.0, %v4159
        %4161 = vdwg.mxu0
        %v4163 = vperm.slane %v4132, 0
        %4165 = vmatpush.msra.mxu0 0.0
        %4166 = vmatpush.msra.mxu0 0.0
        %4167 = vmatpush.msra.mxu0 0.0
        %4168 = vmatpush.msra.mxu0 0.0
        %4169 = vmatpush.msra.mxu0 0.0
        %4170 = vmatpush.msra.mxu0 0.0
        %4171 = vmatpush.msra.mxu0 0.0
        %4172 = vmatpush.msra.mxu0 0.0
        %4173 = vmatpush.msra.mxu0 0.0
        %4174 = vmatpush.msra.mxu0 0.0
        %4175 = vmatpush.msra.mxu0 0.0
        %4176 = vmatpush.msra.mxu0 0.0
        %4177 = vmatpush.msra.mxu0 0.0
        %4178 = vmatpush.msra.mxu0 0.0
        %4179 = vmatpush.msra.mxu0 %v4160
        %4180 = vmatpush.msra.mxu0 %v4157
        %4181 = vmatmul.f32.gmra.mxu0 %v4024
        %v4182 = vpop.f32.mrf.mxu0
        %v4183 = vadd.f32 %v4163, %v4182
        %4184 = vmatmul.f32.gmra.mxu0 %v4027
        %v4185 = vpop.f32.mrf.mxu0
        %v4186 = vadd.f32 %v4163, %v4185
        %4187 = vdwg.mxu0
        %v4188 = vmax.f32 %v4183, 0.0
        %v4189 = vmax.f32 %v4186, 0.0
        %v4190 = vsel %vm1272, %v4052, 0.0
        %v4191 = vsel %vm1272, %v4053, 0.0
        %v4192 = vadd.f32 %v4190, %v4191
        %v4193 = vrot.slane %v4192, 4
        %v4194 = vadd.f32 %v4192, %v4193
        %v4195 = vrot.slane %v4194, 2
        %v4196 = vadd.f32 %v4194, %v4195
        %v4197 = vrot.slane %v4196, 1
        %v4198 = vadd.f32 %v4196, %v4197
        %v4199 = vrcp.pop 16.0
        %v4200 = vmul.f32 16.0, %v4199
        %v4201 = vsub.f32 1.0, %v4200
        %v4202 = vmul.f32 %v4199, %v4201
        %v4203 = vadd.f32 %v4199, %v4202
        %vm4204 = vweird.f32 %v4199
        %v4205 = vsel %vm4204, %v4199, %v4203
        %v4206 = vmul.f32 %v4198, %v4205
        %v4207 = vsel %vm1272, %v4120, 0.0
        %v4208 = vsel %vm1272, %v4121, 0.0
        %v4209 = vadd.f32 %v4207, %v4208
        %v4210 = vrot.slane %v4209, 4
        %v4211 = vadd.f32 %v4209, %v4210
        %v4212 = vrot.slane %v4211, 2
        %v4213 = vadd.f32 %v4211, %v4212
        %v4214 = vrot.slane %v4213, 1
        %v4215 = vadd.f32 %v4213, %v4214
        %v4216 = vmul.f32 %v4215, %v4205
        %v4217 = vsel %vm1272, %v4188, 0.0
        %v4218 = vsel %vm1272, %v4189, 0.0
        %v4219 = vadd.f32 %v4217, %v4218
        %v4220 = vrot.slane %v4219, 4
        %v4221 = vadd.f32 %v4219, %v4220
        %v4222 = vrot.slane %v4221, 2
        %v4223 = vadd.f32 %v4221, %v4222
        %v4224 = vrot.slane %v4223, 1
        %v4225 = vadd.f32 %v4223, %v4224
        %v4226 = vmul.f32 %v4225, %v4205
        %4228 = vrot.lane.b32.xlu0 %v4216, 64
        %v4229 = vpop.permute.xlu0 %4228
        %v4231 = vsel %vm1272, %v4206, %v4229
        %s4232 = scalar_lea.vmem [#allocation13], 4608
        %v4233 = vld [vmem:[%s4232] sm:$0xff]
        %v4234 = vld [vmem:[%s4232 + $0x8] sm:$0xff]
        %v4235 = vld [vmem:[%s4232 + $0x10] sm:$0xff]
        %v4236 = vld [vmem:[%s4232 + $0x18] sm:$0xff]
        %v4237 = vld [vmem:[%s4232 + $0x20] sm:$0xff]
        %v4238 = vld [vmem:[%s4232 + $0x28] sm:$0xff]
        %v4239 = vld [vmem:[%s4232 + $0x30] sm:$0xff]
        %v4240 = vld [vmem:[%s4232 + $0x38] sm:$0xff]
        %v4241 = vld [vmem:[%s4232 + $0x40] sm:$0xff]
        %v4242 = vld [vmem:[%s4232 + $0x48] sm:$0xff]
        %v4243 = vld [vmem:[%s4232 + $0x50] sm:$0xff]
        %v4244 = vld [vmem:[%s4232 + $0x58] sm:$0xff]
        %v4245 = vld [vmem:[%s4232 + $0x60] sm:$0xff]
        %v4246 = vld [vmem:[%s4232 + $0x68] sm:$0xff]
        %v4247 = vld [vmem:[%s4232 + $0x70] sm:$0xff]
        %v4248 = vld [vmem:[%s4232 + $0x78] sm:$0xff]
        %v4249 = vld [vmem:[%s4232 + $0x80] sm:$0xff]
        %v4250 = vld [vmem:[%s4232 + $0x88] sm:$0xff]
        %v4251 = vld [vmem:[%s4232 + $0x90] sm:$0xff]
        %v4252 = vld [vmem:[%s4232 + $0x98] sm:$0xff]
        %v4253 = vld [vmem:[%s4232 + $0xa0] sm:$0xff]
        %v4254 = vld [vmem:[%s4232 + $0xa8] sm:$0xff]
        %v4255 = vld [vmem:[%s4232 + $0xb0] sm:$0xff]
        %v4256 = vld [vmem:[%s4232 + $0xb8] sm:$0xff]
        %s4257 = scalar_lea.vmem [#allocation14], 24
        %v4258 = vld [vmem:[%s4257] sm:$0x1]
        %v4260 = vsel %vm1272, %v4226, 0
        %4262 = vmatpush.msra.mxu0 %v4248
        %4263 = vmatpush.msra.mxu0 %v4247
        %4264 = vmatpush.msra.mxu0 %v4246
        %4265 = vmatpush.msra.mxu0 %v4245
        %4266 = vmatpush.msra.mxu0 %v4244
        %4267 = vmatpush.msra.mxu0 %v4243
        %4268 = vmatpush.msra.mxu0 %v4242
        %4269 = vmatpush.msra.mxu0 %v4241
        %4270 = vmatpush.msra.mxu0 %v4240
        %4271 = vmatpush.msra.mxu0 %v4239
        %4272 = vmatpush.msra.mxu0 %v4238
        %4273 = vmatpush.msra.mxu0 %v4237
        %4274 = vmatpush.msra.mxu0 %v4236
        %4275 = vmatpush.msra.mxu0 %v4235
        %4276 = vmatpush.msra.mxu0 %v4234
        %4277 = vmatpush.msra.mxu0 %v4233
        %4278 = vmatmul.f32.gmra.mxu0 %v4231
        %v4279 = vpop.f32.mrf.mxu0
        %v4280 = vadd.f32 %v4258, %v4279
        %4281 = vdwg.mxu0
        %4282 = vmatpush.msra.mxu0 0.0
        %4283 = vmatpush.msra.mxu0 0.0
        %4284 = vmatpush.msra.mxu0 0.0
        %4285 = vmatpush.msra.mxu0 0.0
        %4286 = vmatpush.msra.mxu0 0.0
        %4287 = vmatpush.msra.mxu0 0.0
        %4288 = vmatpush.msra.mxu0 0.0
        %4289 = vmatpush.msra.mxu0 0.0
        %4290 = vmatpush.msra.mxu0 %v4256
        %4291 = vmatpush.msra.mxu0 %v4255
        %4292 = vmatpush.msra.mxu0 %v4254
        %4293 = vmatpush.msra.mxu0 %v4253
        %4294 = vmatpush.msra.mxu0 %v4252
        %4295 = vmatpush.msra.mxu0 %v4251
        %4296 = vmatpush.msra.mxu0 %v4250
        %4297 = vmatpush.msra.mxu0 %v4249
        %4298 = vmatmul.f32.gmra.mxu0 %v4260
        %v4299 = vpop.f32.mrf.mxu0
        %v4300 = vadd.f32 %v4280, %v4299
        %4301 = vdwg.mxu0
        %v4302 = vmax.f32 %v4300, 0.0
        %s4303 = scalar_lea.vmem [#allocation13], 4800
        %v4304 = vld [vmem:[%s4303] sm:$0xff]
        %v4305 = vld [vmem:[%s4303 + $0x8] sm:$0xff]
        %v4306 = vld [vmem:[%s4303 + $0x10] sm:$0xff]
        %v4307 = vld [vmem:[%s4303 + $0x18] sm:$0xff]
        %v4308 = vld [vmem:[%s4303 + $0x20] sm:$0xff]
        %v4309 = vld [vmem:[%s4303 + $0x28] sm:$0xff]
        %v4310 = vld [vmem:[%s4303 + $0x30] sm:$0xff]
        %v4311 = vld [vmem:[%s4303 + $0x38] sm:$0xff]
        %s4312 = scalar_lea.vmem [#allocation14], 25
        %v4313 = vld [vmem:[%s4312] sm:$0x1]
        %v4315 = vsel %vm1272, %v4302, 0
        %4317 = vmatpush.msra.mxu0 0.0
        %4318 = vmatpush.msra.mxu0 0.0
        %4319 = vmatpush.msra.mxu0 0.0
        %4320 = vmatpush.msra.mxu0 0.0
        %4321 = vmatpush.msra.mxu0 0.0
        %4322 = vmatpush.msra.mxu0 0.0
        %4323 = vmatpush.msra.mxu0 0.0
        %4324 = vmatpush.msra.mxu0 0.0
        %4325 = vmatpush.msra.mxu0 %v4311
        %4326 = vmatpush.msra.mxu0 %v4310
        %4327 = vmatpush.msra.mxu0 %v4309
        %4328 = vmatpush.msra.mxu0 %v4308
        %4329 = vmatpush.msra.mxu0 %v4307
        %4330 = vmatpush.msra.mxu0 %v4306
        %4331 = vmatpush.msra.mxu0 %v4305
        %4332 = vmatpush.msra.mxu0 %v4304
        %4333 = vmatmul.f32.gmra.mxu0 %v4315
        %v4334 = vpop.f32.mrf.mxu0
        %v4335 = vadd.f32 %v4313, %v4334
        %4336 = vdwg.mxu0
        %vm4337 = vcmask 65536
        %v4338 = vsel %vm4337, %v4335, -inf
        %4339 = vmax.xlane.f32.xlu0 %v4338
        %v4340 = vpop.xlane.xlu0 %4339
        %v4341 = vsub.f32 %v4335, %v4340
        %v4342 = vmul.f32 %v4341, 1.442695
        %v4343 = vpow.pop %v4342
        %v4344 = vsel %vm4337, %v4343, 0.0
        %4345 = vadd.xlane.f32.xlu0 %v4344
        %v4346 = vpop.xlane.xlu0 %4345
        %v4347 = vlog2.pop %v4346
        %v4348 = vmul.f32 %v4347, 0.6931472
        %v4349 = vsub.f32 %v4341, %v4348
        %4350 = vst.msk [vmem:[%s520] sm:$0x1] %vm4337, %v4349
        %s4351 = sand.u32 %s264, 1
        %s4352 = scalar_lea.sflag [#allocation4], %s4351
        %s4353 = sand.u32 %s264, 1
        %s4354 = scalar_lea.vmem [#allocation16], %s4353
        // Predicated region
        $region93: #{net_forward.1} parent=59 // pred_check
          %p4355 = pneg %p274
        $region94: #{net_forward.1} parent=59 // pred_check_branch
          %4357 = sbr.rel (%p4355) target = $region96
        $region95: #{net_forward.1} parent=59 // pred_region
          %4359 = vsyncadd %s4352, 0
          %s4360 = scalar_lea.hbm %s10, %s31
          %s4362 = sshll.u32 %s4354, 4
          %s4363 = int_to_ptr.vmem [resolvable:$true] %s4362
          %s4364 = sshll.u32 %s4360, 4
          %s4365 = int_to_ptr.hbm [resolvable:$true] %s4364
          %4367 = dma.vmem_to_hbm [thread:$0]  %s4363, 16, %s4365, %s4352
        $region96: #{net_forward.1} parent=59 // pred_fallthru
          _
      $region60: #{net_forward.1} parent=5 // pred_fallthru
        _
      %p4368 = scmp.le.s32.totalorder 2, %s26
      // Predicated region
      $region97: #{net_forward.1} parent=5 // pred_check
        %p4369 = pneg %p4368
      $region98: #{net_forward.1} parent=5 // pred_check_branch
        %4371 = sbr.rel (%p4369) target = $region100
      $region99: #{net_forward.1} parent=5 // pred_region
        %s4372 = ssub.s32 %s26, 2
        // Predicated region
        $region101: #{net_forward.1} parent=99 // pred_check
          %p4373 = pneg %p280
        $region102: #{net_forward.1} parent=99 // pred_check_branch
          %4375 = sbr.rel (%p4373) target = $region104
        $region103: #{net_forward.1} parent=99 // pred_region
          %s4376 = sand.u32 %s265, 1
          %s4377 = scalar_lea.sflag [#allocation4], %s4376
          %s4378 = sand.u32 %s265, 1
          %s4379 = scalar_lea.vmem [#allocation16], %s4378
          %4381 = dma.done %s4377, 16
        $region104: #{net_forward.1} parent=99 // pred_fallthru
          _
      $region100: #{net_forward.1} parent=5 // pred_fallthru
        _
    $region6: #{net_forward.1} parent=1 // loop_footer
      %s30 = sadd.s32 1, %s26
    $region7: #{net_forward.1} parent=1 // loop_footer_branch
      %25 = sbr.rel target = $region3
    $region8: #{net_forward.1} parent=1 // loop_exit
      _
    %4382 = vsyncpa [#allocation3], 1
    %s4383 = scalar_lea.sflag [#allocation3], 1
    %4384 = vsyncpa %s4383, 1
    %4385 = vsyncpa [#allocation6], 1
    %4386 = vsyncpa [#allocation9], 1
    %4387 = vsyncpa [#allocation12], 1
    %4388 = vsyncpa [#allocation15], 1
    %4389 = vsyncpa [#allocation4], 1
    %s4390 = scalar_lea.sflag [#allocation4], 1
    %4391 = vsyncpa %s4390, 1

</llo_original>
